<compile_context>
chip_gen: v6e
topology: v6e:2x2x1
jax: 0.10.0
libtpu: 0.0.40
codegen_flags: <defaults>
</compile_context>

<pallas_src>
import math

import jax
import jax.numpy as jnp
from jax import lax
from jax.experimental import pallas as pl
from jax.experimental.pallas import tpu as pltpu

# ---- scaled-down ViT-B/16 config (real: DIM=768, HEADS=12, FF=3072, LAYERS=12)
PATCH = 16
DIM = 128
HEADS = 4
DH = DIM // HEADS
FF = 256
LAYERS = 2
LN_EPS = 1e-6            # nn.LayerNorm(dim, eps=1e-6) in the ViT backbone
NORMALIZE_EPS = 1e-12    # F.normalize default eps


def _layernorm(x, g, b, eps):
    mu = jnp.mean(x, axis=-1, keepdims=True)
    xc = x - mu
    var = jnp.mean(xc * xc, axis=-1, keepdims=True)
    return xc * lax.rsqrt(var + eps) * g + b


# ------------------------------ fused ViT kernel -----------------------------

def _make_vit_kernel(B, S, NP):
    """Whole-network kernel: grid=(LAYERS,), residual stream VMEM-resident."""

    def kernel(patches_ref, pw_ref, pb_ref, cls_ref, pos_ref,
               ln1g_ref, ln1b_ref, wqkv_ref, bqkv_ref, wo_ref, bo_ref,
               ln2g_ref, ln2b_ref, w1_ref, b1_ref, w2_ref, b2_ref,
               fng_ref, fnb_ref, o_ref, h_scr):
        layer = pl.program_id(0)

        # ---- layer-0 prologue: patch matmul + cls token + pos embedding ----
        @pl.when(layer == 0)
        def _():
            p = patches_ref[...].astype(jnp.bfloat16)               # (B*NP, K)
            tok = jnp.dot(p, pw_ref[...],
                          preferred_element_type=jnp.float32) + pb_ref[...]
            pos = pos_ref[...]                                       # (S, DIM)
            cls_row = cls_ref[...] + pos[0:1, :]                     # (1, DIM)
            for b in range(B):
                h_scr[b * S:b * S + 1, :] = cls_row
                h_scr[b * S + 1:(b + 1) * S, :] = (
                    tok[b * NP:(b + 1) * NP, :] + pos[1:, :])

        h = h_scr[...]                                               # (B*S, DIM) f32

        # ---- attention sub-block (pre-LN), M = B*S ----
        hn = _layernorm(h, ln1g_ref[0], ln1b_ref[0], LN_EPS)
        qkv = jnp.dot(hn.astype(jnp.bfloat16), wqkv_ref[0],
                      preferred_element_type=jnp.float32) + bqkv_ref[0]  # (B*S, 3*DIM)

        # Per-image SxS attention; per-head outputs concatenated in registers
        # (lane-dense) instead of masked partial-lane scratch stores.
        # Q is pre-scaled by 1/sqrt(DH) (folded into wqkv in the wrapper).
        attn_rows = []
        for b in range(B):
            rows = slice(b * S, (b + 1) * S)
            head_outs = []
            for hh in range(HEADS):
                qh = qkv[rows, hh * DH:(hh + 1) * DH].astype(jnp.bfloat16)
                kh = qkv[rows, DIM + hh * DH:DIM + (hh + 1) * DH].astype(jnp.bfloat16)
                vh = qkv[rows, 2 * DIM + hh * DH:2 * DIM + (hh + 1) * DH].astype(jnp.bfloat16)
                s = lax.dot_general(qh, kh, (((1,), (1,)), ((), ())),
                                    preferred_element_type=jnp.float32)  # (S, S)
                s = s - jnp.max(s, axis=-1, keepdims=True)
                pz = jnp.exp(s)
                pz = pz * pl.reciprocal(jnp.sum(pz, axis=-1, keepdims=True),
                                        approx=True)
                head_outs.append(jnp.dot(pz.astype(jnp.bfloat16), vh,
                                         preferred_element_type=jnp.float32))
            attn_rows.append(jnp.concatenate(head_outs, axis=-1))    # (S, DIM)
        attn = jnp.concatenate(attn_rows, axis=0)                    # (B*S, DIM)

        proj = jnp.dot(attn.astype(jnp.bfloat16), wo_ref[0],
                       preferred_element_type=jnp.float32) + bo_ref[0]
        h = h + proj                                                 # residual 1

        # ---- MLP sub-block (pre-LN), exact erf-GELU (EUP slot) ----
        hn2 = _layernorm(h, ln2g_ref[0], ln2b_ref[0], LN_EPS)
        f1 = jnp.dot(hn2.astype(jnp.bfloat16), w1_ref[0],
                     preferred_element_type=jnp.float32) + b1_ref[0]
        f1 = 0.5 * f1 * (1.0 + lax.erf(f1 * 0.7071067811865476))
        f2 = jnp.dot(f1.astype(jnp.bfloat16), w2_ref[0],
                     preferred_element_type=jnp.float32) + b2_ref[0]
        h_new = h + f2                                               # residual 2
        h_scr[...] = h_new

        # ---- last-layer epilogue: final LayerNorm + F.normalize on cls rows ----
        @pl.when(layer == pl.num_programs(0) - 1)
        def _():
            cls_out = jnp.concatenate(
                [h_new[b * S:b * S + 1, :] for b in range(B)], axis=0)  # (B, DIM)
            y = _layernorm(cls_out, fng_ref[...], fnb_ref[...], LN_EPS)
            n = jnp.maximum(jnp.sqrt(jnp.sum(y * y, axis=-1, keepdims=True)),
                            NORMALIZE_EPS)                           # clamp_min(eps)
            o_ref[...] = (y / n).astype(o_ref.dtype)

    return kernel


# ------------------------------ model wrapper --------------------------------

def model_forward(x, params):
    """x: (B, C, H, W) float32 (NCHW, same as the PyTorch module)."""
    B, C, H, W = x.shape
    GH, GW = H // PATCH, W // PATCH
    NP = GH * GW
    S = NP + 1
    K = C * PATCH * PATCH

    # Patch embedding: Conv2d(C, DIM, k=16, s=16) == per-patch matmul; the patch
    # row is laid out in (c, ph, pw) order to match Conv2d's weight layout.
    patches = x.reshape(B, C, GH, PATCH, GW, PATCH)
    patches = patches.transpose(0, 2, 4, 1, 3, 5).reshape(B * NP, K)

    full = lambda shape: pl.BlockSpec(shape, lambda l: (0, 0))
    layered = lambda shape: pl.BlockSpec((1,) + shape, lambda l: (l, 0, 0))

    return pl.pallas_call(
        _make_vit_kernel(B, S, NP),
        out_shape=jax.ShapeDtypeStruct((B, DIM), jnp.float32),
        grid=(LAYERS,),
        in_specs=[
            full((B * NP, K)),           # patches        (layer-invariant)
            full((K, DIM)),              # patch_w
            full((1, DIM)),              # patch_b
            full((1, DIM)),              # cls_token
            full((S, DIM)),              # pos_emb
            layered((1, DIM)),           # ln1_g          (indexed by layer)
            layered((1, DIM)),           # ln1_b
            layered((DIM, 3 * DIM)),     # wqkv
            layered((1, 3 * DIM)),       # bqkv
            layered((DIM, DIM)),         # wo
            layered((1, DIM)),           # bo
            layered((1, DIM)),           # ln2_g
            layered((1, DIM)),           # ln2_b
            layered((DIM, FF)),          # w1
            layered((1, FF)),            # b1
            layered((FF, DIM)),          # w2
            layered((1, DIM)),           # b2
            full((1, DIM)),              # final norm gamma
            full((1, DIM)),              # final norm beta
        ],
        out_specs=pl.BlockSpec((B, DIM), lambda l: (0, 0)),   # layer-invariant
        scratch_shapes=[pltpu.VMEM((B * S, DIM), jnp.float32)],
        compiler_params=pltpu.CompilerParams(
            dimension_semantics=("arbitrary",)),
    )(patches, params["patch_w"], params["patch_b"], params["cls_token"],
      params["pos_emb"], params["ln1_g"], params["ln1_b"], params["wqkv"],
      params["bqkv"], params["wo"], params["bo"], params["ln2_g"],
      params["ln2_b"], params["w1"], params["b1"], params["w2"], params["b2"],
      params["norm_g"], params["norm_b"])


# ------------------------------ parameter init -------------------------------

def init_params(key, in_ch, num_patches):
    state = {"key": key}

    def nrm(shape, scale=0.02, dtype=jnp.float32):
        state["key"], sub = jax.random.split(state["key"])
        return (scale * jax.random.normal(sub, shape, jnp.float32)).astype(dtype)

    S = num_patches + 1
    K = in_ch * PATCH * PATCH
    scale_q = 1.0 / math.sqrt(DH)

    layers = {k: [] for k in ("ln1_g", "ln1_b", "wqkv", "bqkv", "wo", "bo",
                              "ln2_g", "ln2_b", "w1", "b1", "w2", "b2")}
    for _ in range(LAYERS):
        wq, wk, wv = nrm((DIM, DIM)), nrm((DIM, DIM)), nrm((DIM, DIM))
        bq, bk, bv = nrm((DIM,)), nrm((DIM,)), nrm((DIM,))
        # fused QKV weight; 1/sqrt(head_dim) folded into the Q slice once here
        layers["wqkv"].append(
            jnp.concatenate([wq * scale_q, wk, wv], axis=1).astype(jnp.bfloat16))
        layers["bqkv"].append(
            jnp.concatenate([bq * scale_q, bk, bv], axis=0).reshape(1, 3 * DIM))
        layers["ln1_g"].append(jnp.ones((1, DIM), jnp.float32))
        layers["ln1_b"].append(jnp.zeros((1, DIM), jnp.float32))
        layers["wo"].append(nrm((DIM, DIM), dtype=jnp.bfloat16))
        layers["bo"].append(nrm((DIM,)).reshape(1, DIM))
        layers["ln2_g"].append(jnp.ones((1, DIM), jnp.float32))
        layers["ln2_b"].append(jnp.zeros((1, DIM), jnp.float32))
        layers["w1"].append(nrm((DIM, FF), dtype=jnp.bfloat16))
        layers["b1"].append(nrm((FF,)).reshape(1, FF))
        layers["w2"].append(nrm((FF, DIM), dtype=jnp.bfloat16))
        layers["b2"].append(nrm((DIM,)).reshape(1, DIM))

    params = {k: jnp.stack(v, axis=0) for k, v in layers.items()}
    params.update({
        "patch_w": nrm((K, DIM), dtype=jnp.bfloat16),
        "patch_b": nrm((1, DIM)),
        "cls_token": nrm((1, DIM)),
        "pos_emb": nrm((S, DIM)),
        "norm_g": jnp.ones((1, DIM), jnp.float32),
        "norm_b": jnp.zeros((1, DIM), jnp.float32),
    })
    return params


if __name__ == "__main__":
    key = jax.random.PRNGKey(0)
    pkey, xkey = jax.random.split(key)

    B, C, H, W = 2, 3, 32, 32          # 2x2 = 4 patches of 16x16 -> seq = 5 with cls
    x = jax.random.normal(xkey, (B, C, H, W), dtype=jnp.float32)
    params = init_params(pkey, in_ch=C, num_patches=(H // PATCH) * (W // PATCH))

    fwd = jax.jit(model_forward)
    z = fwd(x, params)
    jax.block_until_ready(z)

    assert z.shape == (B, DIM)
    assert bool(jnp.all(jnp.isfinite(z)))
    print("KERNEL_OK")
</pallas_src>

<mosaic_0001>
module attributes {stable_mosaic.version = 11 : i64} {
  func.func @kernel(%arg0: i32, %arg1: memref<8x768xf32, #tpu.memory_space<vmem>>, %arg2: memref<768x128xbf16, #tpu.memory_space<vmem>>, %arg3: memref<1x128xf32, #tpu.memory_space<vmem>>, %arg4: memref<1x128xf32, #tpu.memory_space<vmem>>, %arg5: memref<5x128xf32, #tpu.memory_space<vmem>>, %arg6: memref<1x1x128xf32, #tpu.memory_space<vmem>>, %arg7: memref<1x1x128xf32, #tpu.memory_space<vmem>>, %arg8: memref<1x128x384xbf16, #tpu.memory_space<vmem>>, %arg9: memref<1x1x384xf32, #tpu.memory_space<vmem>>, %arg10: memref<1x128x128xbf16, #tpu.memory_space<vmem>>, %arg11: memref<1x1x128xf32, #tpu.memory_space<vmem>>, %arg12: memref<1x1x128xf32, #tpu.memory_space<vmem>>, %arg13: memref<1x1x128xf32, #tpu.memory_space<vmem>>, %arg14: memref<1x128x256xbf16, #tpu.memory_space<vmem>>, %arg15: memref<1x1x256xf32, #tpu.memory_space<vmem>>, %arg16: memref<1x256x128xbf16, #tpu.memory_space<vmem>>, %arg17: memref<1x1x128xf32, #tpu.memory_space<vmem>>, %arg18: memref<1x128xf32, #tpu.memory_space<vmem>>, %arg19: memref<1x128xf32, #tpu.memory_space<vmem>>, %arg20: memref<2x128xf32, #tpu.memory_space<vmem>>, %arg21: memref<10x128xf32, #tpu.memory_space<vmem>>) attributes {dimension_semantics = [#tpu.dimension_semantics<arbitrary>], iteration_bounds = array<i64: 2>, scalar_prefetch = 0 : i64, scratch_operands = 1 : i64, tpu.core_type = #tpu.core_type<tc>, window_params = [{pipeline_mode = #tpu.pipeline_mode<synchronous>, transform_indices = @transform_0, window_bounds = array<i64: 8, 768>}, {pipeline_mode = #tpu.pipeline_mode<synchronous>, transform_indices = @transform_1, window_bounds = array<i64: 768, 128>}, {pipeline_mode = #tpu.pipeline_mode<synchronous>, transform_indices = @transform_2, window_bounds = array<i64: 1, 128>}, {pipeline_mode = #tpu.pipeline_mode<synchronous>, transform_indices = @transform_3, window_bounds = array<i64: 1, 128>}, {pipeline_mode = #tpu.pipeline_mode<synchronous>, transform_indices = @transform_4, window_bounds = array<i64: 5, 128>}, {transform_indices = @transform_5, window_bounds = array<i64: 1, 1, 128>}, {transform_indices = @transform_6, window_bounds = array<i64: 1, 1, 128>}, {transform_indices = @transform_7, window_bounds = array<i64: 1, 128, 384>}, {transform_indices = @transform_8, window_bounds = array<i64: 1, 1, 384>}, {transform_indices = @transform_9, window_bounds = array<i64: 1, 128, 128>}, {transform_indices = @transform_10, window_bounds = array<i64: 1, 1, 128>}, {transform_indices = @transform_11, window_bounds = array<i64: 1, 1, 128>}, {transform_indices = @transform_12, window_bounds = array<i64: 1, 1, 128>}, {transform_indices = @transform_13, window_bounds = array<i64: 1, 128, 256>}, {transform_indices = @transform_14, window_bounds = array<i64: 1, 1, 256>}, {transform_indices = @transform_15, window_bounds = array<i64: 1, 256, 128>}, {transform_indices = @transform_16, window_bounds = array<i64: 1, 1, 128>}, {pipeline_mode = #tpu.pipeline_mode<synchronous>, transform_indices = @transform_17, window_bounds = array<i64: 1, 128>}, {pipeline_mode = #tpu.pipeline_mode<synchronous>, transform_indices = @transform_18, window_bounds = array<i64: 1, 128>}, {pipeline_mode = #tpu.pipeline_mode<synchronous>, transform_indices = @transform_19, window_bounds = array<i64: 2, 128>}]} {
    %c0_i32 = arith.constant 0 : i32
    %0 = arith.cmpi eq, %arg0, %c0_i32 : i32
    %1 = arith.extui %0 : i1 to i32
    %c0_i32_0 = arith.constant 0 : i32
    %2 = arith.cmpi ne, %1, %c0_i32_0 : i32
    scf.if %2 {
      %c0_89 = arith.constant 0 : index
      %c0_90 = arith.constant 0 : index
      %253 = vector.load %arg1[%c0_89, %c0_90] : memref<8x768xf32, #tpu.memory_space<vmem>>, vector<8x768xf32>
      %254 = arith.truncf %253 : vector<8x768xf32> to vector<8x768xbf16>
      %c0_91 = arith.constant 0 : index
      %c0_92 = arith.constant 0 : index
      %255 = vector.load %arg2[%c0_91, %c0_92] : memref<768x128xbf16, #tpu.memory_space<vmem>>, vector<768x128xbf16>
      %cst_93 = arith.constant dense<0.000000e+00> : vector<8x128xf32>
      %256 = tpu.matmul %254, %255, %cst_93 {dimension_numbers = #tpu.dot_dimension_numbers<[1], [0], [0], [1], [0, 0, 1, 1], [], []>} : vector<8x768xbf16>, vector<768x128xbf16>, vector<8x128xf32> -> vector<8x128xf32>
      %c0_94 = arith.constant 0 : index
      %c0_95 = arith.constant 0 : index
      %257 = vector.load %arg3[%c0_94, %c0_95] : memref<1x128xf32, #tpu.memory_space<vmem>>, vector<1x128xf32>
      %258 = vector.broadcast %257 : vector<1x128xf32> to vector<8x128xf32>
      %259 = arith.addf %256, %258 : vector<8x128xf32>
      %c0_96 = arith.constant 0 : index
      %c0_97 = arith.constant 0 : index
      %260 = vector.load %arg5[%c0_96, %c0_97] : memref<5x128xf32, #tpu.memory_space<vmem>>, vector<5x128xf32>
      %c0_98 = arith.constant 0 : index
      %c0_99 = arith.constant 0 : index
      %261 = vector.load %arg4[%c0_98, %c0_99] : memref<1x128xf32, #tpu.memory_space<vmem>>, vector<1x128xf32>
      %262 = vector.extract_strided_slice %260 {offsets = [0, 0], sizes = [1, 128], strides = [1, 1]} : vector<5x128xf32> to vector<1x128xf32>
      %263 = arith.addf %261, %262 : vector<1x128xf32>
      %c0_100 = arith.constant 0 : index
      %c0_101 = arith.constant 0 : index
      %264 = vector.load %arg21[%c0_100, %c0_101] : memref<10x128xf32, #tpu.memory_space<vmem>>, vector<1x128xf32>
      tpu.vector_store %arg21[%c0_100, %c0_101], %263 {strides = array<i32>} : memref<10x128xf32, #tpu.memory_space<vmem>>, vector<1x128xf32>,
      %265 = vector.extract_strided_slice %259 {offsets = [0, 0], sizes = [4, 128], strides = [1, 1]} : vector<8x128xf32> to vector<4x128xf32>
      %266 = vector.extract_strided_slice %260 {offsets = [1, 0], sizes = [4, 128], strides = [1, 1]} : vector<5x128xf32> to vector<4x128xf32>
      %267 = arith.addf %265, %266 : vector<4x128xf32>
      %c1 = arith.constant 1 : index
      %c0_102 = arith.constant 0 : index
      %268 = vector.load %arg21[%c1, %c0_102] : memref<10x128xf32, #tpu.memory_space<vmem>>, vector<4x128xf32>
      tpu.vector_store %arg21[%c1, %c0_102], %267 {strides = array<i32>} : memref<10x128xf32, #tpu.memory_space<vmem>>, vector<4x128xf32>,
      %c5 = arith.constant 5 : index
      %c0_103 = arith.constant 0 : index
      %269 = vector.load %arg21[%c5, %c0_103] : memref<10x128xf32, #tpu.memory_space<vmem>>, vector<1x128xf32>
      tpu.vector_store %arg21[%c5, %c0_103], %263 {strides = array<i32>} : memref<10x128xf32, #tpu.memory_space<vmem>>, vector<1x128xf32>,
      %270 = vector.extract_strided_slice %259 {offsets = [4, 0], sizes = [4, 128], strides = [1, 1]} : vector<8x128xf32> to vector<4x128xf32>
      %271 = vector.extract_strided_slice %260 {offsets = [1, 0], sizes = [4, 128], strides = [1, 1]} : vector<5x128xf32> to vector<4x128xf32>
      %272 = arith.addf %270, %271 : vector<4x128xf32>
      %c6 = arith.constant 6 : index
      %c0_104 = arith.constant 0 : index
      %273 = vector.load %arg21[%c6, %c0_104] : memref<10x128xf32, #tpu.memory_space<vmem>>, vector<4x128xf32>
      tpu.vector_store %arg21[%c6, %c0_104], %272 {strides = array<i32>} : memref<10x128xf32, #tpu.memory_space<vmem>>, vector<4x128xf32>,
    } else {
    }
    %c0 = arith.constant 0 : index
    %c0_1 = arith.constant 0 : index
    %3 = vector.load %arg21[%c0, %c0_1] : memref<10x128xf32, #tpu.memory_space<vmem>>, vector<10x128xf32>
    %c0_2 = arith.constant 0 : index
    %c0_3 = arith.constant 0 : index
    %c0_4 = arith.constant 0 : index
    %4 = vector.load %arg6[%c0_2, %c0_3, %c0_4] : memref<1x1x128xf32, #tpu.memory_space<vmem>>, vector<1x1x128xf32>
    %5 = vector.shape_cast %4 : vector<1x1x128xf32> to vector<1x128xf32>
    %c0_5 = arith.constant 0 : index
    %c0_6 = arith.constant 0 : index
    %c0_7 = arith.constant 0 : index
    %6 = vector.load %arg7[%c0_5, %c0_6, %c0_7] : memref<1x1x128xf32, #tpu.memory_space<vmem>>, vector<1x1x128xf32>
    %7 = vector.shape_cast %6 : vector<1x1x128xf32> to vector<1x128xf32>
    %cst = arith.constant dense<0.000000e+00> : vector<10xf32>
    %8 = vector.multi_reduction <add>, %3, %cst [1] : vector<10x128xf32> to vector<10xf32>
    %9 = vector.shape_cast %8 : vector<10xf32> to vector<10x1xf32>
    %cst_8 = arith.constant 1.280000e+02 : f32
    %10 = vector.broadcast %cst_8 : f32 to vector<10x1xf32>
    %11 = arith.divf %9, %10 : vector<10x1xf32>
    %12 = vector.broadcast %11 : vector<10x1xf32> to vector<10x128xf32>
    %13 = arith.subf %3, %12 : vector<10x128xf32>
    %14 = arith.mulf %13, %13 : vector<10x128xf32>
    %cst_9 = arith.constant dense<0.000000e+00> : vector<10xf32>
    %15 = vector.multi_reduction <add>, %14, %cst_9 [1] : vector<10x128xf32> to vector<10xf32>
    %16 = vector.shape_cast %15 : vector<10xf32> to vector<10x1xf32>
    %cst_10 = arith.constant 1.280000e+02 : f32
    %17 = vector.broadcast %cst_10 : f32 to vector<10x1xf32>
    %18 = arith.divf %16, %17 : vector<10x1xf32>
    %cst_11 = arith.constant 9.99999997E-7 : f32
    %19 = vector.broadcast %cst_11 : f32 to vector<10x1xf32>
    %20 = arith.addf %18, %19 : vector<10x1xf32>
    %21 = math.rsqrt %20 : vector<10x1xf32>
    %22 = vector.broadcast %21 : vector<10x1xf32> to vector<10x128xf32>
    %23 = arith.mulf %13, %22 : vector<10x128xf32>
    %24 = vector.broadcast %5 : vector<1x128xf32> to vector<10x128xf32>
    %25 = arith.mulf %23, %24 : vector<10x128xf32>
    %26 = vector.broadcast %7 : vector<1x128xf32> to vector<10x128xf32>
    %27 = arith.addf %25, %26 : vector<10x128xf32>
    %28 = arith.truncf %27 : vector<10x128xf32> to vector<10x128xbf16>
    %c0_12 = arith.constant 0 : index
    %c0_13 = arith.constant 0 : index
    %c0_14 = arith.constant 0 : index
    %29 = vector.load %arg8[%c0_12, %c0_13, %c0_14] : memref<1x128x384xbf16, #tpu.memory_space<vmem>>, vector<1x128x384xbf16>
    %30 = vector.shape_cast %29 : vector<1x128x384xbf16> to vector<128x384xbf16>
    %cst_15 = arith.constant dense<0.000000e+00> : vector<10x384xf32>
    %31 = tpu.matmul %28, %30, %cst_15 {dimension_numbers = #tpu.dot_dimension_numbers<[1], [0], [0], [1], [0, 0, 1, 1], [], []>} : vector<10x128xbf16>, vector<128x384xbf16>, vector<10x384xf32> -> vector<10x384xf32>
    %c0_16 = arith.constant 0 : index
    %c0_17 = arith.constant 0 : index
    %c0_18 = arith.constant 0 : index
    %32 = vector.load %arg9[%c0_16, %c0_17, %c0_18] : memref<1x1x384xf32, #tpu.memory_space<vmem>>, vector<1x1x384xf32>
    %33 = vector.shape_cast %32 : vector<1x1x384xf32> to vector<1x384xf32>
    %34 = vector.broadcast %33 : vector<1x384xf32> to vector<10x384xf32>
    %35 = arith.addf %31, %34 : vector<10x384xf32>
    %36 = vector.extract_strided_slice %35 {offsets = [0, 0], sizes = [5, 32], strides = [1, 1]} : vector<10x384xf32> to vector<5x32xf32>
    %37 = arith.truncf %36 : vector<5x32xf32> to vector<5x32xbf16>
    %38 = vector.extract_strided_slice %35 {offsets = [0, 128], sizes = [5, 32], strides = [1, 1]} : vector<10x384xf32> to vector<5x32xf32>
    %39 = arith.truncf %38 : vector<5x32xf32> to vector<5x32xbf16>
    %40 = vector.extract_strided_slice %35 {offsets = [0, 256], sizes = [5, 32], strides = [1, 1]} : vector<10x384xf32> to vector<5x32xf32>
    %41 = arith.truncf %40 : vector<5x32xf32> to vector<5x32xbf16>
    %cst_19 = arith.constant dense<0.000000e+00> : vector<5x5xf32>
    %42 = tpu.matmul %37, %39, %cst_19 {dimension_numbers = #tpu.dot_dimension_numbers<[1], [1], [0], [0], [0, 0, 1, 0], [], []>} : vector<5x32xbf16>, vector<5x32xbf16>, vector<5x5xf32> -> vector<5x5xf32>
    %cst_20 = arith.constant dense<0xFF800000> : vector<5xf32>
    %43 = vector.multi_reduction <maximumf>, %42, %cst_20 [1] : vector<5x5xf32> to vector<5xf32>
    %44 = vector.shape_cast %43 : vector<5xf32> to vector<5x1xf32>
    %45 = vector.broadcast %44 : vector<5x1xf32> to vector<5x5xf32>
    %46 = arith.subf %42, %45 : vector<5x5xf32>
    %47 = math.exp %46 : vector<5x5xf32>
    %cst_21 = arith.constant dense<0.000000e+00> : vector<5xf32>
    %48 = vector.multi_reduction <add>, %47, %cst_21 [1] : vector<5x5xf32> to vector<5xf32>
    %49 = vector.shape_cast %48 : vector<5xf32> to vector<5x1xf32>
    %50 = tpu.reciprocal %49 {approx = true} : vector<5x1xf32> -> vector<5x1xf32>
    %51 = vector.broadcast %50 : vector<5x1xf32> to vector<5x5xf32>
    %52 = arith.mulf %47, %51 : vector<5x5xf32>
    %53 = arith.truncf %52 : vector<5x5xf32> to vector<5x5xbf16>
    %cst_22 = arith.constant dense<0.000000e+00> : vector<5x32xf32>
    %54 = tpu.matmul %53, %41, %cst_22 {dimension_numbers = #tpu.dot_dimension_numbers<[1], [0], [0], [1], [0, 0, 1, 1], [], []>} : vector<5x5xbf16>, vector<5x32xbf16>, vector<5x32xf32> -> vector<5x32xf32>
    %55 = vector.extract_strided_slice %35 {offsets = [0, 32], sizes = [5, 32], strides = [1, 1]} : vector<10x384xf32> to vector<5x32xf32>
    %56 = arith.truncf %55 : vector<5x32xf32> to vector<5x32xbf16>
    %57 = vector.extract_strided_slice %35 {offsets = [0, 160], sizes = [5, 32], strides = [1, 1]} : vector<10x384xf32> to vector<5x32xf32>
    %58 = arith.truncf %57 : vector<5x32xf32> to vector<5x32xbf16>
    %59 = vector.extract_strided_slice %35 {offsets = [0, 288], sizes = [5, 32], strides = [1, 1]} : vector<10x384xf32> to vector<5x32xf32>
    %60 = arith.truncf %59 : vector<5x32xf32> to vector<5x32xbf16>
    %cst_23 = arith.constant dense<0.000000e+00> : vector<5x5xf32>
    %61 = tpu.matmul %56, %58, %cst_23 {dimension_numbers = #tpu.dot_dimension_numbers<[1], [1], [0], [0], [0, 0, 1, 0], [], []>} : vector<5x32xbf16>, vector<5x32xbf16>, vector<5x5xf32> -> vector<5x5xf32>
    %cst_24 = arith.constant dense<0xFF800000> : vector<5xf32>
    %62 = vector.multi_reduction <maximumf>, %61, %cst_24 [1] : vector<5x5xf32> to vector<5xf32>
    %63 = vector.shape_cast %62 : vector<5xf32> to vector<5x1xf32>
    %64 = vector.broadcast %63 : vector<5x1xf32> to vector<5x5xf32>
    %65 = arith.subf %61, %64 : vector<5x5xf32>
    %66 = math.exp %65 : vector<5x5xf32>
    %cst_25 = arith.constant dense<0.000000e+00> : vector<5xf32>
    %67 = vector.multi_reduction <add>, %66, %cst_25 [1] : vector<5x5xf32> to vector<5xf32>
    %68 = vector.shape_cast %67 : vector<5xf32> to vector<5x1xf32>
    %69 = tpu.reciprocal %68 {approx = true} : vector<5x1xf32> -> vector<5x1xf32>
    %70 = vector.broadcast %69 : vector<5x1xf32> to vector<5x5xf32>
    %71 = arith.mulf %66, %70 : vector<5x5xf32>
    %72 = arith.truncf %71 : vector<5x5xf32> to vector<5x5xbf16>
    %cst_26 = arith.constant dense<0.000000e+00> : vector<5x32xf32>
    %73 = tpu.matmul %72, %60, %cst_26 {dimension_numbers = #tpu.dot_dimension_numbers<[1], [0], [0], [1], [0, 0, 1, 1], [], []>} : vector<5x5xbf16>, vector<5x32xbf16>, vector<5x32xf32> -> vector<5x32xf32>
    %74 = vector.extract_strided_slice %35 {offsets = [0, 64], sizes = [5, 32], strides = [1, 1]} : vector<10x384xf32> to vector<5x32xf32>
    %75 = arith.truncf %74 : vector<5x32xf32> to vector<5x32xbf16>
    %76 = vector.extract_strided_slice %35 {offsets = [0, 192], sizes = [5, 32], strides = [1, 1]} : vector<10x384xf32> to vector<5x32xf32>
    %77 = arith.truncf %76 : vector<5x32xf32> to vector<5x32xbf16>
    %78 = vector.extract_strided_slice %35 {offsets = [0, 320], sizes = [5, 32], strides = [1, 1]} : vector<10x384xf32> to vector<5x32xf32>
    %79 = arith.truncf %78 : vector<5x32xf32> to vector<5x32xbf16>
    %cst_27 = arith.constant dense<0.000000e+00> : vector<5x5xf32>
    %80 = tpu.matmul %75, %77, %cst_27 {dimension_numbers = #tpu.dot_dimension_numbers<[1], [1], [0], [0], [0, 0, 1, 0], [], []>} : vector<5x32xbf16>, vector<5x32xbf16>, vector<5x5xf32> -> vector<5x5xf32>
    %cst_28 = arith.constant dense<0xFF800000> : vector<5xf32>
    %81 = vector.multi_reduction <maximumf>, %80, %cst_28 [1] : vector<5x5xf32> to vector<5xf32>
    %82 = vector.shape_cast %81 : vector<5xf32> to vector<5x1xf32>
    %83 = vector.broadcast %82 : vector<5x1xf32> to vector<5x5xf32>
    %84 = arith.subf %80, %83 : vector<5x5xf32>
    %85 = math.exp %84 : vector<5x5xf32>
    %cst_29 = arith.constant dense<0.000000e+00> : vector<5xf32>
    %86 = vector.multi_reduction <add>, %85, %cst_29 [1] : vector<5x5xf32> to vector<5xf32>
    %87 = vector.shape_cast %86 : vector<5xf32> to vector<5x1xf32>
    %88 = tpu.reciprocal %87 {approx = true} : vector<5x1xf32> -> vector<5x1xf32>
    %89 = vector.broadcast %88 : vector<5x1xf32> to vector<5x5xf32>
    %90 = arith.mulf %85, %89 : vector<5x5xf32>
    %91 = arith.truncf %90 : vector<5x5xf32> to vector<5x5xbf16>
    %cst_30 = arith.constant dense<0.000000e+00> : vector<5x32xf32>
    %92 = tpu.matmul %91, %79, %cst_30 {dimension_numbers = #tpu.dot_dimension_numbers<[1], [0], [0], [1], [0, 0, 1, 1], [], []>} : vector<5x5xbf16>, vector<5x32xbf16>, vector<5x32xf32> -> vector<5x32xf32>
    %93 = vector.extract_strided_slice %35 {offsets = [0, 96], sizes = [5, 32], strides = [1, 1]} : vector<10x384xf32> to vector<5x32xf32>
    %94 = arith.truncf %93 : vector<5x32xf32> to vector<5x32xbf16>
    %95 = vector.extract_strided_slice %35 {offsets = [0, 224], sizes = [5, 32], strides = [1, 1]} : vector<10x384xf32> to vector<5x32xf32>
    %96 = arith.truncf %95 : vector<5x32xf32> to vector<5x32xbf16>
    %97 = vector.extract_strided_slice %35 {offsets = [0, 352], sizes = [5, 32], strides = [1, 1]} : vector<10x384xf32> to vector<5x32xf32>
    %98 = arith.truncf %97 : vector<5x32xf32> to vector<5x32xbf16>
    %cst_31 = arith.constant dense<0.000000e+00> : vector<5x5xf32>
    %99 = tpu.matmul %94, %96, %cst_31 {dimension_numbers = #tpu.dot_dimension_numbers<[1], [1], [0], [0], [0, 0, 1, 0], [], []>} : vector<5x32xbf16>, vector<5x32xbf16>, vector<5x5xf32> -> vector<5x5xf32>
    %cst_32 = arith.constant dense<0xFF800000> : vector<5xf32>
    %100 = vector.multi_reduction <maximumf>, %99, %cst_32 [1] : vector<5x5xf32> to vector<5xf32>
    %101 = vector.shape_cast %100 : vector<5xf32> to vector<5x1xf32>
    %102 = vector.broadcast %101 : vector<5x1xf32> to vector<5x5xf32>
    %103 = arith.subf %99, %102 : vector<5x5xf32>
    %104 = math.exp %103 : vector<5x5xf32>
    %cst_33 = arith.constant dense<0.000000e+00> : vector<5xf32>
    %105 = vector.multi_reduction <add>, %104, %cst_33 [1] : vector<5x5xf32> to vector<5xf32>
    %106 = vector.shape_cast %105 : vector<5xf32> to vector<5x1xf32>
    %107 = tpu.reciprocal %106 {approx = true} : vector<5x1xf32> -> vector<5x1xf32>
    %108 = vector.broadcast %107 : vector<5x1xf32> to vector<5x5xf32>
    %109 = arith.mulf %104, %108 : vector<5x5xf32>
    %110 = arith.truncf %109 : vector<5x5xf32> to vector<5x5xbf16>
    %cst_34 = arith.constant dense<0.000000e+00> : vector<5x32xf32>
    %111 = tpu.matmul %110, %98, %cst_34 {dimension_numbers = #tpu.dot_dimension_numbers<[1], [0], [0], [1], [0, 0, 1, 1], [], []>} : vector<5x5xbf16>, vector<5x32xbf16>, vector<5x32xf32> -> vector<5x32xf32>
    %112 = tpu.concatenate %54, %73, %92, %111 in 1 : vector<5x32xf32>, vector<5x32xf32>, vector<5x32xf32>, vector<5x32xf32> -> vector<5x128xf32>
    %113 = vector.extract_strided_slice %35 {offsets = [5, 0], sizes = [5, 32], strides = [1, 1]} : vector<10x384xf32> to vector<5x32xf32>
    %114 = arith.truncf %113 : vector<5x32xf32> to vector<5x32xbf16>
    %115 = vector.extract_strided_slice %35 {offsets = [5, 128], sizes = [5, 32], strides = [1, 1]} : vector<10x384xf32> to vector<5x32xf32>
    %116 = arith.truncf %115 : vector<5x32xf32> to vector<5x32xbf16>
    %117 = vector.extract_strided_slice %35 {offsets = [5, 256], sizes = [5, 32], strides = [1, 1]} : vector<10x384xf32> to vector<5x32xf32>
    %118 = arith.truncf %117 : vector<5x32xf32> to vector<5x32xbf16>
    %cst_35 = arith.constant dense<0.000000e+00> : vector<5x5xf32>
    %119 = tpu.matmul %114, %116, %cst_35 {dimension_numbers = #tpu.dot_dimension_numbers<[1], [1], [0], [0], [0, 0, 1, 0], [], []>} : vector<5x32xbf16>, vector<5x32xbf16>, vector<5x5xf32> -> vector<5x5xf32>
    %cst_36 = arith.constant dense<0xFF800000> : vector<5xf32>
    %120 = vector.multi_reduction <maximumf>, %119, %cst_36 [1] : vector<5x5xf32> to vector<5xf32>
    %121 = vector.shape_cast %120 : vector<5xf32> to vector<5x1xf32>
    %122 = vector.broadcast %121 : vector<5x1xf32> to vector<5x5xf32>
    %123 = arith.subf %119, %122 : vector<5x5xf32>
    %124 = math.exp %123 : vector<5x5xf32>
    %cst_37 = arith.constant dense<0.000000e+00> : vector<5xf32>
    %125 = vector.multi_reduction <add>, %124, %cst_37 [1] : vector<5x5xf32> to vector<5xf32>
    %126 = vector.shape_cast %125 : vector<5xf32> to vector<5x1xf32>
    %127 = tpu.reciprocal %126 {approx = true} : vector<5x1xf32> -> vector<5x1xf32>
    %128 = vector.broadcast %127 : vector<5x1xf32> to vector<5x5xf32>
    %129 = arith.mulf %124, %128 : vector<5x5xf32>
    %130 = arith.truncf %129 : vector<5x5xf32> to vector<5x5xbf16>
    %cst_38 = arith.constant dense<0.000000e+00> : vector<5x32xf32>
    %131 = tpu.matmul %130, %118, %cst_38 {dimension_numbers = #tpu.dot_dimension_numbers<[1], [0], [0], [1], [0, 0, 1, 1], [], []>} : vector<5x5xbf16>, vector<5x32xbf16>, vector<5x32xf32> -> vector<5x32xf32>
    %132 = vector.extract_strided_slice %35 {offsets = [5, 32], sizes = [5, 32], strides = [1, 1]} : vector<10x384xf32> to vector<5x32xf32>
    %133 = arith.truncf %132 : vector<5x32xf32> to vector<5x32xbf16>
    %134 = vector.extract_strided_slice %35 {offsets = [5, 160], sizes = [5, 32], strides = [1, 1]} : vector<10x384xf32> to vector<5x32xf32>
    %135 = arith.truncf %134 : vector<5x32xf32> to vector<5x32xbf16>
    %136 = vector.extract_strided_slice %35 {offsets = [5, 288], sizes = [5, 32], strides = [1, 1]} : vector<10x384xf32> to vector<5x32xf32>
    %137 = arith.truncf %136 : vector<5x32xf32> to vector<5x32xbf16>
    %cst_39 = arith.constant dense<0.000000e+00> : vector<5x5xf32>
    %138 = tpu.matmul %133, %135, %cst_39 {dimension_numbers = #tpu.dot_dimension_numbers<[1], [1], [0], [0], [0, 0, 1, 0], [], []>} : vector<5x32xbf16>, vector<5x32xbf16>, vector<5x5xf32> -> vector<5x5xf32>
    %cst_40 = arith.constant dense<0xFF800000> : vector<5xf32>
    %139 = vector.multi_reduction <maximumf>, %138, %cst_40 [1] : vector<5x5xf32> to vector<5xf32>
    %140 = vector.shape_cast %139 : vector<5xf32> to vector<5x1xf32>
    %141 = vector.broadcast %140 : vector<5x1xf32> to vector<5x5xf32>
    %142 = arith.subf %138, %141 : vector<5x5xf32>
    %143 = math.exp %142 : vector<5x5xf32>
    %cst_41 = arith.constant dense<0.000000e+00> : vector<5xf32>
    %144 = vector.multi_reduction <add>, %143, %cst_41 [1] : vector<5x5xf32> to vector<5xf32>
    %145 = vector.shape_cast %144 : vector<5xf32> to vector<5x1xf32>
    %146 = tpu.reciprocal %145 {approx = true} : vector<5x1xf32> -> vector<5x1xf32>
    %147 = vector.broadcast %146 : vector<5x1xf32> to vector<5x5xf32>
    %148 = arith.mulf %143, %147 : vector<5x5xf32>
    %149 = arith.truncf %148 : vector<5x5xf32> to vector<5x5xbf16>
    %cst_42 = arith.constant dense<0.000000e+00> : vector<5x32xf32>
    %150 = tpu.matmul %149, %137, %cst_42 {dimension_numbers = #tpu.dot_dimension_numbers<[1], [0], [0], [1], [0, 0, 1, 1], [], []>} : vector<5x5xbf16>, vector<5x32xbf16>, vector<5x32xf32> -> vector<5x32xf32>
    %151 = vector.extract_strided_slice %35 {offsets = [5, 64], sizes = [5, 32], strides = [1, 1]} : vector<10x384xf32> to vector<5x32xf32>
    %152 = arith.truncf %151 : vector<5x32xf32> to vector<5x32xbf16>
    %153 = vector.extract_strided_slice %35 {offsets = [5, 192], sizes = [5, 32], strides = [1, 1]} : vector<10x384xf32> to vector<5x32xf32>
    %154 = arith.truncf %153 : vector<5x32xf32> to vector<5x32xbf16>
    %155 = vector.extract_strided_slice %35 {offsets = [5, 320], sizes = [5, 32], strides = [1, 1]} : vector<10x384xf32> to vector<5x32xf32>
    %156 = arith.truncf %155 : vector<5x32xf32> to vector<5x32xbf16>
    %cst_43 = arith.constant dense<0.000000e+00> : vector<5x5xf32>
    %157 = tpu.matmul %152, %154, %cst_43 {dimension_numbers = #tpu.dot_dimension_numbers<[1], [1], [0], [0], [0, 0, 1, 0], [], []>} : vector<5x32xbf16>, vector<5x32xbf16>, vector<5x5xf32> -> vector<5x5xf32>
    %cst_44 = arith.constant dense<0xFF800000> : vector<5xf32>
    %158 = vector.multi_reduction <maximumf>, %157, %cst_44 [1] : vector<5x5xf32> to vector<5xf32>
    %159 = vector.shape_cast %158 : vector<5xf32> to vector<5x1xf32>
    %160 = vector.broadcast %159 : vector<5x1xf32> to vector<5x5xf32>
    %161 = arith.subf %157, %160 : vector<5x5xf32>
    %162 = math.exp %161 : vector<5x5xf32>
    %cst_45 = arith.constant dense<0.000000e+00> : vector<5xf32>
    %163 = vector.multi_reduction <add>, %162, %cst_45 [1] : vector<5x5xf32> to vector<5xf32>
    %164 = vector.shape_cast %163 : vector<5xf32> to vector<5x1xf32>
    %165 = tpu.reciprocal %164 {approx = true} : vector<5x1xf32> -> vector<5x1xf32>
    %166 = vector.broadcast %165 : vector<5x1xf32> to vector<5x5xf32>
    %167 = arith.mulf %162, %166 : vector<5x5xf32>
    %168 = arith.truncf %167 : vector<5x5xf32> to vector<5x5xbf16>
    %cst_46 = arith.constant dense<0.000000e+00> : vector<5x32xf32>
    %169 = tpu.matmul %168, %156, %cst_46 {dimension_numbers = #tpu.dot_dimension_numbers<[1], [0], [0], [1], [0, 0, 1, 1], [], []>} : vector<5x5xbf16>, vector<5x32xbf16>, vector<5x32xf32> -> vector<5x32xf32>
    %170 = vector.extract_strided_slice %35 {offsets = [5, 96], sizes = [5, 32], strides = [1, 1]} : vector<10x384xf32> to vector<5x32xf32>
    %171 = arith.truncf %170 : vector<5x32xf32> to vector<5x32xbf16>
    %172 = vector.extract_strided_slice %35 {offsets = [5, 224], sizes = [5, 32], strides = [1, 1]} : vector<10x384xf32> to vector<5x32xf32>
    %173 = arith.truncf %172 : vector<5x32xf32> to vector<5x32xbf16>
    %174 = vector.extract_strided_slice %35 {offsets = [5, 352], sizes = [5, 32], strides = [1, 1]} : vector<10x384xf32> to vector<5x32xf32>
    %175 = arith.truncf %174 : vector<5x32xf32> to vector<5x32xbf16>
    %cst_47 = arith.constant dense<0.000000e+00> : vector<5x5xf32>
    %176 = tpu.matmul %171, %173, %cst_47 {dimension_numbers = #tpu.dot_dimension_numbers<[1], [1], [0], [0], [0, 0, 1, 0], [], []>} : vector<5x32xbf16>, vector<5x32xbf16>, vector<5x5xf32> -> vector<5x5xf32>
    %cst_48 = arith.constant dense<0xFF800000> : vector<5xf32>
    %177 = vector.multi_reduction <maximumf>, %176, %cst_48 [1] : vector<5x5xf32> to vector<5xf32>
    %178 = vector.shape_cast %177 : vector<5xf32> to vector<5x1xf32>
    %179 = vector.broadcast %178 : vector<5x1xf32> to vector<5x5xf32>
    %180 = arith.subf %176, %179 : vector<5x5xf32>
    %181 = math.exp %180 : vector<5x5xf32>
    %cst_49 = arith.constant dense<0.000000e+00> : vector<5xf32>
    %182 = vector.multi_reduction <add>, %181, %cst_49 [1] : vector<5x5xf32> to vector<5xf32>
    %183 = vector.shape_cast %182 : vector<5xf32> to vector<5x1xf32>
    %184 = tpu.reciprocal %183 {approx = true} : vector<5x1xf32> -> vector<5x1xf32>
    %185 = vector.broadcast %184 : vector<5x1xf32> to vector<5x5xf32>
    %186 = arith.mulf %181, %185 : vector<5x5xf32>
    %187 = arith.truncf %186 : vector<5x5xf32> to vector<5x5xbf16>
    %cst_50 = arith.constant dense<0.000000e+00> : vector<5x32xf32>
    %188 = tpu.matmul %187, %175, %cst_50 {dimension_numbers = #tpu.dot_dimension_numbers<[1], [0], [0], [1], [0, 0, 1, 1], [], []>} : vector<5x5xbf16>, vector<5x32xbf16>, vector<5x32xf32> -> vector<5x32xf32>
    %189 = tpu.concatenate %131, %150, %169, %188 in 1 : vector<5x32xf32>, vector<5x32xf32>, vector<5x32xf32>, vector<5x32xf32> -> vector<5x128xf32>
    %190 = tpu.concatenate %112, %189 in 0 : vector<5x128xf32>, vector<5x128xf32> -> vector<10x128xf32>
    %191 = arith.truncf %190 : vector<10x128xf32> to vector<10x128xbf16>
    %c0_51 = arith.constant 0 : index
    %c0_52 = arith.constant 0 : index
    %c0_53 = arith.constant 0 : index
    %192 = vector.load %arg10[%c0_51, %c0_52, %c0_53] : memref<1x128x128xbf16, #tpu.memory_space<vmem>>, vector<1x128x128xbf16>
    %193 = vector.shape_cast %192 : vector<1x128x128xbf16> to vector<128x128xbf16>
    %cst_54 = arith.constant dense<0.000000e+00> : vector<10x128xf32>
    %194 = tpu.matmul %191, %193, %cst_54 {dimension_numbers = #tpu.dot_dimension_numbers<[1], [0], [0], [1], [0, 0, 1, 1], [], []>} : vector<10x128xbf16>, vector<128x128xbf16>, vector<10x128xf32> -> vector<10x128xf32>
    %c0_55 = arith.constant 0 : index
    %c0_56 = arith.constant 0 : index
    %c0_57 = arith.constant 0 : index
    %195 = vector.load %arg11[%c0_55, %c0_56, %c0_57] : memref<1x1x128xf32, #tpu.memory_space<vmem>>, vector<1x1x128xf32>
    %196 = vector.shape_cast %195 : vector<1x1x128xf32> to vector<1x128xf32>
    %197 = vector.broadcast %196 : vector<1x128xf32> to vector<10x128xf32>
    %198 = arith.addf %194, %197 : vector<10x128xf32>
    %199 = arith.addf %3, %198 : vector<10x128xf32>
    %c0_58 = arith.constant 0 : index
    %c0_59 = arith.constant 0 : index
    %c0_60 = arith.constant 0 : index
    %200 = vector.load %arg12[%c0_58, %c0_59, %c0_60] : memref<1x1x128xf32, #tpu.memory_space<vmem>>, vector<1x1x128xf32>
    %201 = vector.shape_cast %200 : vector<1x1x128xf32> to vector<1x128xf32>
    %c0_61 = arith.constant 0 : index
    %c0_62 = arith.constant 0 : index
    %c0_63 = arith.constant 0 : index
    %202 = vector.load %arg13[%c0_61, %c0_62, %c0_63] : memref<1x1x128xf32, #tpu.memory_space<vmem>>, vector<1x1x128xf32>
    %203 = vector.shape_cast %202 : vector<1x1x128xf32> to vector<1x128xf32>
    %cst_64 = arith.constant dense<0.000000e+00> : vector<10xf32>
    %204 = vector.multi_reduction <add>, %199, %cst_64 [1] : vector<10x128xf32> to vector<10xf32>
    %205 = vector.shape_cast %204 : vector<10xf32> to vector<10x1xf32>
    %cst_65 = arith.constant 1.280000e+02 : f32
    %206 = vector.broadcast %cst_65 : f32 to vector<10x1xf32>
    %207 = arith.divf %205, %206 : vector<10x1xf32>
    %208 = vector.broadcast %207 : vector<10x1xf32> to vector<10x128xf32>
    %209 = arith.subf %199, %208 : vector<10x128xf32>
    %210 = arith.mulf %209, %209 : vector<10x128xf32>
    %cst_66 = arith.constant dense<0.000000e+00> : vector<10xf32>
    %211 = vector.multi_reduction <add>, %210, %cst_66 [1] : vector<10x128xf32> to vector<10xf32>
    %212 = vector.shape_cast %211 : vector<10xf32> to vector<10x1xf32>
    %cst_67 = arith.constant 1.280000e+02 : f32
    %213 = vector.broadcast %cst_67 : f32 to vector<10x1xf32>
    %214 = arith.divf %212, %213 : vector<10x1xf32>
    %cst_68 = arith.constant 9.99999997E-7 : f32
    %215 = vector.broadcast %cst_68 : f32 to vector<10x1xf32>
    %216 = arith.addf %214, %215 : vector<10x1xf32>
    %217 = math.rsqrt %216 : vector<10x1xf32>
    %218 = vector.broadcast %217 : vector<10x1xf32> to vector<10x128xf32>
    %219 = arith.mulf %209, %218 : vector<10x128xf32>
    %220 = vector.broadcast %201 : vector<1x128xf32> to vector<10x128xf32>
    %221 = arith.mulf %219, %220 : vector<10x128xf32>
    %222 = vector.broadcast %203 : vector<1x128xf32> to vector<10x128xf32>
    %223 = arith.addf %221, %222 : vector<10x128xf32>
    %224 = arith.truncf %223 : vector<10x128xf32> to vector<10x128xbf16>
    %c0_69 = arith.constant 0 : index
    %c0_70 = arith.constant 0 : index
    %c0_71 = arith.constant 0 : index
    %225 = vector.load %arg14[%c0_69, %c0_70, %c0_71] : memref<1x128x256xbf16, #tpu.memory_space<vmem>>, vector<1x128x256xbf16>
    %226 = vector.shape_cast %225 : vector<1x128x256xbf16> to vector<128x256xbf16>
    %cst_72 = arith.constant dense<0.000000e+00> : vector<10x256xf32>
    %227 = tpu.matmul %224, %226, %cst_72 {dimension_numbers = #tpu.dot_dimension_numbers<[1], [0], [0], [1], [0, 0, 1, 1], [], []>} : vector<10x128xbf16>, vector<128x256xbf16>, vector<10x256xf32> -> vector<10x256xf32>
    %c0_73 = arith.constant 0 : index
    %c0_74 = arith.constant 0 : index
    %c0_75 = arith.constant 0 : index
    %228 = vector.load %arg15[%c0_73, %c0_74, %c0_75] : memref<1x1x256xf32, #tpu.memory_space<vmem>>, vector<1x1x256xf32>
    %229 = vector.shape_cast %228 : vector<1x1x256xf32> to vector<1x256xf32>
    %230 = vector.broadcast %229 : vector<1x256xf32> to vector<10x256xf32>
    %231 = arith.addf %227, %230 : vector<10x256xf32>
    %cst_76 = arith.constant 5.000000e-01 : f32
    %232 = vector.broadcast %cst_76 : f32 to vector<10x256xf32>
    %233 = arith.mulf %232, %231 : vector<10x256xf32>
    %cst_77 = arith.constant 0.707106769 : f32
    %234 = vector.broadcast %cst_77 : f32 to vector<10x256xf32>
    %235 = arith.mulf %231, %234 : vector<10x256xf32>
    %236 = math.erf %235 : vector<10x256xf32>
    %cst_78 = arith.constant 1.000000e+00 : f32
    %237 = vector.broadcast %cst_78 : f32 to vector<10x256xf32>
    %238 = arith.addf %237, %236 : vector<10x256xf32>
    %239 = arith.mulf %233, %238 : vector<10x256xf32>
    %240 = arith.truncf %239 : vector<10x256xf32> to vector<10x256xbf16>
    %c0_79 = arith.constant 0 : index
    %c0_80 = arith.constant 0 : index
    %c0_81 = arith.constant 0 : index
    %241 = vector.load %arg16[%c0_79, %c0_80, %c0_81] : memref<1x256x128xbf16, #tpu.memory_space<vmem>>, vector<1x256x128xbf16>
    %242 = vector.shape_cast %241 : vector<1x256x128xbf16> to vector<256x128xbf16>
    %cst_82 = arith.constant dense<0.000000e+00> : vector<10x128xf32>
    %243 = tpu.matmul %240, %242, %cst_82 {dimension_numbers = #tpu.dot_dimension_numbers<[1], [0], [0], [1], [0, 0, 1, 1], [], []>} : vector<10x256xbf16>, vector<256x128xbf16>, vector<10x128xf32> -> vector<10x128xf32>
    %c0_83 = arith.constant 0 : index
    %c0_84 = arith.constant 0 : index
    %c0_85 = arith.constant 0 : index
    %244 = vector.load %arg17[%c0_83, %c0_84, %c0_85] : memref<1x1x128xf32, #tpu.memory_space<vmem>>, vector<1x1x128xf32>
    %245 = vector.shape_cast %244 : vector<1x1x128xf32> to vector<1x128xf32>
    %246 = vector.broadcast %245 : vector<1x128xf32> to vector<10x128xf32>
    %247 = arith.addf %243, %246 : vector<10x128xf32>
    %248 = arith.addf %199, %247 : vector<10x128xf32>
    %c0_86 = arith.constant 0 : index
    %c0_87 = arith.constant 0 : index
    %249 = vector.load %arg21[%c0_86, %c0_87] : memref<10x128xf32, #tpu.memory_space<vmem>>, vector<10x128xf32>
    tpu.vector_store %arg21[%c0_86, %c0_87], %248 {strides = array<i32>} : memref<10x128xf32, #tpu.memory_space<vmem>>, vector<10x128xf32>,
    %c1_i32 = arith.constant 1 : i32
    %250 = arith.cmpi eq, %arg0, %c1_i32 : i32
    %251 = arith.extui %250 : i1 to i32
    %c0_i32_88 = arith.constant 0 : i32
    %252 = arith.cmpi ne, %251, %c0_i32_88 : i32
    scf.if %252 {
      %253 = vector.extract_strided_slice %248 {offsets = [0, 0], sizes = [1, 128], strides = [1, 1]} : vector<10x128xf32> to vector<1x128xf32>
      %254 = vector.extract_strided_slice %248 {offsets = [5, 0], sizes = [1, 128], strides = [1, 1]} : vector<10x128xf32> to vector<1x128xf32>
      %255 = tpu.concatenate %253, %254 in 0 : vector<1x128xf32>, vector<1x128xf32> -> vector<2x128xf32>
      %c0_89 = arith.constant 0 : index
      %c0_90 = arith.constant 0 : index
      %256 = vector.load %arg18[%c0_89, %c0_90] : memref<1x128xf32, #tpu.memory_space<vmem>>, vector<1x128xf32>
      %c0_91 = arith.constant 0 : index
      %c0_92 = arith.constant 0 : index
      %257 = vector.load %arg19[%c0_91, %c0_92] : memref<1x128xf32, #tpu.memory_space<vmem>>, vector<1x128xf32>
      %cst_93 = arith.constant dense<0.000000e+00> : vector<2xf32>
      %258 = vector.multi_reduction <add>, %255, %cst_93 [1] : vector<2x128xf32> to vector<2xf32>
      %259 = vector.shape_cast %258 : vector<2xf32> to vector<2x1xf32>
      %cst_94 = arith.constant 1.280000e+02 : f32
      %260 = vector.broadcast %cst_94 : f32 to vector<2x1xf32>
      %261 = arith.divf %259, %260 : vector<2x1xf32>
      %262 = vector.broadcast %261 : vector<2x1xf32> to vector<2x128xf32>
      %263 = arith.subf %255, %262 : vector<2x128xf32>
      %264 = arith.mulf %263, %263 : vector<2x128xf32>
      %cst_95 = arith.constant dense<0.000000e+00> : vector<2xf32>
      %265 = vector.multi_reduction <add>, %264, %cst_95 [1] : vector<2x128xf32> to vector<2xf32>
      %266 = vector.shape_cast %265 : vector<2xf32> to vector<2x1xf32>
      %cst_96 = arith.constant 1.280000e+02 : f32
      %267 = vector.broadcast %cst_96 : f32 to vector<2x1xf32>
      %268 = arith.divf %266, %267 : vector<2x1xf32>
      %cst_97 = arith.constant 9.99999997E-7 : f32
      %269 = vector.broadcast %cst_97 : f32 to vector<2x1xf32>
      %270 = arith.addf %268, %269 : vector<2x1xf32>
      %271 = math.rsqrt %270 : vector<2x1xf32>
      %272 = vector.broadcast %271 : vector<2x1xf32> to vector<2x128xf32>
      %273 = arith.mulf %263, %272 : vector<2x128xf32>
      %274 = vector.broadcast %256 : vector<1x128xf32> to vector<2x128xf32>
      %275 = arith.mulf %273, %274 : vector<2x128xf32>
      %276 = vector.broadcast %257 : vector<1x128xf32> to vector<2x128xf32>
      %277 = arith.addf %275, %276 : vector<2x128xf32>
      %278 = arith.mulf %277, %277 : vector<2x128xf32>
      %cst_98 = arith.constant dense<0.000000e+00> : vector<2xf32>
      %279 = vector.multi_reduction <add>, %278, %cst_98 [1] : vector<2x128xf32> to vector<2xf32>
      %280 = vector.shape_cast %279 : vector<2xf32> to vector<2x1xf32>
      %281 = math.sqrt %280 : vector<2x1xf32>
      %cst_99 = arith.constant 9.99999996E-13 : f32
      %282 = vector.broadcast %cst_99 : f32 to vector<2x1xf32>
      %283 = arith.maximumf %281, %282 : vector<2x1xf32>
      %284 = vector.broadcast %283 : vector<2x1xf32> to vector<2x128xf32>
      %285 = arith.divf %277, %284 : vector<2x128xf32>
      %c0_100 = arith.constant 0 : index
      %c0_101 = arith.constant 0 : index
      %286 = vector.load %arg20[%c0_100, %c0_101] : memref<2x128xf32, #tpu.memory_space<vmem>>, vector<2x128xf32>
      tpu.vector_store %arg20[%c0_100, %c0_101], %285 {strides = array<i32>} : memref<2x128xf32, #tpu.memory_space<vmem>>, vector<2x128xf32>,
    } else {
    }
    return
  }
  func.func @transform_0(%arg0: i32) -> (i32, i32) {
    %c0_i32 = arith.constant 0 : i32
    %c0_i32_0 = arith.constant 0 : i32
    %c0_i32_1 = arith.constant 0 : i32
    return %c0_i32, %c0_i32_0 : i32, i32
  }
  func.func @transform_1(%arg0: i32) -> (i32, i32) {
    %c0_i32 = arith.constant 0 : i32
    %c0_i32_0 = arith.constant 0 : i32
    %c0_i32_1 = arith.constant 0 : i32
    return %c0_i32, %c0_i32_0 : i32, i32
  }
  func.func @transform_2(%arg0: i32) -> (i32, i32) {
    %c0_i32 = arith.constant 0 : i32
    %c0_i32_0 = arith.constant 0 : i32
    %c0_i32_1 = arith.constant 0 : i32
    return %c0_i32, %c0_i32_0 : i32, i32
  }
  func.func @transform_3(%arg0: i32) -> (i32, i32) {
    %c0_i32 = arith.constant 0 : i32
    %c0_i32_0 = arith.constant 0 : i32
    %c0_i32_1 = arith.constant 0 : i32
    return %c0_i32, %c0_i32_0 : i32, i32
  }
  func.func @transform_4(%arg0: i32) -> (i32, i32) {
    %c0_i32 = arith.constant 0 : i32
    %c0_i32_0 = arith.constant 0 : i32
    %c0_i32_1 = arith.constant 0 : i32
    return %c0_i32, %c0_i32_0 : i32, i32
  }
  func.func @transform_5(%arg0: i32) -> (i32, i32, i32) {
    %c0_i32 = arith.constant 0 : i32
    %c0_i32_0 = arith.constant 0 : i32
    %c0_i32_1 = arith.constant 0 : i32
    return %arg0, %c0_i32, %c0_i32_0 : i32, i32, i32
  }
  func.func @transform_6(%arg0: i32) -> (i32, i32, i32) {
    %c0_i32 = arith.constant 0 : i32
    %c0_i32_0 = arith.constant 0 : i32
    %c0_i32_1 = arith.constant 0 : i32
    return %arg0, %c0_i32, %c0_i32_0 : i32, i32, i32
  }
  func.func @transform_7(%arg0: i32) -> (i32, i32, i32) {
    %c0_i32 = arith.constant 0 : i32
    %c0_i32_0 = arith.constant 0 : i32
    %c0_i32_1 = arith.constant 0 : i32
    return %arg0, %c0_i32, %c0_i32_0 : i32, i32, i32
  }
  func.func @transform_8(%arg0: i32) -> (i32, i32, i32) {
    %c0_i32 = arith.constant 0 : i32
    %c0_i32_0 = arith.constant 0 : i32
    %c0_i32_1 = arith.constant 0 : i32
    return %arg0, %c0_i32, %c0_i32_0 : i32, i32, i32
  }
  func.func @transform_9(%arg0: i32) -> (i32, i32, i32) {
    %c0_i32 = arith.constant 0 : i32
    %c0_i32_0 = arith.constant 0 : i32
    %c0_i32_1 = arith.constant 0 : i32
    return %arg0, %c0_i32, %c0_i32_0 : i32, i32, i32
  }
  func.func @transform_10(%arg0: i32) -> (i32, i32, i32) {
    %c0_i32 = arith.constant 0 : i32
    %c0_i32_0 = arith.constant 0 : i32
    %c0_i32_1 = arith.constant 0 : i32
    return %arg0, %c0_i32, %c0_i32_0 : i32, i32, i32
  }
  func.func @transform_11(%arg0: i32) -> (i32, i32, i32) {
    %c0_i32 = arith.constant 0 : i32
    %c0_i32_0 = arith.constant 0 : i32
    %c0_i32_1 = arith.constant 0 : i32
    return %arg0, %c0_i32, %c0_i32_0 : i32, i32, i32
  }
  func.func @transform_12(%arg0: i32) -> (i32, i32, i32) {
    %c0_i32 = arith.constant 0 : i32
    %c0_i32_0 = arith.constant 0 : i32
    %c0_i32_1 = arith.constant 0 : i32
    return %arg0, %c0_i32, %c0_i32_0 : i32, i32, i32
  }
  func.func @transform_13(%arg0: i32) -> (i32, i32, i32) {
    %c0_i32 = arith.constant 0 : i32
    %c0_i32_0 = arith.constant 0 : i32
    %c0_i32_1 = arith.constant 0 : i32
    return %arg0, %c0_i32, %c0_i32_0 : i32, i32, i32
  }
  func.func @transform_14(%arg0: i32) -> (i32, i32, i32) {
    %c0_i32 = arith.constant 0 : i32
    %c0_i32_0 = arith.constant 0 : i32
    %c0_i32_1 = arith.constant 0 : i32
    return %arg0, %c0_i32, %c0_i32_0 : i32, i32, i32
  }
  func.func @transform_15(%arg0: i32) -> (i32, i32, i32) {
    %c0_i32 = arith.constant 0 : i32
    %c0_i32_0 = arith.constant 0 : i32
    %c0_i32_1 = arith.constant 0 : i32
    return %arg0, %c0_i32, %c0_i32_0 : i32, i32, i32
  }
  func.func @transform_16(%arg0: i32) -> (i32, i32, i32) {
    %c0_i32 = arith.constant 0 : i32
    %c0_i32_0 = arith.constant 0 : i32
    %c0_i32_1 = arith.constant 0 : i32
    return %arg0, %c0_i32, %c0_i32_0 : i32, i32, i32
  }
  func.func @transform_17(%arg0: i32) -> (i32, i32) {
    %c0_i32 = arith.constant 0 : i32
    %c0_i32_0 = arith.constant 0 : i32
    %c0_i32_1 = arith.constant 0 : i32
    return %c0_i32, %c0_i32_0 : i32, i32
  }
  func.func @transform_18(%arg0: i32) -> (i32, i32) {
    %c0_i32 = arith.constant 0 : i32
    %c0_i32_0 = arith.constant 0 : i32
    %c0_i32_1 = arith.constant 0 : i32
    return %c0_i32, %c0_i32_0 : i32, i32
  }
  func.func @transform_19(%arg0: i32) -> (i32, i32) {
    %c0_i32 = arith.constant 0 : i32
    %c0_i32_0 = arith.constant 0 : i32
    %c0_i32_1 = arith.constant 0 : i32
    return %c0_i32, %c0_i32_0 : i32, i32
  }
}

</mosaic_0001>

<llo_original>
// kernel: model_forward.1
$region0: #{model_forward.1}
  #allocation0 [shape = 'u32[]', space=smem, size = 0x4, offset = 0x4, fixed_abs, tag = 'smem constant byte address 0x4 - core index']
  #allocation1 [shape = 'u32[144,128]{1,0:T(1,128)}', space=vmem, size = 0x12000, scoped, tag = 'internal scratch']
  #allocation2 [shape = 'f32[10,128]{1,0:T(8,128)}', space=vmem, size = 0x2000, scoped, tag = 'scratch operand']
  %s0 = inlined_call_operand.vmem [shape: f32[8,768], index: 0, kind: input, shape index: {}]
  %s1 = inlined_call_operand.vmem [shape: bf16[768,128], index: 1, kind: input, shape index: {}]
  %s2 = inlined_call_operand.vmem [shape: f32[1,128], index: 2, kind: input, shape index: {}]
  %s3 = inlined_call_operand.vmem [shape: f32[1,128], index: 3, kind: input, shape index: {}]
  %s4 = inlined_call_operand.vmem [shape: f32[5,128], index: 4, kind: input, shape index: {}]
  %s5 = inlined_call_operand.vmem [shape: f32[2,1,128], index: 5, kind: input, shape index: {}]
  %s6 = inlined_call_operand.vmem [shape: f32[2,1,128], index: 6, kind: input, shape index: {}]
  %s7 = inlined_call_operand.vmem [shape: bf16[2,128,384], index: 7, kind: input, shape index: {}]
  %s8 = inlined_call_operand.vmem [shape: f32[2,1,384], index: 8, kind: input, shape index: {}]
  %s9 = inlined_call_operand.vmem [shape: bf16[2,128,128], index: 9, kind: input, shape index: {}]
  %s10 = inlined_call_operand.vmem [shape: f32[2,1,128], index: 10, kind: input, shape index: {}]
  %s11 = inlined_call_operand.vmem [shape: f32[2,1,128], index: 11, kind: input, shape index: {}]
  %s12 = inlined_call_operand.vmem [shape: f32[2,1,128], index: 12, kind: input, shape index: {}]
  %s13 = inlined_call_operand.vmem [shape: bf16[2,128,256], index: 13, kind: input, shape index: {}]
  %s14 = inlined_call_operand.vmem [shape: f32[2,1,256], index: 14, kind: input, shape index: {}]
  %s15 = inlined_call_operand.vmem [shape: bf16[2,256,128], index: 15, kind: input, shape index: {}]
  %s16 = inlined_call_operand.vmem [shape: f32[2,1,128], index: 16, kind: input, shape index: {}]
  %s17 = inlined_call_operand.vmem [shape: f32[1,128], index: 17, kind: input, shape index: {}]
  %s18 = inlined_call_operand.vmem [shape: f32[1,128], index: 18, kind: input, shape index: {}]
  %s19 = inlined_call_operand.hbm [shape: f32[2,128], index: 19, kind: output, shape index: {}]
  %s20 = sld [smem:[#allocation0]]
  $region117: #{model_forward.1} parent=0
    _
  %s22 = ssub.s32 1, %s20
  %s23 = scalar_select 0, %s22, %s20
  $region1: #{model_forward.1} parent=0
    #allocation3 [shape = 'u8[1024]{0}', space=vmem, size = 0x400, scoped, tag = 'output window, operand 0, single buffered']
    #allocation4 [shape = 's32[2]{0}', space=sflag, size = 0x8, scoped, tag = 'scoped memory for model_forward.1']
    %24 = vsyncpa [#allocation4], 0
    loop: start=0, step=1, limit=4
    $region2: #{model_forward.1} parent=1 // loop_pre_header
      _
    $region3: #{model_forward.1} parent=1 // loop_header
      %s26 = sphi 0, %s30
      %p27 = scmp.ge.s32.totalorder %s26, 4
      %s34 = sphi 0, %s34
      %s36 = sphi 0, %s34
      %s37 = sphi 0, %s36
      %s51 = sphi 0, %s37
      %s55 = sphi 0, %s55
      %s57 = sphi 0, %s55
      %s58 = sphi 0, %s57
      %s72 = sphi 0, %s58
      %s76 = sphi 0, %s76
      %s78 = sphi 0, %s76
      %s79 = sphi 0, %s78
      %s93 = sphi 0, %s79
      %s97 = sphi 0, %s97
      %s99 = sphi 0, %s97
      %s100 = sphi 0, %s99
      %s114 = sphi 0, %s100
      %s118 = sphi 0, %s118
      %s120 = sphi 0, %s118
      %s121 = sphi 0, %s120
      %s135 = sphi 0, %s121
      %s141 = sphi 0, %s143
      %s144 = sphi 0, %s141
      %s145 = sphi 0, %s144
      %s161 = sphi 0, %s145
      %s167 = sphi 0, %s169
      %s170 = sphi 0, %s167
      %s171 = sphi 0, %s170
      %s187 = sphi 0, %s171
      %s193 = sphi 0, %s195
      %s196 = sphi 0, %s193
      %s197 = sphi 0, %s196
      %s213 = sphi 0, %s197
      %s219 = sphi 0, %s221
      %s222 = sphi 0, %s219
      %s223 = sphi 0, %s222
      %s239 = sphi 0, %s223
      %s245 = sphi 0, %s247
      %s248 = sphi 0, %s245
      %s249 = sphi 0, %s248
      %s265 = sphi 0, %s249
      %s271 = sphi 0, %s273
      %s274 = sphi 0, %s271
      %s275 = sphi 0, %s274
      %s291 = sphi 0, %s275
      %s297 = sphi 0, %s299
      %s300 = sphi 0, %s297
      %s301 = sphi 0, %s300
      %s317 = sphi 0, %s301
      %s323 = sphi 0, %s325
      %s326 = sphi 0, %s323
      %s327 = sphi 0, %s326
      %s343 = sphi 0, %s327
      %s349 = sphi 0, %s351
      %s352 = sphi 0, %s349
      %s353 = sphi 0, %s352
      %s369 = sphi 0, %s353
      %s375 = sphi 0, %s377
      %s378 = sphi 0, %s375
      %s379 = sphi 0, %s378
      %s395 = sphi 0, %s379
      %s401 = sphi 0, %s403
      %s404 = sphi 0, %s401
      %s405 = sphi 0, %s404
      %s421 = sphi 0, %s405
      %s427 = sphi 0, %s429
      %s430 = sphi 0, %s427
      %s431 = sphi 0, %s430
      %s447 = sphi 0, %s431
      %s451 = sphi 0, %s451
      %s453 = sphi 0, %s451
      %s454 = sphi 0, %s453
      %s468 = sphi 0, %s454
      %s472 = sphi 0, %s472
      %s474 = sphi 0, %s472
      %s475 = sphi 0, %s474
      %s489 = sphi 0, %s475
      %s493 = sphi 0, %s493
      %s495 = sphi 0, %s493
      %s496 = sphi 0, %s495
      %s510 = sphi 0, %s496
    $region4: #{model_forward.1} parent=1 // loop_header_branch
      %29 = sbr.rel (%p27) target = $region8
    $region5: #{model_forward.1} parent=1 // loop_body
      %s31 = ssub.s32 %s26, 1
      %s32 = ssub.s32 %s26, 2
      %s33 = sadd.s32 %s26, 1
      %s35 = sadd.s32 %s34, 1
      %p38 = scmp.eq.s32.totalorder %s26, 1
      %p39 = scmp.ne.s32.totalorder %s34, %s36
      %p40 = scmp.eq.s32.totalorder %s26, 0
      %p41 = por %p39, %p40
      %p42 = scmp.ne.s32.totalorder %s34, %s36
      %p43 = scmp.eq.s32.totalorder %s31, 1
      %p44 = por %p42, %p43
      %p45 = scmp.ne.s32.totalorder %s36, %s37
      %p46 = scmp.eq.s32.totalorder %s31, 0
      %p47 = por %p45, %p46
      %p48 = scmp.ne.s32.totalorder %s36, %s37
      %p49 = scmp.eq.s32.totalorder %s32, 1
      %p50 = por %p48, %p49
      %p52 = scmp.ne.s32.totalorder %s37, %s51
      %p53 = scmp.eq.s32.totalorder %s32, 0
      %p54 = por %p52, %p53
      %s56 = sadd.s32 %s55, 1
      %p59 = scmp.eq.s32.totalorder %s26, 1
      %p60 = scmp.ne.s32.totalorder %s55, %s57
      %p61 = scmp.eq.s32.totalorder %s26, 0
      %p62 = por %p60, %p61
      %p63 = scmp.ne.s32.totalorder %s55, %s57
      %p64 = scmp.eq.s32.totalorder %s31, 1
      %p65 = por %p63, %p64
      %p66 = scmp.ne.s32.totalorder %s57, %s58
      %p67 = scmp.eq.s32.totalorder %s31, 0
      %p68 = por %p66, %p67
      %p69 = scmp.ne.s32.totalorder %s57, %s58
      %p70 = scmp.eq.s32.totalorder %s32, 1
      %p71 = por %p69, %p70
      %p73 = scmp.ne.s32.totalorder %s58, %s72
      %p74 = scmp.eq.s32.totalorder %s32, 0
      %p75 = por %p73, %p74
      %s77 = sadd.s32 %s76, 1
      %p80 = scmp.eq.s32.totalorder %s26, 1
      %p81 = scmp.ne.s32.totalorder %s76, %s78
      %p82 = scmp.eq.s32.totalorder %s26, 0
      %p83 = por %p81, %p82
      %p84 = scmp.ne.s32.totalorder %s76, %s78
      %p85 = scmp.eq.s32.totalorder %s31, 1
      %p86 = por %p84, %p85
      %p87 = scmp.ne.s32.totalorder %s78, %s79
      %p88 = scmp.eq.s32.totalorder %s31, 0
      %p89 = por %p87, %p88
      %p90 = scmp.ne.s32.totalorder %s78, %s79
      %p91 = scmp.eq.s32.totalorder %s32, 1
      %p92 = por %p90, %p91
      %p94 = scmp.ne.s32.totalorder %s79, %s93
      %p95 = scmp.eq.s32.totalorder %s32, 0
      %p96 = por %p94, %p95
      %s98 = sadd.s32 %s97, 1
      %p101 = scmp.eq.s32.totalorder %s26, 1
      %p102 = scmp.ne.s32.totalorder %s97, %s99
      %p103 = scmp.eq.s32.totalorder %s26, 0
      %p104 = por %p102, %p103
      %p105 = scmp.ne.s32.totalorder %s97, %s99
      %p106 = scmp.eq.s32.totalorder %s31, 1
      %p107 = por %p105, %p106
      %p108 = scmp.ne.s32.totalorder %s99, %s100
      %p109 = scmp.eq.s32.totalorder %s31, 0
      %p110 = por %p108, %p109
      %p111 = scmp.ne.s32.totalorder %s99, %s100
      %p112 = scmp.eq.s32.totalorder %s32, 1
      %p113 = por %p111, %p112
      %p115 = scmp.ne.s32.totalorder %s100, %s114
      %p116 = scmp.eq.s32.totalorder %s32, 0
      %p117 = por %p115, %p116
      %s119 = sadd.s32 %s118, 1
      %p122 = scmp.eq.s32.totalorder %s26, 1
      %p123 = scmp.ne.s32.totalorder %s118, %s120
      %p124 = scmp.eq.s32.totalorder %s26, 0
      %p125 = por %p123, %p124
      %p126 = scmp.ne.s32.totalorder %s118, %s120
      %p127 = scmp.eq.s32.totalorder %s31, 1
      %p128 = por %p126, %p127
      %p129 = scmp.ne.s32.totalorder %s120, %s121
      %p130 = scmp.eq.s32.totalorder %s31, 0
      %p131 = por %p129, %p130
      %p132 = scmp.ne.s32.totalorder %s120, %s121
      %p133 = scmp.eq.s32.totalorder %s32, 1
      %p134 = por %p132, %p133
      %p136 = scmp.ne.s32.totalorder %s121, %s135
      %p137 = scmp.eq.s32.totalorder %s32, 0
      %p138 = por %p136, %p137
      %s139 = ssub.s32 %s26, %s33
      %p140 = scmp.eq.s32.totalorder %s139, 0
      %s142 = sadd.s32 %s141, 1
      %s143 = scalar_select %p140, %s141, %s142
      %p146 = pneg %p140
      %p147 = scmp.eq.s32.totalorder %s26, 1
      %p148 = por %p146, %p147
      %p149 = scmp.ne.s32.totalorder %s141, %s144
      %p150 = scmp.eq.s32.totalorder %s26, 0
      %p151 = por %p149, %p150
      %p152 = scmp.ne.s32.totalorder %s141, %s144
      %p153 = scmp.eq.s32.totalorder %s31, 1
      %p154 = por %p152, %p153
      %p155 = scmp.ne.s32.totalorder %s144, %s145
      %p156 = scmp.eq.s32.totalorder %s31, 0
      %p157 = por %p155, %p156
      %p158 = scmp.ne.s32.totalorder %s144, %s145
      %p159 = scmp.eq.s32.totalorder %s32, 1
      %p160 = por %p158, %p159
      %p162 = scmp.ne.s32.totalorder %s145, %s161
      %p163 = scmp.eq.s32.totalorder %s32, 0
      %p164 = por %p162, %p163
      %s165 = ssub.s32 %s26, %s33
      %p166 = scmp.eq.s32.totalorder %s165, 0
      %s168 = sadd.s32 %s167, 1
      %s169 = scalar_select %p166, %s167, %s168
      %p172 = pneg %p166
      %p173 = scmp.eq.s32.totalorder %s26, 1
      %p174 = por %p172, %p173
      %p175 = scmp.ne.s32.totalorder %s167, %s170
      %p176 = scmp.eq.s32.totalorder %s26, 0
      %p177 = por %p175, %p176
      %p178 = scmp.ne.s32.totalorder %s167, %s170
      %p179 = scmp.eq.s32.totalorder %s31, 1
      %p180 = por %p178, %p179
      %p181 = scmp.ne.s32.totalorder %s170, %s171
      %p182 = scmp.eq.s32.totalorder %s31, 0
      %p183 = por %p181, %p182
      %p184 = scmp.ne.s32.totalorder %s170, %s171
      %p185 = scmp.eq.s32.totalorder %s32, 1
      %p186 = por %p184, %p185
      %p188 = scmp.ne.s32.totalorder %s171, %s187
      %p189 = scmp.eq.s32.totalorder %s32, 0
      %p190 = por %p188, %p189
      %s191 = ssub.s32 %s26, %s33
      %p192 = scmp.eq.s32.totalorder %s191, 0
      %s194 = sadd.s32 %s193, 1
      %s195 = scalar_select %p192, %s193, %s194
      %p198 = pneg %p192
      %p199 = scmp.eq.s32.totalorder %s26, 1
      %p200 = por %p198, %p199
      %p201 = scmp.ne.s32.totalorder %s193, %s196
      %p202 = scmp.eq.s32.totalorder %s26, 0
      %p203 = por %p201, %p202
      %p204 = scmp.ne.s32.totalorder %s193, %s196
      %p205 = scmp.eq.s32.totalorder %s31, 1
      %p206 = por %p204, %p205
      %p207 = scmp.ne.s32.totalorder %s196, %s197
      %p208 = scmp.eq.s32.totalorder %s31, 0
      %p209 = por %p207, %p208
      %p210 = scmp.ne.s32.totalorder %s196, %s197
      %p211 = scmp.eq.s32.totalorder %s32, 1
      %p212 = por %p210, %p211
      %p214 = scmp.ne.s32.totalorder %s197, %s213
      %p215 = scmp.eq.s32.totalorder %s32, 0
      %p216 = por %p214, %p215
      %s217 = ssub.s32 %s26, %s33
      %p218 = scmp.eq.s32.totalorder %s217, 0
      %s220 = sadd.s32 %s219, 1
      %s221 = scalar_select %p218, %s219, %s220
      %p224 = pneg %p218
      %p225 = scmp.eq.s32.totalorder %s26, 1
      %p226 = por %p224, %p225
      %p227 = scmp.ne.s32.totalorder %s219, %s222
      %p228 = scmp.eq.s32.totalorder %s26, 0
      %p229 = por %p227, %p228
      %p230 = scmp.ne.s32.totalorder %s219, %s222
      %p231 = scmp.eq.s32.totalorder %s31, 1
      %p232 = por %p230, %p231
      %p233 = scmp.ne.s32.totalorder %s222, %s223
      %p234 = scmp.eq.s32.totalorder %s31, 0
      %p235 = por %p233, %p234
      %p236 = scmp.ne.s32.totalorder %s222, %s223
      %p237 = scmp.eq.s32.totalorder %s32, 1
      %p238 = por %p236, %p237
      %p240 = scmp.ne.s32.totalorder %s223, %s239
      %p241 = scmp.eq.s32.totalorder %s32, 0
      %p242 = por %p240, %p241
      %s243 = ssub.s32 %s26, %s33
      %p244 = scmp.eq.s32.totalorder %s243, 0
      %s246 = sadd.s32 %s245, 1
      %s247 = scalar_select %p244, %s245, %s246
      %p250 = pneg %p244
      %p251 = scmp.eq.s32.totalorder %s26, 1
      %p252 = por %p250, %p251
      %p253 = scmp.ne.s32.totalorder %s245, %s248
      %p254 = scmp.eq.s32.totalorder %s26, 0
      %p255 = por %p253, %p254
      %p256 = scmp.ne.s32.totalorder %s245, %s248
      %p257 = scmp.eq.s32.totalorder %s31, 1
      %p258 = por %p256, %p257
      %p259 = scmp.ne.s32.totalorder %s248, %s249
      %p260 = scmp.eq.s32.totalorder %s31, 0
      %p261 = por %p259, %p260
      %p262 = scmp.ne.s32.totalorder %s248, %s249
      %p263 = scmp.eq.s32.totalorder %s32, 1
      %p264 = por %p262, %p263
      %p266 = scmp.ne.s32.totalorder %s249, %s265
      %p267 = scmp.eq.s32.totalorder %s32, 0
      %p268 = por %p266, %p267
      %s269 = ssub.s32 %s26, %s33
      %p270 = scmp.eq.s32.totalorder %s269, 0
      %s272 = sadd.s32 %s271, 1
      %s273 = scalar_select %p270, %s271, %s272
      %p276 = pneg %p270
      %p277 = scmp.eq.s32.totalorder %s26, 1
      %p278 = por %p276, %p277
      %p279 = scmp.ne.s32.totalorder %s271, %s274
      %p280 = scmp.eq.s32.totalorder %s26, 0
      %p281 = por %p279, %p280
      %p282 = scmp.ne.s32.totalorder %s271, %s274
      %p283 = scmp.eq.s32.totalorder %s31, 1
      %p284 = por %p282, %p283
      %p285 = scmp.ne.s32.totalorder %s274, %s275
      %p286 = scmp.eq.s32.totalorder %s31, 0
      %p287 = por %p285, %p286
      %p288 = scmp.ne.s32.totalorder %s274, %s275
      %p289 = scmp.eq.s32.totalorder %s32, 1
      %p290 = por %p288, %p289
      %p292 = scmp.ne.s32.totalorder %s275, %s291
      %p293 = scmp.eq.s32.totalorder %s32, 0
      %p294 = por %p292, %p293
      %s295 = ssub.s32 %s26, %s33
      %p296 = scmp.eq.s32.totalorder %s295, 0
      %s298 = sadd.s32 %s297, 1
      %s299 = scalar_select %p296, %s297, %s298
      %p302 = pneg %p296
      %p303 = scmp.eq.s32.totalorder %s26, 1
      %p304 = por %p302, %p303
      %p305 = scmp.ne.s32.totalorder %s297, %s300
      %p306 = scmp.eq.s32.totalorder %s26, 0
      %p307 = por %p305, %p306
      %p308 = scmp.ne.s32.totalorder %s297, %s300
      %p309 = scmp.eq.s32.totalorder %s31, 1
      %p310 = por %p308, %p309
      %p311 = scmp.ne.s32.totalorder %s300, %s301
      %p312 = scmp.eq.s32.totalorder %s31, 0
      %p313 = por %p311, %p312
      %p314 = scmp.ne.s32.totalorder %s300, %s301
      %p315 = scmp.eq.s32.totalorder %s32, 1
      %p316 = por %p314, %p315
      %p318 = scmp.ne.s32.totalorder %s301, %s317
      %p319 = scmp.eq.s32.totalorder %s32, 0
      %p320 = por %p318, %p319
      %s321 = ssub.s32 %s26, %s33
      %p322 = scmp.eq.s32.totalorder %s321, 0
      %s324 = sadd.s32 %s323, 1
      %s325 = scalar_select %p322, %s323, %s324
      %p328 = pneg %p322
      %p329 = scmp.eq.s32.totalorder %s26, 1
      %p330 = por %p328, %p329
      %p331 = scmp.ne.s32.totalorder %s323, %s326
      %p332 = scmp.eq.s32.totalorder %s26, 0
      %p333 = por %p331, %p332
      %p334 = scmp.ne.s32.totalorder %s323, %s326
      %p335 = scmp.eq.s32.totalorder %s31, 1
      %p336 = por %p334, %p335
      %p337 = scmp.ne.s32.totalorder %s326, %s327
      %p338 = scmp.eq.s32.totalorder %s31, 0
      %p339 = por %p337, %p338
      %p340 = scmp.ne.s32.totalorder %s326, %s327
      %p341 = scmp.eq.s32.totalorder %s32, 1
      %p342 = por %p340, %p341
      %p344 = scmp.ne.s32.totalorder %s327, %s343
      %p345 = scmp.eq.s32.totalorder %s32, 0
      %p346 = por %p344, %p345
      %s347 = ssub.s32 %s26, %s33
      %p348 = scmp.eq.s32.totalorder %s347, 0
      %s350 = sadd.s32 %s349, 1
      %s351 = scalar_select %p348, %s349, %s350
      %p354 = pneg %p348
      %p355 = scmp.eq.s32.totalorder %s26, 1
      %p356 = por %p354, %p355
      %p357 = scmp.ne.s32.totalorder %s349, %s352
      %p358 = scmp.eq.s32.totalorder %s26, 0
      %p359 = por %p357, %p358
      %p360 = scmp.ne.s32.totalorder %s349, %s352
      %p361 = scmp.eq.s32.totalorder %s31, 1
      %p362 = por %p360, %p361
      %p363 = scmp.ne.s32.totalorder %s352, %s353
      %p364 = scmp.eq.s32.totalorder %s31, 0
      %p365 = por %p363, %p364
      %p366 = scmp.ne.s32.totalorder %s352, %s353
      %p367 = scmp.eq.s32.totalorder %s32, 1
      %p368 = por %p366, %p367
      %p370 = scmp.ne.s32.totalorder %s353, %s369
      %p371 = scmp.eq.s32.totalorder %s32, 0
      %p372 = por %p370, %p371
      %s373 = ssub.s32 %s26, %s33
      %p374 = scmp.eq.s32.totalorder %s373, 0
      %s376 = sadd.s32 %s375, 1
      %s377 = scalar_select %p374, %s375, %s376
      %p380 = pneg %p374
      %p381 = scmp.eq.s32.totalorder %s26, 1
      %p382 = por %p380, %p381
      %p383 = scmp.ne.s32.totalorder %s375, %s378
      %p384 = scmp.eq.s32.totalorder %s26, 0
      %p385 = por %p383, %p384
      %p386 = scmp.ne.s32.totalorder %s375, %s378
      %p387 = scmp.eq.s32.totalorder %s31, 1
      %p388 = por %p386, %p387
      %p389 = scmp.ne.s32.totalorder %s378, %s379
      %p390 = scmp.eq.s32.totalorder %s31, 0
      %p391 = por %p389, %p390
      %p392 = scmp.ne.s32.totalorder %s378, %s379
      %p393 = scmp.eq.s32.totalorder %s32, 1
      %p394 = por %p392, %p393
      %p396 = scmp.ne.s32.totalorder %s379, %s395
      %p397 = scmp.eq.s32.totalorder %s32, 0
      %p398 = por %p396, %p397
      %s399 = ssub.s32 %s26, %s33
      %p400 = scmp.eq.s32.totalorder %s399, 0
      %s402 = sadd.s32 %s401, 1
      %s403 = scalar_select %p400, %s401, %s402
      %p406 = pneg %p400
      %p407 = scmp.eq.s32.totalorder %s26, 1
      %p408 = por %p406, %p407
      %p409 = scmp.ne.s32.totalorder %s401, %s404
      %p410 = scmp.eq.s32.totalorder %s26, 0
      %p411 = por %p409, %p410
      %p412 = scmp.ne.s32.totalorder %s401, %s404
      %p413 = scmp.eq.s32.totalorder %s31, 1
      %p414 = por %p412, %p413
      %p415 = scmp.ne.s32.totalorder %s404, %s405
      %p416 = scmp.eq.s32.totalorder %s31, 0
      %p417 = por %p415, %p416
      %p418 = scmp.ne.s32.totalorder %s404, %s405
      %p419 = scmp.eq.s32.totalorder %s32, 1
      %p420 = por %p418, %p419
      %p422 = scmp.ne.s32.totalorder %s405, %s421
      %p423 = scmp.eq.s32.totalorder %s32, 0
      %p424 = por %p422, %p423
      %s425 = ssub.s32 %s26, %s33
      %p426 = scmp.eq.s32.totalorder %s425, 0
      %s428 = sadd.s32 %s427, 1
      %s429 = scalar_select %p426, %s427, %s428
      %p432 = pneg %p426
      %p433 = scmp.eq.s32.totalorder %s26, 1
      %p434 = por %p432, %p433
      %p435 = scmp.ne.s32.totalorder %s427, %s430
      %p436 = scmp.eq.s32.totalorder %s26, 0
      %p437 = por %p435, %p436
      %p438 = scmp.ne.s32.totalorder %s427, %s430
      %p439 = scmp.eq.s32.totalorder %s31, 1
      %p440 = por %p438, %p439
      %p441 = scmp.ne.s32.totalorder %s430, %s431
      %p442 = scmp.eq.s32.totalorder %s31, 0
      %p443 = por %p441, %p442
      %p444 = scmp.ne.s32.totalorder %s430, %s431
      %p445 = scmp.eq.s32.totalorder %s32, 1
      %p446 = por %p444, %p445
      %p448 = scmp.ne.s32.totalorder %s431, %s447
      %p449 = scmp.eq.s32.totalorder %s32, 0
      %p450 = por %p448, %p449
      %s452 = sadd.s32 %s451, 1
      %p455 = scmp.eq.s32.totalorder %s26, 1
      %p456 = scmp.ne.s32.totalorder %s451, %s453
      %p457 = scmp.eq.s32.totalorder %s26, 0
      %p458 = por %p456, %p457
      %p459 = scmp.ne.s32.totalorder %s451, %s453
      %p460 = scmp.eq.s32.totalorder %s31, 1
      %p461 = por %p459, %p460
      %p462 = scmp.ne.s32.totalorder %s453, %s454
      %p463 = scmp.eq.s32.totalorder %s31, 0
      %p464 = por %p462, %p463
      %p465 = scmp.ne.s32.totalorder %s453, %s454
      %p466 = scmp.eq.s32.totalorder %s32, 1
      %p467 = por %p465, %p466
      %p469 = scmp.ne.s32.totalorder %s454, %s468
      %p470 = scmp.eq.s32.totalorder %s32, 0
      %p471 = por %p469, %p470
      %s473 = sadd.s32 %s472, 1
      %p476 = scmp.eq.s32.totalorder %s26, 1
      %p477 = scmp.ne.s32.totalorder %s472, %s474
      %p478 = scmp.eq.s32.totalorder %s26, 0
      %p479 = por %p477, %p478
      %p480 = scmp.ne.s32.totalorder %s472, %s474
      %p481 = scmp.eq.s32.totalorder %s31, 1
      %p482 = por %p480, %p481
      %p483 = scmp.ne.s32.totalorder %s474, %s475
      %p484 = scmp.eq.s32.totalorder %s31, 0
      %p485 = por %p483, %p484
      %p486 = scmp.ne.s32.totalorder %s474, %s475
      %p487 = scmp.eq.s32.totalorder %s32, 1
      %p488 = por %p486, %p487
      %p490 = scmp.ne.s32.totalorder %s475, %s489
      %p491 = scmp.eq.s32.totalorder %s32, 0
      %p492 = por %p490, %p491
      %s494 = sadd.s32 %s493, 1
      %p497 = scmp.eq.s32.totalorder %s26, 1
      %p498 = scmp.ne.s32.totalorder %s493, %s495
      %p499 = scmp.eq.s32.totalorder %s26, 0
      %p500 = por %p498, %p499
      %p501 = scmp.ne.s32.totalorder %s493, %s495
      %p502 = scmp.eq.s32.totalorder %s31, 1
      %p503 = por %p501, %p502
      %p504 = scmp.ne.s32.totalorder %s495, %s496
      %p505 = scmp.eq.s32.totalorder %s31, 0
      %p506 = por %p504, %p505
      %p507 = scmp.ne.s32.totalorder %s495, %s496
      %p508 = scmp.eq.s32.totalorder %s32, 1
      %p509 = por %p507, %p508
      %p511 = scmp.ne.s32.totalorder %s496, %s510
      %p512 = scmp.eq.s32.totalorder %s32, 0
      %p513 = por %p511, %p512
      %p514 = scmp.le.s32.totalorder 1, %s26
      %p515 = scmp.lt.s32.totalorder %s26, 3
      %p516 = pnand %p514, %p515
      %p517 = pneg %p516
      // Predicated region
      $region9: #{model_forward.1} parent=5 // pred_check
        _
      $region10: #{model_forward.1} parent=5 // pred_check_branch
        %519 = sbr.rel (%p516) target = $region12
      $region11: #{model_forward.1} parent=5 // pred_region
        %s520 = ssub.s32 %s26, 1
        // Predicated region
        $region13: #{model_forward.1} parent=11 // pred_check
          %p521 = pneg %p47
        $region14: #{model_forward.1} parent=11 // pred_check_branch
          %523 = sbr.rel (%p521) target = $region16
        $region15: #{model_forward.1} parent=11 // pred_region
          _
        $region16: #{model_forward.1} parent=11 // pred_fallthru
          _
        // Predicated region
        $region17: #{model_forward.1} parent=11 // pred_check
          %p524 = pneg %p68
        $region18: #{model_forward.1} parent=11 // pred_check_branch
          %526 = sbr.rel (%p524) target = $region20
        $region19: #{model_forward.1} parent=11 // pred_region
          _
        $region20: #{model_forward.1} parent=11 // pred_fallthru
          _
        // Predicated region
        $region21: #{model_forward.1} parent=11 // pred_check
          %p527 = pneg %p89
        $region22: #{model_forward.1} parent=11 // pred_check_branch
          %529 = sbr.rel (%p527) target = $region24
        $region23: #{model_forward.1} parent=11 // pred_region
          _
        $region24: #{model_forward.1} parent=11 // pred_fallthru
          _
        // Predicated region
        $region25: #{model_forward.1} parent=11 // pred_check
          %p530 = pneg %p110
        $region26: #{model_forward.1} parent=11 // pred_check_branch
          %532 = sbr.rel (%p530) target = $region28
        $region27: #{model_forward.1} parent=11 // pred_region
          _
        $region28: #{model_forward.1} parent=11 // pred_fallthru
          _
        // Predicated region
        $region29: #{model_forward.1} parent=11 // pred_check
          %p533 = pneg %p131
        $region30: #{model_forward.1} parent=11 // pred_check_branch
          %535 = sbr.rel (%p533) target = $region32
        $region31: #{model_forward.1} parent=11 // pred_region
          _
        $region32: #{model_forward.1} parent=11 // pred_fallthru
          _
        // Predicated region
        $region33: #{model_forward.1} parent=11 // pred_check
          %p536 = pneg %p464
        $region34: #{model_forward.1} parent=11 // pred_check_branch
          %538 = sbr.rel (%p536) target = $region36
        $region35: #{model_forward.1} parent=11 // pred_region
          _
        $region36: #{model_forward.1} parent=11 // pred_fallthru
          _
        // Predicated region
        $region37: #{model_forward.1} parent=11 // pred_check
          %p539 = pneg %p485
        $region38: #{model_forward.1} parent=11 // pred_check_branch
          %541 = sbr.rel (%p539) target = $region40
        $region39: #{model_forward.1} parent=11 // pred_region
          _
        $region40: #{model_forward.1} parent=11 // pred_fallthru
          _
      $region12: #{model_forward.1} parent=5 // pred_fallthru
        _
      %p542 = scmp.lt.s32.totalorder %s26, 2
      // Predicated region
      $region41: #{model_forward.1} parent=5 // pred_check
        %p543 = pneg %p542
      $region42: #{model_forward.1} parent=5 // pred_check_branch
        %545 = sbr.rel (%p543) target = $region44
      $region43: #{model_forward.1} parent=5 // pred_region
        // Predicated region
        $region45: #{model_forward.1} parent=43 // pred_check
          %p546 = pneg %p151
        $region46: #{model_forward.1} parent=43 // pred_check_branch
          %548 = sbr.rel (%p546) target = $region48
        $region47: #{model_forward.1} parent=43 // pred_region
          %p549 = scmp.lt.s32.totalorder %s26, 1
          %s550 = scalar_select %p549, %s26, 1
          %s551 = scalar_lea.vmem %s5, %s550
        $region48: #{model_forward.1} parent=43 // pred_fallthru
          _
        // Predicated region
        $region49: #{model_forward.1} parent=43 // pred_check
          %p552 = pneg %p177
        $region50: #{model_forward.1} parent=43 // pred_check_branch
          %554 = sbr.rel (%p552) target = $region52
        $region51: #{model_forward.1} parent=43 // pred_region
          %p555 = scmp.lt.s32.totalorder %s26, 1
          %s556 = scalar_select %p555, %s26, 1
          %s557 = scalar_lea.vmem %s6, %s556
        $region52: #{model_forward.1} parent=43 // pred_fallthru
          _
        // Predicated region
        $region53: #{model_forward.1} parent=43 // pred_check
          %p558 = pneg %p203
        $region54: #{model_forward.1} parent=43 // pred_check_branch
          %560 = sbr.rel (%p558) target = $region56
        $region55: #{model_forward.1} parent=43 // pred_region
          %p561 = scmp.lt.s32.totalorder %s26, 1
          %s562 = scalar_select %p561, %s26, 1
          %s563 = smul.addr %s562, 48
          %s564 = smul.addr %s563, 4
          %s565 = scalar_lea.vmem %s7, %s564
        $region56: #{model_forward.1} parent=43 // pred_fallthru
          _
        // Predicated region
        $region57: #{model_forward.1} parent=43 // pred_check
          %p566 = pneg %p229
        $region58: #{model_forward.1} parent=43 // pred_check_branch
          %568 = sbr.rel (%p566) target = $region60
        $region59: #{model_forward.1} parent=43 // pred_region
          %p569 = scmp.lt.s32.totalorder %s26, 1
          %s570 = scalar_select %p569, %s26, 1
          %s571 = smul.addr %s570, 3
          %s572 = scalar_lea.vmem %s8, %s571
        $region60: #{model_forward.1} parent=43 // pred_fallthru
          _
        // Predicated region
        $region61: #{model_forward.1} parent=43 // pred_check
          %p573 = pneg %p255
        $region62: #{model_forward.1} parent=43 // pred_check_branch
          %575 = sbr.rel (%p573) target = $region64
        $region63: #{model_forward.1} parent=43 // pred_region
          %p576 = scmp.lt.s32.totalorder %s26, 1
          %s577 = scalar_select %p576, %s26, 1
          %s578 = smul.addr %s577, 16
          %s579 = smul.addr %s578, 4
          %s580 = scalar_lea.vmem %s9, %s579
        $region64: #{model_forward.1} parent=43 // pred_fallthru
          _
        // Predicated region
        $region65: #{model_forward.1} parent=43 // pred_check
          %p581 = pneg %p281
        $region66: #{model_forward.1} parent=43 // pred_check_branch
          %583 = sbr.rel (%p581) target = $region68
        $region67: #{model_forward.1} parent=43 // pred_region
          %p584 = scmp.lt.s32.totalorder %s26, 1
          %s585 = scalar_select %p584, %s26, 1
          %s586 = scalar_lea.vmem %s10, %s585
        $region68: #{model_forward.1} parent=43 // pred_fallthru
          _
        // Predicated region
        $region69: #{model_forward.1} parent=43 // pred_check
          %p587 = pneg %p307
        $region70: #{model_forward.1} parent=43 // pred_check_branch
          %589 = sbr.rel (%p587) target = $region72
        $region71: #{model_forward.1} parent=43 // pred_region
          %p590 = scmp.lt.s32.totalorder %s26, 1
          %s591 = scalar_select %p590, %s26, 1
          %s592 = scalar_lea.vmem %s11, %s591
        $region72: #{model_forward.1} parent=43 // pred_fallthru
          _
        // Predicated region
        $region73: #{model_forward.1} parent=43 // pred_check
          %p593 = pneg %p333
        $region74: #{model_forward.1} parent=43 // pred_check_branch
          %595 = sbr.rel (%p593) target = $region76
        $region75: #{model_forward.1} parent=43 // pred_region
          %p596 = scmp.lt.s32.totalorder %s26, 1
          %s597 = scalar_select %p596, %s26, 1
          %s598 = scalar_lea.vmem %s12, %s597
        $region76: #{model_forward.1} parent=43 // pred_fallthru
          _
        // Predicated region
        $region77: #{model_forward.1} parent=43 // pred_check
          %p599 = pneg %p359
        $region78: #{model_forward.1} parent=43 // pred_check_branch
          %601 = sbr.rel (%p599) target = $region80
        $region79: #{model_forward.1} parent=43 // pred_region
          %p602 = scmp.lt.s32.totalorder %s26, 1
          %s603 = scalar_select %p602, %s26, 1
          %s604 = smul.addr %s603, 32
          %s605 = smul.addr %s604, 4
          %s606 = scalar_lea.vmem %s13, %s605
        $region80: #{model_forward.1} parent=43 // pred_fallthru
          _
        // Predicated region
        $region81: #{model_forward.1} parent=43 // pred_check
          %p607 = pneg %p385
        $region82: #{model_forward.1} parent=43 // pred_check_branch
          %609 = sbr.rel (%p607) target = $region84
        $region83: #{model_forward.1} parent=43 // pred_region
          %p610 = scmp.lt.s32.totalorder %s26, 1
          %s611 = scalar_select %p610, %s26, 1
          %s612 = smul.addr %s611, 2
          %s613 = scalar_lea.vmem %s14, %s612
        $region84: #{model_forward.1} parent=43 // pred_fallthru
          _
        // Predicated region
        $region85: #{model_forward.1} parent=43 // pred_check
          %p614 = pneg %p411
        $region86: #{model_forward.1} parent=43 // pred_check_branch
          %616 = sbr.rel (%p614) target = $region88
        $region87: #{model_forward.1} parent=43 // pred_region
          %p617 = scmp.lt.s32.totalorder %s26, 1
          %s618 = scalar_select %p617, %s26, 1
          %s619 = smul.addr %s618, 32
          %s620 = smul.addr %s619, 4
          %s621 = scalar_lea.vmem %s15, %s620
        $region88: #{model_forward.1} parent=43 // pred_fallthru
          _
        // Predicated region
        $region89: #{model_forward.1} parent=43 // pred_check
          %p622 = pneg %p437
        $region90: #{model_forward.1} parent=43 // pred_check_branch
          %624 = sbr.rel (%p622) target = $region92
        $region91: #{model_forward.1} parent=43 // pred_region
          %p625 = scmp.lt.s32.totalorder %s26, 1
          %s626 = scalar_select %p625, %s26, 1
          %s627 = scalar_lea.vmem %s16, %s626
        $region92: #{model_forward.1} parent=43 // pred_fallthru
          _
      $region44: #{model_forward.1} parent=5 // pred_fallthru
        _
      %p628 = scmp.le.s32.totalorder 1, %s26
      %p629 = scmp.lt.s32.totalorder %s26, 3
      %p630 = pnand %p628, %p629
      %p631 = pneg %p630
      // Predicated region
      $region93: #{model_forward.1} parent=5 // pred_check
        _
      $region94: #{model_forward.1} parent=5 // pred_check_branch
        %633 = sbr.rel (%p630) target = $region96
      $region95: #{model_forward.1} parent=5 // pred_region
        %s634 = ssub.s32 %s26, 1
        %p635 = pneg %p47
        %p636 = pneg %p44
        %p637 = pneg %p68
        %p638 = pneg %p65
        %p639 = pneg %p89
        %p640 = pneg %p86
        %p641 = pneg %p110
        %p642 = pneg %p107
        %p643 = pneg %p131
        %p644 = pneg %p128
        %p645 = scmp.lt.s32.totalorder %s31, 1
        %s646 = scalar_select %p645, %s31, 1
        %s647 = scalar_lea.vmem %s5, %s646
        %p648 = pneg %p157
        %p649 = pneg %p154
        %p650 = scmp.lt.s32.totalorder %s31, 1
        %s651 = scalar_select %p650, %s31, 1
        %s652 = scalar_lea.vmem %s6, %s651
        %p653 = pneg %p183
        %p654 = pneg %p180
        %p655 = scmp.lt.s32.totalorder %s31, 1
        %s656 = scalar_select %p655, %s31, 1
        %s657 = smul.addr %s656, 48
        %s658 = smul.addr %s657, 4
        %s659 = scalar_lea.vmem %s7, %s658
        %p660 = pneg %p209
        %p661 = pneg %p206
        %p662 = scmp.lt.s32.totalorder %s31, 1
        %s663 = scalar_select %p662, %s31, 1
        %s664 = smul.addr %s663, 3
        %s665 = scalar_lea.vmem %s8, %s664
        %p666 = pneg %p235
        %p667 = pneg %p232
        %p668 = scmp.lt.s32.totalorder %s31, 1
        %s669 = scalar_select %p668, %s31, 1
        %s670 = smul.addr %s669, 16
        %s671 = smul.addr %s670, 4
        %s672 = scalar_lea.vmem %s9, %s671
        %p673 = pneg %p261
        %p674 = pneg %p258
        %p675 = scmp.lt.s32.totalorder %s31, 1
        %s676 = scalar_select %p675, %s31, 1
        %s677 = scalar_lea.vmem %s10, %s676
        %p678 = pneg %p287
        %p679 = pneg %p284
        %p680 = scmp.lt.s32.totalorder %s31, 1
        %s681 = scalar_select %p680, %s31, 1
        %s682 = scalar_lea.vmem %s11, %s681
        %p683 = pneg %p313
        %p684 = pneg %p310
        %p685 = scmp.lt.s32.totalorder %s31, 1
        %s686 = scalar_select %p685, %s31, 1
        %s687 = scalar_lea.vmem %s12, %s686
        %p688 = pneg %p339
        %p689 = pneg %p336
        %p690 = scmp.lt.s32.totalorder %s31, 1
        %s691 = scalar_select %p690, %s31, 1
        %s692 = smul.addr %s691, 32
        %s693 = smul.addr %s692, 4
        %s694 = scalar_lea.vmem %s13, %s693
        %p695 = pneg %p365
        %p696 = pneg %p362
        %p697 = scmp.lt.s32.totalorder %s31, 1
        %s698 = scalar_select %p697, %s31, 1
        %s699 = smul.addr %s698, 2
        %s700 = scalar_lea.vmem %s14, %s699
        %p701 = pneg %p391
        %p702 = pneg %p388
        %p703 = scmp.lt.s32.totalorder %s31, 1
        %s704 = scalar_select %p703, %s31, 1
        %s705 = smul.addr %s704, 32
        %s706 = smul.addr %s705, 4
        %s707 = scalar_lea.vmem %s15, %s706
        %p708 = pneg %p417
        %p709 = pneg %p414
        %p710 = scmp.lt.s32.totalorder %s31, 1
        %s711 = scalar_select %p710, %s31, 1
        %s712 = scalar_lea.vmem %s16, %s711
        %p713 = pneg %p443
        %p714 = pneg %p440
        %p715 = pneg %p464
        %p716 = pneg %p461
        %p717 = pneg %p485
        %p718 = pneg %p482
        %p719 = pneg %p506
        %p720 = pneg %p503
        %p721 = scmp.lt.s32.totalorder %s31, 1
        %s722 = scalar_select %p721, %s31, 1
        %s723 = scalar_lea.vmem %s5, %s722
        %p724 = scmp.lt.s32.totalorder %s31, 1
        %s725 = scalar_select %p724, %s31, 1
        %s726 = scalar_lea.vmem %s6, %s725
        %p727 = scmp.lt.s32.totalorder %s31, 1
        %s728 = scalar_select %p727, %s31, 1
        %s729 = smul.addr %s728, 48
        %s730 = smul.addr %s729, 4
        %s731 = scalar_lea.vmem %s7, %s730
        %p732 = scmp.lt.s32.totalorder %s31, 1
        %s733 = scalar_select %p732, %s31, 1
        %s734 = smul.addr %s733, 3
        %s735 = scalar_lea.vmem %s8, %s734
        %p736 = scmp.lt.s32.totalorder %s31, 1
        %s737 = scalar_select %p736, %s31, 1
        %s738 = smul.addr %s737, 16
        %s739 = smul.addr %s738, 4
        %s740 = scalar_lea.vmem %s9, %s739
        %p741 = scmp.lt.s32.totalorder %s31, 1
        %s742 = scalar_select %p741, %s31, 1
        %s743 = scalar_lea.vmem %s10, %s742
        %p744 = scmp.lt.s32.totalorder %s31, 1
        %s745 = scalar_select %p744, %s31, 1
        %s746 = scalar_lea.vmem %s11, %s745
        %p747 = scmp.lt.s32.totalorder %s31, 1
        %s748 = scalar_select %p747, %s31, 1
        %s749 = scalar_lea.vmem %s12, %s748
        %p750 = scmp.lt.s32.totalorder %s31, 1
        %s751 = scalar_select %p750, %s31, 1
        %s752 = smul.addr %s751, 32
        %s753 = smul.addr %s752, 4
        %s754 = scalar_lea.vmem %s13, %s753
        %p755 = scmp.lt.s32.totalorder %s31, 1
        %s756 = scalar_select %p755, %s31, 1
        %s757 = smul.addr %s756, 2
        %s758 = scalar_lea.vmem %s14, %s757
        %p759 = scmp.lt.s32.totalorder %s31, 1
        %s760 = scalar_select %p759, %s31, 1
        %s761 = smul.addr %s760, 32
        %s762 = smul.addr %s761, 4
        %s763 = scalar_lea.vmem %s15, %s762
        %p764 = scmp.lt.s32.totalorder %s31, 1
        %s765 = scalar_select %p764, %s31, 1
        %s766 = scalar_lea.vmem %s16, %s765
        %p768 = scmp.eq.s32.totalorder %s31, 0
        // Predicated region
        $region97: #{model_forward.1} parent=95 // pred_check
          %p769 = pneg %p768
        $region98: #{model_forward.1} parent=95 // pred_check_branch
          %771 = sbr.rel (%p769) target = $region100
        $region99: #{model_forward.1} parent=95 // pred_region
          %v772 = vld [vmem:[%s0] sm:$0xff]
          %v773 = vld [vmem:[%s0 + $0x8] sm:$0xff]
          %v774 = vld [vmem:[%s0 + $0x10] sm:$0xff]
          %v775 = vld [vmem:[%s0 + $0x18] sm:$0xff]
          %v776 = vld [vmem:[%s0 + $0x20] sm:$0xff]
          %v777 = vld [vmem:[%s0 + $0x28] sm:$0xff]
          %v778 = vpack.c.bf16 %v772, %v772
          %v779 = vpack.c.bf16 %v773, %v773
          %v780 = vpack.c.bf16 %v774, %v774
          %v781 = vpack.c.bf16 %v775, %v775
          %v782 = vpack.c.bf16 %v776, %v776
          %v783 = vpack.c.bf16 %v777, %v777
          %v784 = vld [vmem:[%s1] sm:$0xf]
          %v785 = vld [vmem:[%s1 + $0x4] sm:$0xf]
          %v786 = vld [vmem:[%s1 + $0x8] sm:$0xf]
          %v787 = vld [vmem:[%s1 + $0xc] sm:$0xf]
          %v788 = vld [vmem:[%s1 + $0x10] sm:$0xf]
          %v789 = vld [vmem:[%s1 + $0x14] sm:$0xf]
          %v790 = vld [vmem:[%s1 + $0x18] sm:$0xf]
          %v791 = vld [vmem:[%s1 + $0x1c] sm:$0xf]
          %v792 = vld [vmem:[%s1 + $0x20] sm:$0xf]
          %v793 = vld [vmem:[%s1 + $0x24] sm:$0xf]
          %v794 = vld [vmem:[%s1 + $0x28] sm:$0xf]
          %v795 = vld [vmem:[%s1 + $0x2c] sm:$0xf]
          %v796 = vld [vmem:[%s1 + $0x30] sm:$0xf]
          %v797 = vld [vmem:[%s1 + $0x34] sm:$0xf]
          %v798 = vld [vmem:[%s1 + $0x38] sm:$0xf]
          %v799 = vld [vmem:[%s1 + $0x3c] sm:$0xf]
          %v800 = vld [vmem:[%s1 + $0x40] sm:$0xf]
          %v801 = vld [vmem:[%s1 + $0x44] sm:$0xf]
          %v802 = vld [vmem:[%s1 + $0x48] sm:$0xf]
          %v803 = vld [vmem:[%s1 + $0x4c] sm:$0xf]
          %v804 = vld [vmem:[%s1 + $0x50] sm:$0xf]
          %v805 = vld [vmem:[%s1 + $0x54] sm:$0xf]
          %v806 = vld [vmem:[%s1 + $0x58] sm:$0xf]
          %v807 = vld [vmem:[%s1 + $0x5c] sm:$0xf]
          %v808 = vld [vmem:[%s1 + $0x60] sm:$0xf]
          %v809 = vld [vmem:[%s1 + $0x64] sm:$0xf]
          %v810 = vld [vmem:[%s1 + $0x68] sm:$0xf]
          %v811 = vld [vmem:[%s1 + $0x6c] sm:$0xf]
          %v812 = vld [vmem:[%s1 + $0x70] sm:$0xf]
          %v813 = vld [vmem:[%s1 + $0x74] sm:$0xf]
          %v814 = vld [vmem:[%s1 + $0x78] sm:$0xf]
          %v815 = vld [vmem:[%s1 + $0x7c] sm:$0xf]
          %v816 = vld [vmem:[%s1 + $0x80] sm:$0xf]
          %v817 = vld [vmem:[%s1 + $0x84] sm:$0xf]
          %v818 = vld [vmem:[%s1 + $0x88] sm:$0xf]
          %v819 = vld [vmem:[%s1 + $0x8c] sm:$0xf]
          %v820 = vld [vmem:[%s1 + $0x90] sm:$0xf]
          %v821 = vld [vmem:[%s1 + $0x94] sm:$0xf]
          %v822 = vld [vmem:[%s1 + $0x98] sm:$0xf]
          %v823 = vld [vmem:[%s1 + $0x9c] sm:$0xf]
          %v824 = vld [vmem:[%s1 + $0xa0] sm:$0xf]
          %v825 = vld [vmem:[%s1 + $0xa4] sm:$0xf]
          %v826 = vld [vmem:[%s1 + $0xa8] sm:$0xf]
          %v827 = vld [vmem:[%s1 + $0xac] sm:$0xf]
          %v828 = vld [vmem:[%s1 + $0xb0] sm:$0xf]
          %v829 = vld [vmem:[%s1 + $0xb4] sm:$0xf]
          %v830 = vld [vmem:[%s1 + $0xb8] sm:$0xf]
          %v831 = vld [vmem:[%s1 + $0xbc] sm:$0xf]
          %v832 = vld [vmem:[%s1 + $0xc0] sm:$0xf]
          %v833 = vld [vmem:[%s1 + $0xc4] sm:$0xf]
          %v834 = vld [vmem:[%s1 + $0xc8] sm:$0xf]
          %v835 = vld [vmem:[%s1 + $0xcc] sm:$0xf]
          %v836 = vld [vmem:[%s1 + $0xd0] sm:$0xf]
          %v837 = vld [vmem:[%s1 + $0xd4] sm:$0xf]
          %v838 = vld [vmem:[%s1 + $0xd8] sm:$0xf]
          %v839 = vld [vmem:[%s1 + $0xdc] sm:$0xf]
          %v840 = vld [vmem:[%s1 + $0xe0] sm:$0xf]
          %v841 = vld [vmem:[%s1 + $0xe4] sm:$0xf]
          %v842 = vld [vmem:[%s1 + $0xe8] sm:$0xf]
          %v843 = vld [vmem:[%s1 + $0xec] sm:$0xf]
          %v844 = vld [vmem:[%s1 + $0xf0] sm:$0xf]
          %v845 = vld [vmem:[%s1 + $0xf4] sm:$0xf]
          %v846 = vld [vmem:[%s1 + $0xf8] sm:$0xf]
          %v847 = vld [vmem:[%s1 + $0xfc] sm:$0xf]
          %v848 = vld [vmem:[%s1 + $0x100] sm:$0xf]
          %v849 = vld [vmem:[%s1 + $0x104] sm:$0xf]
          %v850 = vld [vmem:[%s1 + $0x108] sm:$0xf]
          %v851 = vld [vmem:[%s1 + $0x10c] sm:$0xf]
          %v852 = vld [vmem:[%s1 + $0x110] sm:$0xf]
          %v853 = vld [vmem:[%s1 + $0x114] sm:$0xf]
          %v854 = vld [vmem:[%s1 + $0x118] sm:$0xf]
          %v855 = vld [vmem:[%s1 + $0x11c] sm:$0xf]
          %v856 = vld [vmem:[%s1 + $0x120] sm:$0xf]
          %v857 = vld [vmem:[%s1 + $0x124] sm:$0xf]
          %v858 = vld [vmem:[%s1 + $0x128] sm:$0xf]
          %v859 = vld [vmem:[%s1 + $0x12c] sm:$0xf]
          %v860 = vld [vmem:[%s1 + $0x130] sm:$0xf]
          %v861 = vld [vmem:[%s1 + $0x134] sm:$0xf]
          %v862 = vld [vmem:[%s1 + $0x138] sm:$0xf]
          %v863 = vld [vmem:[%s1 + $0x13c] sm:$0xf]
          %v864 = vld [vmem:[%s1 + $0x140] sm:$0xf]
          %v865 = vld [vmem:[%s1 + $0x144] sm:$0xf]
          %v866 = vld [vmem:[%s1 + $0x148] sm:$0xf]
          %v867 = vld [vmem:[%s1 + $0x14c] sm:$0xf]
          %v868 = vld [vmem:[%s1 + $0x150] sm:$0xf]
          %v869 = vld [vmem:[%s1 + $0x154] sm:$0xf]
          %v870 = vld [vmem:[%s1 + $0x158] sm:$0xf]
          %v871 = vld [vmem:[%s1 + $0x15c] sm:$0xf]
          %v872 = vld [vmem:[%s1 + $0x160] sm:$0xf]
          %v873 = vld [vmem:[%s1 + $0x164] sm:$0xf]
          %v874 = vld [vmem:[%s1 + $0x168] sm:$0xf]
          %v875 = vld [vmem:[%s1 + $0x16c] sm:$0xf]
          %v876 = vld [vmem:[%s1 + $0x170] sm:$0xf]
          %v877 = vld [vmem:[%s1 + $0x174] sm:$0xf]
          %v878 = vld [vmem:[%s1 + $0x178] sm:$0xf]
          %v879 = vld [vmem:[%s1 + $0x17c] sm:$0xf]
          %v880 = vld [vmem:[%s2] sm:$0x1]
          %v882 = vlaneseq
          %v883 = vshrl.u32 %v882, 7
          %v884 = vsub.s32 0, %v883
          %v885 = vrot.slane %v880, %v884
          %v983 = vunpack.c.l.b16 %v784
          %v984 = vunpack.c.l.b16 %v785
          %v985 = vunpack.c.l.b16 %v786
          %v986 = vunpack.c.l.b16 %v787
          %v987 = vunpack.c.l.b16 %v788
          %v988 = vunpack.c.l.b16 %v789
          %v989 = vunpack.c.l.b16 %v790
          %v990 = vunpack.c.l.b16 %v791
          %v991 = vunpack.c.l.b16 %v792
          %v992 = vunpack.c.l.b16 %v793
          %v993 = vunpack.c.l.b16 %v794
          %v994 = vunpack.c.l.b16 %v795
          %v995 = vunpack.c.l.b16 %v796
          %v996 = vunpack.c.l.b16 %v797
          %v997 = vunpack.c.l.b16 %v798
          %v998 = vunpack.c.l.b16 %v799
          %v999 = vunpack.c.l.b16 %v800
          %v1000 = vunpack.c.l.b16 %v801
          %v1001 = vunpack.c.l.b16 %v802
          %v1002 = vunpack.c.l.b16 %v803
          %v1003 = vunpack.c.l.b16 %v804
          %v1004 = vunpack.c.l.b16 %v805
          %v1005 = vunpack.c.l.b16 %v806
          %v1006 = vunpack.c.l.b16 %v807
          %v1007 = vunpack.c.l.b16 %v808
          %v1008 = vunpack.c.l.b16 %v809
          %v1009 = vunpack.c.l.b16 %v810
          %v1010 = vunpack.c.l.b16 %v811
          %v1011 = vunpack.c.l.b16 %v812
          %v1012 = vunpack.c.l.b16 %v813
          %v1013 = vunpack.c.l.b16 %v814
          %v1014 = vunpack.c.l.b16 %v815
          %v1015 = vunpack.c.l.b16 %v816
          %v1016 = vunpack.c.l.b16 %v817
          %v1017 = vunpack.c.l.b16 %v818
          %v1018 = vunpack.c.l.b16 %v819
          %v1019 = vunpack.c.l.b16 %v820
          %v1020 = vunpack.c.l.b16 %v821
          %v1021 = vunpack.c.l.b16 %v822
          %v1022 = vunpack.c.l.b16 %v823
          %v1023 = vunpack.c.l.b16 %v824
          %v1024 = vunpack.c.l.b16 %v825
          %v1025 = vunpack.c.l.b16 %v826
          %v1026 = vunpack.c.l.b16 %v827
          %v1027 = vunpack.c.l.b16 %v828
          %v1028 = vunpack.c.l.b16 %v829
          %v1029 = vunpack.c.l.b16 %v830
          %v1030 = vunpack.c.l.b16 %v831
          %v1031 = vunpack.c.l.b16 %v832
          %v1032 = vunpack.c.l.b16 %v833
          %v1033 = vunpack.c.l.b16 %v834
          %v1034 = vunpack.c.l.b16 %v835
          %v1035 = vunpack.c.l.b16 %v836
          %v1036 = vunpack.c.l.b16 %v837
          %v1037 = vunpack.c.l.b16 %v838
          %v1038 = vunpack.c.l.b16 %v839
          %v1039 = vunpack.c.l.b16 %v840
          %v1040 = vunpack.c.l.b16 %v841
          %v1041 = vunpack.c.l.b16 %v842
          %v1042 = vunpack.c.l.b16 %v843
          %v1043 = vunpack.c.l.b16 %v844
          %v1044 = vunpack.c.l.b16 %v845
          %v1045 = vunpack.c.l.b16 %v846
          %v1046 = vunpack.c.l.b16 %v847
          %v1047 = vunpack.c.l.b16 %v848
          %v1048 = vunpack.c.l.b16 %v849
          %v1049 = vunpack.c.l.b16 %v850
          %v1050 = vunpack.c.l.b16 %v851
          %v1051 = vunpack.c.l.b16 %v852
          %v1052 = vunpack.c.l.b16 %v853
          %v1053 = vunpack.c.l.b16 %v854
          %v1054 = vunpack.c.l.b16 %v855
          %v1055 = vunpack.c.l.b16 %v856
          %v1056 = vunpack.c.l.b16 %v857
          %v1057 = vunpack.c.l.b16 %v858
          %v1058 = vunpack.c.l.b16 %v859
          %v1059 = vunpack.c.l.b16 %v860
          %v1060 = vunpack.c.l.b16 %v861
          %v1061 = vunpack.c.l.b16 %v862
          %v1062 = vunpack.c.l.b16 %v863
          %v1063 = vunpack.c.l.b16 %v864
          %v1064 = vunpack.c.l.b16 %v865
          %v1065 = vunpack.c.l.b16 %v866
          %v1066 = vunpack.c.l.b16 %v867
          %v1067 = vunpack.c.l.b16 %v868
          %v1068 = vunpack.c.l.b16 %v869
          %v1069 = vunpack.c.l.b16 %v870
          %v1070 = vunpack.c.l.b16 %v871
          %v1071 = vunpack.c.l.b16 %v872
          %v1072 = vunpack.c.l.b16 %v873
          %v1073 = vunpack.c.l.b16 %v874
          %v1074 = vunpack.c.l.b16 %v875
          %v1075 = vunpack.c.l.b16 %v876
          %v1076 = vunpack.c.l.b16 %v877
          %v1077 = vunpack.c.l.b16 %v878
          %v1078 = vunpack.c.l.b16 %v879
          %v1079 = vpack.c.b16 %v984, %v983
          %v1080 = vpack.c.b16 %v986, %v985
          %v1081 = vpack.c.b16 %v988, %v987
          %v1082 = vpack.c.b16 %v990, %v989
          %v1083 = vpack.c.b16 %v992, %v991
          %v1084 = vpack.c.b16 %v994, %v993
          %v1085 = vpack.c.b16 %v996, %v995
          %v1086 = vpack.c.b16 %v998, %v997
          %v1087 = vpack.c.b16 %v1000, %v999
          %v1088 = vpack.c.b16 %v1002, %v1001
          %v1089 = vpack.c.b16 %v1004, %v1003
          %v1090 = vpack.c.b16 %v1006, %v1005
          %v1091 = vpack.c.b16 %v1008, %v1007
          %v1092 = vpack.c.b16 %v1010, %v1009
          %v1093 = vpack.c.b16 %v1012, %v1011
          %v1094 = vpack.c.b16 %v1014, %v1013
          %v1095 = vpack.c.b16 %v1016, %v1015
          %v1096 = vpack.c.b16 %v1018, %v1017
          %v1097 = vpack.c.b16 %v1020, %v1019
          %v1098 = vpack.c.b16 %v1022, %v1021
          %v1099 = vpack.c.b16 %v1024, %v1023
          %v1100 = vpack.c.b16 %v1026, %v1025
          %v1101 = vpack.c.b16 %v1028, %v1027
          %v1102 = vpack.c.b16 %v1030, %v1029
          %v1103 = vpack.c.b16 %v1032, %v1031
          %v1104 = vpack.c.b16 %v1034, %v1033
          %v1105 = vpack.c.b16 %v1036, %v1035
          %v1106 = vpack.c.b16 %v1038, %v1037
          %v1107 = vpack.c.b16 %v1040, %v1039
          %v1108 = vpack.c.b16 %v1042, %v1041
          %v1109 = vpack.c.b16 %v1044, %v1043
          %v1110 = vpack.c.b16 %v1046, %v1045
          %v1111 = vpack.c.b16 %v1048, %v1047
          %v1112 = vpack.c.b16 %v1050, %v1049
          %v1113 = vpack.c.b16 %v1052, %v1051
          %v1114 = vpack.c.b16 %v1054, %v1053
          %v1115 = vpack.c.b16 %v1056, %v1055
          %v1116 = vpack.c.b16 %v1058, %v1057
          %v1117 = vpack.c.b16 %v1060, %v1059
          %v1118 = vpack.c.b16 %v1062, %v1061
          %v1119 = vpack.c.b16 %v1064, %v1063
          %v1120 = vpack.c.b16 %v1066, %v1065
          %v1121 = vpack.c.b16 %v1068, %v1067
          %v1122 = vpack.c.b16 %v1070, %v1069
          %v1123 = vpack.c.b16 %v1072, %v1071
          %v1124 = vpack.c.b16 %v1074, %v1073
          %v1125 = vpack.c.b16 %v1076, %v1075
          %v1126 = vpack.c.b16 %v1078, %v1077
          %1175 = vmatprep.subr.bf16.mxu0 0
          %1176 = vmatpush1.bf16.msra.mxu0 %v1086
          %1177 = vmatprep.subr.bf16.mxu0 0
          %1178 = vmatpush1.bf16.msra.mxu0 %v1085
          %1179 = vmatprep.subr.bf16.mxu0 0
          %1180 = vmatpush1.bf16.msra.mxu0 %v1084
          %1181 = vmatprep.subr.bf16.mxu0 0
          %1182 = vmatpush1.bf16.msra.mxu0 %v1083
          %1183 = vmatprep.subr.bf16.mxu0 0
          %1184 = vmatpush1.bf16.msra.mxu0 %v1082
          %1185 = vmatprep.subr.bf16.mxu0 0
          %1186 = vmatpush1.bf16.msra.mxu0 %v1081
          %1187 = vmatprep.subr.bf16.mxu0 0
          %1188 = vmatpush1.bf16.msra.mxu0 %v1080
          %1189 = vmatprep.subr.bf16.mxu0 0
          %1190 = vmatpush1.bf16.msra.mxu0 %v1079
          %1191 = vmatprep.subr.bf16.mxu0 0
          %1192 = vmatpush2.bf16.msra.mxu0 %v1094
          %1193 = vmatprep.subr.bf16.mxu0 0
          %1194 = vmatpush2.bf16.msra.mxu0 %v1093
          %1195 = vmatprep.subr.bf16.mxu0 0
          %1196 = vmatpush2.bf16.msra.mxu0 %v1092
          %1197 = vmatprep.subr.bf16.mxu0 0
          %1198 = vmatpush2.bf16.msra.mxu0 %v1091
          %1199 = vmatprep.subr.bf16.mxu0 0
          %1200 = vmatpush2.bf16.msra.mxu0 %v1090
          %1201 = vmatprep.subr.bf16.mxu0 0
          %1202 = vmatpush2.bf16.msra.mxu0 %v1089
          %1203 = vmatprep.subr.bf16.mxu0 0
          %1204 = vmatpush2.bf16.msra.mxu0 %v1088
          %1205 = vmatprep.subr.bf16.mxu0 0
          %1206 = vmatpush2.bf16.msra.mxu0 %v1087
          %1207 = vmatprep.mubr.bf16.mxu0 %v779
          %1208 = vmatmul.mubr.bf16.gmra.mxu0 %v778
          %v1209 = vpop.f32.mrf.mxu0
          %v1210 = vadd.f32 %v885, %v1209
          %v1211 = vpop.f32.mrf.mxu0
          %v1212 = vpop.f32.mrf.mxu0
          %v1213 = vpop.f32.mrf.mxu0
          %1214 = vdwg.mxu0
          %1215 = vmatprep.subr.bf16.mxu0 0
          %1216 = vmatpush1.bf16.msra.mxu0 %v1102
          %1217 = vmatprep.subr.bf16.mxu0 0
          %1218 = vmatpush1.bf16.msra.mxu0 %v1101
          %1219 = vmatprep.subr.bf16.mxu0 0
          %1220 = vmatpush1.bf16.msra.mxu0 %v1100
          %1221 = vmatprep.subr.bf16.mxu0 0
          %1222 = vmatpush1.bf16.msra.mxu0 %v1099
          %1223 = vmatprep.subr.bf16.mxu0 0
          %1224 = vmatpush1.bf16.msra.mxu0 %v1098
          %1225 = vmatprep.subr.bf16.mxu0 0
          %1226 = vmatpush1.bf16.msra.mxu0 %v1097
          %1227 = vmatprep.subr.bf16.mxu0 0
          %1228 = vmatpush1.bf16.msra.mxu0 %v1096
          %1229 = vmatprep.subr.bf16.mxu0 0
          %1230 = vmatpush1.bf16.msra.mxu0 %v1095
          %1231 = vmatprep.subr.bf16.mxu0 0
          %1232 = vmatpush2.bf16.msra.mxu0 %v1110
          %1233 = vmatprep.subr.bf16.mxu0 0
          %1234 = vmatpush2.bf16.msra.mxu0 %v1109
          %1235 = vmatprep.subr.bf16.mxu0 0
          %1236 = vmatpush2.bf16.msra.mxu0 %v1108
          %1237 = vmatprep.subr.bf16.mxu0 0
          %1238 = vmatpush2.bf16.msra.mxu0 %v1107
          %1239 = vmatprep.subr.bf16.mxu0 0
          %1240 = vmatpush2.bf16.msra.mxu0 %v1106
          %1241 = vmatprep.subr.bf16.mxu0 0
          %1242 = vmatpush2.bf16.msra.mxu0 %v1105
          %1243 = vmatprep.subr.bf16.mxu0 0
          %1244 = vmatpush2.bf16.msra.mxu0 %v1104
          %1245 = vmatprep.subr.bf16.mxu0 0
          %1246 = vmatpush2.bf16.msra.mxu0 %v1103
          %1247 = vmatprep.mubr.bf16.mxu0 %v781
          %1248 = vmatmul.mubr.bf16.gmra.mxu0 %v780
          %v1249 = vpop.f32.mrf.mxu0
          %v1250 = vadd.f32 %v1210, %v1249
          %v1251 = vpop.f32.mrf.mxu0
          %v1252 = vpop.f32.mrf.mxu0
          %v1253 = vpop.f32.mrf.mxu0
          %1254 = vdwg.mxu0
          %1255 = vmatprep.subr.bf16.mxu0 0
          %1256 = vmatpush1.bf16.msra.mxu0 %v1118
          %1257 = vmatprep.subr.bf16.mxu0 0
          %1258 = vmatpush1.bf16.msra.mxu0 %v1117
          %1259 = vmatprep.subr.bf16.mxu0 0
          %1260 = vmatpush1.bf16.msra.mxu0 %v1116
          %1261 = vmatprep.subr.bf16.mxu0 0
          %1262 = vmatpush1.bf16.msra.mxu0 %v1115
          %1263 = vmatprep.subr.bf16.mxu0 0
          %1264 = vmatpush1.bf16.msra.mxu0 %v1114
          %1265 = vmatprep.subr.bf16.mxu0 0
          %1266 = vmatpush1.bf16.msra.mxu0 %v1113
          %1267 = vmatprep.subr.bf16.mxu0 0
          %1268 = vmatpush1.bf16.msra.mxu0 %v1112
          %1269 = vmatprep.subr.bf16.mxu0 0
          %1270 = vmatpush1.bf16.msra.mxu0 %v1111
          %1271 = vmatprep.subr.bf16.mxu0 0
          %1272 = vmatpush2.bf16.msra.mxu0 %v1126
          %1273 = vmatprep.subr.bf16.mxu0 0
          %1274 = vmatpush2.bf16.msra.mxu0 %v1125
          %1275 = vmatprep.subr.bf16.mxu0 0
          %1276 = vmatpush2.bf16.msra.mxu0 %v1124
          %1277 = vmatprep.subr.bf16.mxu0 0
          %1278 = vmatpush2.bf16.msra.mxu0 %v1123
          %1279 = vmatprep.subr.bf16.mxu0 0
          %1280 = vmatpush2.bf16.msra.mxu0 %v1122
          %1281 = vmatprep.subr.bf16.mxu0 0
          %1282 = vmatpush2.bf16.msra.mxu0 %v1121
          %1283 = vmatprep.subr.bf16.mxu0 0
          %1284 = vmatpush2.bf16.msra.mxu0 %v1120
          %1285 = vmatprep.subr.bf16.mxu0 0
          %1286 = vmatpush2.bf16.msra.mxu0 %v1119
          %1287 = vmatprep.mubr.bf16.mxu0 %v783
          %1288 = vmatmul.mubr.bf16.gmra.mxu0 %v782
          %v1289 = vpop.f32.mrf.mxu0
          %v1290 = vadd.f32 %v1250, %v1289
          %v1291 = vpop.f32.mrf.mxu0
          %v1292 = vpop.f32.mrf.mxu0
          %v1293 = vpop.f32.mrf.mxu0
          %1294 = vdwg.mxu0
          %v1295 = vld [vmem:[%s4] sm:$0x1f]
          %v1296 = vld [vmem:[%s3] sm:$0x1]
          %v1297 = vadd.f32 %v1296, %v1295
          %1298 = vst [vmem:[#allocation2] sm:$0x1] %v1297
          %v1300 = vrot.slane %v1295, 1
          %v1302 = vadd.f32 %v1290, %v1300
          %1303 = vst [vmem:[#allocation2 + $0x1] sm:$0xf] %v1302
          %1304 = vst [vmem:[#allocation2 + $0x5] sm:$0x1] %v1297
          %v1305 = vrot.slane %v1295, 5
          %v1307 = vadd.f32 %v1290, %v1305
          %1308 = vst [vmem:[#allocation2 + $0x2] sm:$0xf0] %v1307
        $region100: #{model_forward.1} parent=95 // pred_fallthru
          _
        %v1309 = vld [vmem:[#allocation2] sm:$0xff]
        %v1310 = vld [vmem:[#allocation2 + $0x8] sm:$0x3]
        %v1311 = vld [vmem:[%s723] sm:$0x1]
        %v1312 = vld [vmem:[%s726] sm:$0x1]
        %1313 = vadd.xlane.f32.xlu0 %v1309
        %v1314 = vpop.xlane.xlu0 %1313
        %vm1315 = vcmask 1041408
        %v1316 = vsel %vm1315, %v1310, 0.0
        %1317 = vadd.xlane.f32.xlu0 %v1316
        %v1318 = vpop.xlane.xlu0 %1317
        %v1319 = vrcp.pop 128.0
        %v1320 = vmul.f32 %v1314, %v1319
        %v1321 = vmul.f32 %v1318, %v1319
        %v1322 = vsub.f32 %v1309, %v1320
        %v1323 = vsub.f32 %v1310, %v1321
        %v1324 = vmul.f32 %v1322, %v1322
        %v1325 = vmul.f32 %v1323, %v1323
        %1326 = vadd.xlane.f32.xlu0 %v1324
        %v1327 = vpop.xlane.xlu0 %1326
        %v1328 = vsel %vm1315, %v1325, 0.0
        %1329 = vadd.xlane.f32.xlu0 %v1328
        %v1330 = vpop.xlane.xlu0 %1329
        %v1331 = vmul.f32 %v1327, %v1319
        %v1332 = vmul.f32 %v1330, %v1319
        %v1333 = vadd.f32 %v1331, 1e-06
        %v1334 = vadd.f32 %v1332, 1e-06
        %v1335 = vrsqrt.pop %v1333
        %v1336 = vrsqrt.pop %v1334
        %v1337 = vmul.f32 %v1322, %v1335
        %v1338 = vmul.f32 %v1323, %v1336
        %v1340 = vlaneseq
        %v1341 = vshrl.u32 %v1340, 7
        %v1342 = vsub.s32 0, %v1341
        %v1343 = vrot.slane %v1311, %v1342
        %v1345 = vmul.f32 %v1337, %v1343
        %v1346 = vmul.f32 %v1338, %v1343
        %v1348 = vlaneseq
        %v1349 = vshrl.u32 %v1348, 7
        %v1350 = vsub.s32 0, %v1349
        %v1351 = vrot.slane %v1312, %v1350
        %v1353 = vadd.f32 %v1345, %v1351
        %v1354 = vadd.f32 %v1346, %v1351
        %v1355 = vpack.c.bf16 %v1354, %v1353
        %v1356 = vld [vmem:[%s731] sm:$0xff]
        %v1357 = vld [vmem:[%s731 + $0x8] sm:$0xf]
        %v1358 = vld [vmem:[%s731 + $0xc] sm:$0xff]
        %v1359 = vld [vmem:[%s731 + $0x14] sm:$0xf]
        %v1360 = vld [vmem:[%s731 + $0x18] sm:$0xff]
        %v1361 = vld [vmem:[%s731 + $0x20] sm:$0xf]
        %v1362 = vld [vmem:[%s731 + $0x24] sm:$0xff]
        %v1363 = vld [vmem:[%s731 + $0x2c] sm:$0xf]
        %v1364 = vld [vmem:[%s731 + $0x30] sm:$0xff]
        %v1365 = vld [vmem:[%s731 + $0x38] sm:$0xf]
        %v1366 = vld [vmem:[%s731 + $0x3c] sm:$0xff]
        %v1367 = vld [vmem:[%s731 + $0x44] sm:$0xf]
        %v1368 = vld [vmem:[%s731 + $0x48] sm:$0xff]
        %v1369 = vld [vmem:[%s731 + $0x50] sm:$0xf]
        %v1370 = vld [vmem:[%s731 + $0x54] sm:$0xff]
        %v1371 = vld [vmem:[%s731 + $0x5c] sm:$0xf]
        %v1372 = vld [vmem:[%s731 + $0x60] sm:$0xff]
        %v1373 = vld [vmem:[%s731 + $0x68] sm:$0xf]
        %v1374 = vld [vmem:[%s731 + $0x6c] sm:$0xff]
        %v1375 = vld [vmem:[%s731 + $0x74] sm:$0xf]
        %v1376 = vld [vmem:[%s731 + $0x78] sm:$0xff]
        %v1377 = vld [vmem:[%s731 + $0x80] sm:$0xf]
        %v1378 = vld [vmem:[%s731 + $0x84] sm:$0xff]
        %v1379 = vld [vmem:[%s731 + $0x8c] sm:$0xf]
        %v1380 = vld [vmem:[%s731 + $0x90] sm:$0xff]
        %v1381 = vld [vmem:[%s731 + $0x98] sm:$0xf]
        %v1382 = vld [vmem:[%s731 + $0x9c] sm:$0xff]
        %v1383 = vld [vmem:[%s731 + $0xa4] sm:$0xf]
        %v1384 = vld [vmem:[%s731 + $0xa8] sm:$0xff]
        %v1385 = vld [vmem:[%s731 + $0xb0] sm:$0xf]
        %v1386 = vld [vmem:[%s731 + $0xb4] sm:$0xff]
        %v1387 = vld [vmem:[%s731 + $0xbc] sm:$0xf]
        %v1388 = vld [vmem:[%s735] sm:$0x7]
        %v1390 = vlaneseq
        %v1391 = vshrl.u32 %v1390, 7
        %v1392 = vsub.s32 0, %v1391
        %v1393 = vrot.slane %v1388, %v1392
        %v1394 = vlaneseq
        %v1395 = vshrl.u32 %v1394, 7
        %v1396 = vsub.s32 1, %v1395
        %v1397 = vrot.slane %v1388, %v1396
        %v1398 = vlaneseq
        %v1399 = vshrl.u32 %v1398, 7
        %v1400 = vsub.s32 2, %v1399
        %v1401 = vrot.slane %v1388, %v1400
        %v1437 = vunpack.c.l.b16 %v1356
        %v1438 = vunpack.c.h.b16 %v1356
        %v1439 = vunpack.c.l.b16 %v1357
        %v1440 = vunpack.c.l.b16 %v1358
        %v1441 = vunpack.c.h.b16 %v1358
        %v1442 = vunpack.c.l.b16 %v1359
        %v1443 = vunpack.c.l.b16 %v1360
        %v1444 = vunpack.c.h.b16 %v1360
        %v1445 = vunpack.c.l.b16 %v1361
        %v1446 = vunpack.c.l.b16 %v1362
        %v1447 = vunpack.c.h.b16 %v1362
        %v1448 = vunpack.c.l.b16 %v1363
        %v1449 = vunpack.c.l.b16 %v1364
        %v1450 = vunpack.c.h.b16 %v1364
        %v1451 = vunpack.c.l.b16 %v1365
        %v1452 = vunpack.c.l.b16 %v1366
        %v1453 = vunpack.c.h.b16 %v1366
        %v1454 = vunpack.c.l.b16 %v1367
        %v1455 = vunpack.c.l.b16 %v1368
        %v1456 = vunpack.c.h.b16 %v1368
        %v1457 = vunpack.c.l.b16 %v1369
        %v1458 = vunpack.c.l.b16 %v1370
        %v1459 = vunpack.c.h.b16 %v1370
        %v1460 = vunpack.c.l.b16 %v1371
        %v1461 = vunpack.c.l.b16 %v1372
        %v1462 = vunpack.c.h.b16 %v1372
        %v1463 = vunpack.c.l.b16 %v1373
        %v1464 = vunpack.c.l.b16 %v1374
        %v1465 = vunpack.c.h.b16 %v1374
        %v1466 = vunpack.c.l.b16 %v1375
        %v1467 = vunpack.c.l.b16 %v1376
        %v1468 = vunpack.c.h.b16 %v1376
        %v1469 = vunpack.c.l.b16 %v1377
        %v1470 = vunpack.c.l.b16 %v1378
        %v1471 = vunpack.c.h.b16 %v1378
        %v1472 = vunpack.c.l.b16 %v1379
        %v1473 = vunpack.c.l.b16 %v1380
        %v1474 = vunpack.c.h.b16 %v1380
        %v1475 = vunpack.c.l.b16 %v1381
        %v1476 = vunpack.c.l.b16 %v1382
        %v1477 = vunpack.c.h.b16 %v1382
        %v1478 = vunpack.c.l.b16 %v1383
        %v1479 = vunpack.c.l.b16 %v1384
        %v1480 = vunpack.c.h.b16 %v1384
        %v1481 = vunpack.c.l.b16 %v1385
        %v1482 = vunpack.c.l.b16 %v1386
        %v1483 = vunpack.c.h.b16 %v1386
        %v1484 = vunpack.c.l.b16 %v1387
        %v1485 = vpack.c.b16 %v1440, %v1437
        %v1486 = vpack.c.b16 %v1441, %v1438
        %v1487 = vpack.c.b16 %v1442, %v1439
        %v1488 = vpack.c.b16 %v1446, %v1443
        %v1489 = vpack.c.b16 %v1447, %v1444
        %v1490 = vpack.c.b16 %v1448, %v1445
        %v1491 = vpack.c.b16 %v1452, %v1449
        %v1492 = vpack.c.b16 %v1453, %v1450
        %v1493 = vpack.c.b16 %v1454, %v1451
        %v1494 = vpack.c.b16 %v1458, %v1455
        %v1495 = vpack.c.b16 %v1459, %v1456
        %v1496 = vpack.c.b16 %v1460, %v1457
        %v1497 = vpack.c.b16 %v1464, %v1461
        %v1498 = vpack.c.b16 %v1465, %v1462
        %v1499 = vpack.c.b16 %v1466, %v1463
        %v1500 = vpack.c.b16 %v1470, %v1467
        %v1501 = vpack.c.b16 %v1471, %v1468
        %v1502 = vpack.c.b16 %v1472, %v1469
        %v1503 = vpack.c.b16 %v1476, %v1473
        %v1504 = vpack.c.b16 %v1477, %v1474
        %v1505 = vpack.c.b16 %v1478, %v1475
        %v1506 = vpack.c.b16 %v1482, %v1479
        %v1507 = vpack.c.b16 %v1483, %v1480
        %v1508 = vpack.c.b16 %v1484, %v1481
        %1533 = vmatprep.subr.bf16.mxu0 %v1507
        %1534 = vmatpush1.bf16.msra.mxu0 %v1506
        %1535 = vmatprep.subr.bf16.mxu0 %v1504
        %1536 = vmatpush1.bf16.msra.mxu0 %v1503
        %1537 = vmatprep.subr.bf16.mxu0 %v1501
        %1538 = vmatpush1.bf16.msra.mxu0 %v1500
        %1539 = vmatprep.subr.bf16.mxu0 %v1498
        %1540 = vmatpush1.bf16.msra.mxu0 %v1497
        %1541 = vmatprep.subr.bf16.mxu0 %v1495
        %1542 = vmatpush1.bf16.msra.mxu0 %v1494
        %1543 = vmatprep.subr.bf16.mxu0 %v1492
        %1544 = vmatpush1.bf16.msra.mxu0 %v1491
        %1545 = vmatprep.subr.bf16.mxu0 %v1489
        %1546 = vmatpush1.bf16.msra.mxu0 %v1488
        %1547 = vmatprep.subr.bf16.mxu0 %v1486
        %1548 = vmatpush1.bf16.msra.mxu0 %v1485
        %1549 = vmatprep.subr.bf16.mxu0 0
        %1550 = vmatpush2.bf16.msra.mxu0 0
        %1551 = vmatprep.subr.bf16.mxu0 0
        %1552 = vmatpush2.bf16.msra.mxu0 0
        %1553 = vmatprep.subr.bf16.mxu0 0
        %1554 = vmatpush2.bf16.msra.mxu0 0
        %1555 = vmatprep.subr.bf16.mxu0 0
        %1556 = vmatpush2.bf16.msra.mxu0 0
        %1557 = vmatprep.subr.bf16.mxu0 0
        %1558 = vmatpush2.bf16.msra.mxu0 0
        %1559 = vmatprep.subr.bf16.mxu0 0
        %1560 = vmatpush2.bf16.msra.mxu0 0
        %1561 = vmatprep.subr.bf16.mxu0 0
        %1562 = vmatpush2.bf16.msra.mxu0 0
        %1563 = vmatprep.subr.bf16.mxu0 0
        %1564 = vmatpush2.bf16.msra.mxu0 0
        %1565 = vmatprep.mubr.bf16.mxu0 0
        %1566 = vmatmul.mubr.bf16.gmra.mxu0 %v1355
        %v1567 = vpop.f32.mrf.mxu0
        %v1568 = vadd.f32 %v1393, %v1567
        %v1569 = vpop.f32.mrf.mxu0
        %v1570 = vadd.f32 %v1397, %v1569
        %v1571 = vpop.f32.mrf.mxu0
        %v1572 = vadd.f32 %v1393, %v1571
        %v1573 = vpop.f32.mrf.mxu0
        %v1574 = vadd.f32 %v1397, %v1573
        %1575 = vdwg.mxu0
        %1576 = vmatprep.subr.bf16.mxu0 0
        %1577 = vmatpush1.bf16.msra.mxu0 %v1508
        %1578 = vmatprep.subr.bf16.mxu0 0
        %1579 = vmatpush1.bf16.msra.mxu0 %v1505
        %1580 = vmatprep.subr.bf16.mxu0 0
        %1581 = vmatpush1.bf16.msra.mxu0 %v1502
        %1582 = vmatprep.subr.bf16.mxu0 0
        %1583 = vmatpush1.bf16.msra.mxu0 %v1499
        %1584 = vmatprep.subr.bf16.mxu0 0
        %1585 = vmatpush1.bf16.msra.mxu0 %v1496
        %1586 = vmatprep.subr.bf16.mxu0 0
        %1587 = vmatpush1.bf16.msra.mxu0 %v1493
        %1588 = vmatprep.subr.bf16.mxu0 0
        %1589 = vmatpush1.bf16.msra.mxu0 %v1490
        %1590 = vmatprep.subr.bf16.mxu0 0
        %1591 = vmatpush1.bf16.msra.mxu0 %v1487
        %1592 = vmatprep.subr.bf16.mxu0 0
        %1593 = vmatpush2.bf16.msra.mxu0 0
        %1594 = vmatprep.subr.bf16.mxu0 0
        %1595 = vmatpush2.bf16.msra.mxu0 0
        %1596 = vmatprep.subr.bf16.mxu0 0
        %1597 = vmatpush2.bf16.msra.mxu0 0
        %1598 = vmatprep.subr.bf16.mxu0 0
        %1599 = vmatpush2.bf16.msra.mxu0 0
        %1600 = vmatprep.subr.bf16.mxu0 0
        %1601 = vmatpush2.bf16.msra.mxu0 0
        %1602 = vmatprep.subr.bf16.mxu0 0
        %1603 = vmatpush2.bf16.msra.mxu0 0
        %1604 = vmatprep.subr.bf16.mxu0 0
        %1605 = vmatpush2.bf16.msra.mxu0 0
        %1606 = vmatprep.subr.bf16.mxu0 0
        %1607 = vmatpush2.bf16.msra.mxu0 0
        %1608 = vmatprep.mubr.bf16.mxu0 0
        %1609 = vmatmul.mubr.bf16.gmra.mxu0 %v1355
        %v1610 = vpop.f32.mrf.mxu0
        %v1611 = vadd.f32 %v1401, %v1610
        %v1612 = vpop.f32.mrf.mxu0
        %v1613 = vpop.f32.mrf.mxu0
        %v1614 = vadd.f32 %v1401, %v1613
        %v1615 = vpop.f32.mrf.mxu0
        %1616 = vdwg.mxu0
        %v1617 = vpack.c.bf16 %v1568, %v1568
        %v1618 = vpack.c.bf16 %v1570, %v1570
        %v1619 = vpack.c.bf16 %v1611, %v1611
        %vm1620 = vcmask 261120
        %v1622 = vsel %vm1620, %v1617, 0
        %v1625 = vsel %vm1620, %v1618, 0
        %1627 = vmatprep.subr.bf16.mxu0 0
        %1628 = vmatpush1.bf16.xpose.msra.mxu0 0
        %1629 = vmatprep.subr.bf16.mxu0 0
        %1630 = vmatpush1.bf16.xpose.msra.mxu0 0
        %1631 = vmatprep.subr.bf16.mxu0 0
        %1632 = vmatpush1.bf16.xpose.msra.mxu0 0
        %1633 = vmatprep.subr.bf16.mxu0 0
        %1634 = vmatpush1.bf16.xpose.msra.mxu0 0
        %1635 = vmatprep.subr.bf16.mxu0 0
        %1636 = vmatpush1.bf16.xpose.msra.mxu0 0
        %1637 = vmatprep.subr.bf16.mxu0 0
        %1638 = vmatpush1.bf16.xpose.msra.mxu0 0
        %1639 = vmatprep.subr.bf16.mxu0 0
        %1640 = vmatpush1.bf16.xpose.msra.mxu0 0
        %1641 = vmatprep.subr.bf16.mxu0 0
        %1642 = vmatpush1.bf16.xpose.msra.mxu0 %v1625
        %1643 = vmatprep.subr.bf16.mxu0 0
        %1644 = vmatpush2.bf16.xpose.msra.mxu0 0
        %1645 = vmatprep.subr.bf16.mxu0 0
        %1646 = vmatpush2.bf16.xpose.msra.mxu0 0
        %1647 = vmatprep.subr.bf16.mxu0 0
        %1648 = vmatpush2.bf16.xpose.msra.mxu0 0
        %1649 = vmatprep.subr.bf16.mxu0 0
        %1650 = vmatpush2.bf16.xpose.msra.mxu0 0
        %1651 = vmatprep.subr.bf16.mxu0 0
        %1652 = vmatpush2.bf16.xpose.msra.mxu0 0
        %1653 = vmatprep.subr.bf16.mxu0 0
        %1654 = vmatpush2.bf16.xpose.msra.mxu0 0
        %1655 = vmatprep.subr.bf16.mxu0 0
        %1656 = vmatpush2.bf16.xpose.msra.mxu0 0
        %1657 = vmatprep.subr.bf16.mxu0 0
        %1658 = vmatpush2.bf16.xpose.msra.mxu0 0
        %1659 = vmatprep.mubr.bf16.mxu0 0
        %1660 = vmatmul.mubr.bf16.gmra.mxu0 %v1622
        %v1661 = vpop.f32.mrf.mxu0
        %v1662 = vadd.f32 0.0, %v1661
        %v1663 = vpop.f32.mrf.mxu0
        %v1664 = vpop.f32.mrf.mxu0
        %v1665 = vpop.f32.mrf.mxu0
        %1666 = vdwg.mxu0
        %vm1667 = vcmask 36864
        %v1668 = vsel %vm1667, %v1662, -inf
        %1669 = vmax.xlane.f32.xlu0 %v1668
        %v1670 = vpop.xlane.xlu0 %1669
        %v1671 = vsub.f32 %v1662, %v1670
        %v1672 = vmul.f32 %v1671, 1.442695
        %v1673 = vpow.pop %v1672
        %v1674 = vsel %vm1667, %v1673, 0.0
        %1675 = vadd.xlane.f32.xlu0 %v1674
        %v1676 = vpop.xlane.xlu0 %1675
        %v1677 = vrcp.pop %v1676
        %v1678 = vmul.f32 %v1673, %v1677
        %v1679 = vpack.c.bf16 %v1678, %v1678
        %vm1680 = vcmask 39936
        %v1682 = vsel %vm1680, %v1679, 0
        %vm1684 = vcmask 1042432
        %v1685 = vsel %vm1315, 4294967295, 65535
        %v1686 = vsel %vm1684, %v1685, 0
        %v1688 = vand.u32 %v1619, %v1686
        %1690 = vmatprep.subr.bf16.mxu0 0
        %1691 = vmatpush1.bf16.msra.mxu0 0
        %1692 = vmatprep.subr.bf16.mxu0 0
        %1693 = vmatpush1.bf16.msra.mxu0 0
        %1694 = vmatprep.subr.bf16.mxu0 0
        %1695 = vmatpush1.bf16.msra.mxu0 0
        %1696 = vmatprep.subr.bf16.mxu0 0
        %1697 = vmatpush1.bf16.msra.mxu0 0
        %1698 = vmatprep.subr.bf16.mxu0 0
        %1699 = vmatpush1.bf16.msra.mxu0 0
        %1700 = vmatprep.subr.bf16.mxu0 0
        %1701 = vmatpush1.bf16.msra.mxu0 0
        %1702 = vmatprep.subr.bf16.mxu0 0
        %1703 = vmatpush1.bf16.msra.mxu0 0
        %1704 = vmatprep.subr.bf16.mxu0 0
        %1705 = vmatpush1.bf16.msra.mxu0 %v1688
        %1706 = vmatprep.subr.bf16.mxu0 0
        %1707 = vmatpush2.bf16.msra.mxu0 0
        %1708 = vmatprep.subr.bf16.mxu0 0
        %1709 = vmatpush2.bf16.msra.mxu0 0
        %1710 = vmatprep.subr.bf16.mxu0 0
        %1711 = vmatpush2.bf16.msra.mxu0 0
        %1712 = vmatprep.subr.bf16.mxu0 0
        %1713 = vmatpush2.bf16.msra.mxu0 0
        %1714 = vmatprep.subr.bf16.mxu0 0
        %1715 = vmatpush2.bf16.msra.mxu0 0
        %1716 = vmatprep.subr.bf16.mxu0 0
        %1717 = vmatpush2.bf16.msra.mxu0 0
        %1718 = vmatprep.subr.bf16.mxu0 0
        %1719 = vmatpush2.bf16.msra.mxu0 0
        %1720 = vmatprep.subr.bf16.mxu0 0
        %1721 = vmatpush2.bf16.msra.mxu0 0
        %1722 = vmatprep.mubr.bf16.mxu0 0
        %1723 = vmatmul.mubr.bf16.gmra.mxu0 %v1682
        %v1724 = vpop.f32.mrf.mxu0
        %v1725 = vadd.f32 0.0, %v1724
        %v1726 = vpop.f32.mrf.mxu0
        %v1727 = vpop.f32.mrf.mxu0
        %v1728 = vpop.f32.mrf.mxu0
        %1729 = vdwg.mxu0
        %1731 = vrot.lane.b32.xlu0 %v1617, 96
        %v1732 = vpop.permute.xlu0 %1731
        %1734 = vrot.lane.b32.xlu0 %v1618, 96
        %v1735 = vpop.permute.xlu0 %1734
        %v1737 = vsel %vm1620, %v1732, 0
        %v1740 = vsel %vm1620, %v1735, 0
        %1742 = vmatprep.subr.bf16.mxu0 0
        %1743 = vmatpush1.bf16.xpose.msra.mxu0 0
        %1744 = vmatprep.subr.bf16.mxu0 0
        %1745 = vmatpush1.bf16.xpose.msra.mxu0 0
        %1746 = vmatprep.subr.bf16.mxu0 0
        %1747 = vmatpush1.bf16.xpose.msra.mxu0 0
        %1748 = vmatprep.subr.bf16.mxu0 0
        %1749 = vmatpush1.bf16.xpose.msra.mxu0 0
        %1750 = vmatprep.subr.bf16.mxu0 0
        %1751 = vmatpush1.bf16.xpose.msra.mxu0 0
        %1752 = vmatprep.subr.bf16.mxu0 0
        %1753 = vmatpush1.bf16.xpose.msra.mxu0 0
        %1754 = vmatprep.subr.bf16.mxu0 0
        %1755 = vmatpush1.bf16.xpose.msra.mxu0 0
        %1756 = vmatprep.subr.bf16.mxu0 0
        %1757 = vmatpush1.bf16.xpose.msra.mxu0 %v1740
        %1758 = vmatprep.subr.bf16.mxu0 0
        %1759 = vmatpush2.bf16.xpose.msra.mxu0 0
        %1760 = vmatprep.subr.bf16.mxu0 0
        %1761 = vmatpush2.bf16.xpose.msra.mxu0 0
        %1762 = vmatprep.subr.bf16.mxu0 0
        %1763 = vmatpush2.bf16.xpose.msra.mxu0 0
        %1764 = vmatprep.subr.bf16.mxu0 0
        %1765 = vmatpush2.bf16.xpose.msra.mxu0 0
        %1766 = vmatprep.subr.bf16.mxu0 0
        %1767 = vmatpush2.bf16.xpose.msra.mxu0 0
        %1768 = vmatprep.subr.bf16.mxu0 0
        %1769 = vmatpush2.bf16.xpose.msra.mxu0 0
        %1770 = vmatprep.subr.bf16.mxu0 0
        %1771 = vmatpush2.bf16.xpose.msra.mxu0 0
        %1772 = vmatprep.subr.bf16.mxu0 0
        %1773 = vmatpush2.bf16.xpose.msra.mxu0 0
        %1774 = vmatprep.mubr.bf16.mxu0 0
        %1775 = vmatmul.mubr.bf16.gmra.mxu0 %v1737
        %v1776 = vpop.f32.mrf.mxu0
        %v1777 = vadd.f32 0.0, %v1776
        %v1778 = vpop.f32.mrf.mxu0
        %v1779 = vpop.f32.mrf.mxu0
        %v1780 = vpop.f32.mrf.mxu0
        %1781 = vdwg.mxu0
        %v1782 = vsel %vm1667, %v1777, -inf
        %1783 = vmax.xlane.f32.xlu0 %v1782
        %v1784 = vpop.xlane.xlu0 %1783
        %v1785 = vsub.f32 %v1777, %v1784
        %v1786 = vmul.f32 %v1785, 1.442695
        %v1787 = vpow.pop %v1786
        %v1788 = vsel %vm1667, %v1787, 0.0
        %1789 = vadd.xlane.f32.xlu0 %v1788
        %v1790 = vpop.xlane.xlu0 %1789
        %v1791 = vrcp.pop %v1790
        %v1792 = vmul.f32 %v1787, %v1791
        %v1793 = vpack.c.bf16 %v1792, %v1792
        %1795 = vrot.lane.b32.xlu0 %v1619, 96
        %v1796 = vpop.permute.xlu0 %1795
        %v1798 = vsel %vm1680, %v1793, 0
        %v1801 = vand.u32 %v1796, %v1686
        %1803 = vmatprep.subr.bf16.mxu0 0
        %1804 = vmatpush1.bf16.msra.mxu0 0
        %1805 = vmatprep.subr.bf16.mxu0 0
        %1806 = vmatpush1.bf16.msra.mxu0 0
        %1807 = vmatprep.subr.bf16.mxu0 0
        %1808 = vmatpush1.bf16.msra.mxu0 0
        %1809 = vmatprep.subr.bf16.mxu0 0
        %1810 = vmatpush1.bf16.msra.mxu0 0
        %1811 = vmatprep.subr.bf16.mxu0 0
        %1812 = vmatpush1.bf16.msra.mxu0 0
        %1813 = vmatprep.subr.bf16.mxu0 0
        %1814 = vmatpush1.bf16.msra.mxu0 0
        %1815 = vmatprep.subr.bf16.mxu0 0
        %1816 = vmatpush1.bf16.msra.mxu0 0
        %1817 = vmatprep.subr.bf16.mxu0 0
        %1818 = vmatpush1.bf16.msra.mxu0 %v1801
        %1819 = vmatprep.subr.bf16.mxu0 0
        %1820 = vmatpush2.bf16.msra.mxu0 0
        %1821 = vmatprep.subr.bf16.mxu0 0
        %1822 = vmatpush2.bf16.msra.mxu0 0
        %1823 = vmatprep.subr.bf16.mxu0 0
        %1824 = vmatpush2.bf16.msra.mxu0 0
        %1825 = vmatprep.subr.bf16.mxu0 0
        %1826 = vmatpush2.bf16.msra.mxu0 0
        %1827 = vmatprep.subr.bf16.mxu0 0
        %1828 = vmatpush2.bf16.msra.mxu0 0
        %1829 = vmatprep.subr.bf16.mxu0 0
        %1830 = vmatpush2.bf16.msra.mxu0 0
        %1831 = vmatprep.subr.bf16.mxu0 0
        %1832 = vmatpush2.bf16.msra.mxu0 0
        %1833 = vmatprep.subr.bf16.mxu0 0
        %1834 = vmatpush2.bf16.msra.mxu0 0
        %1835 = vmatprep.mubr.bf16.mxu0 0
        %1836 = vmatmul.mubr.bf16.gmra.mxu0 %v1798
        %v1837 = vpop.f32.mrf.mxu0
        %v1838 = vadd.f32 0.0, %v1837
        %v1839 = vpop.f32.mrf.mxu0
        %v1840 = vpop.f32.mrf.mxu0
        %v1841 = vpop.f32.mrf.mxu0
        %1842 = vdwg.mxu0
        %1843 = vrot.lane.b32.xlu0 %v1617, 64
        %v1844 = vpop.permute.xlu0 %1843
        %1845 = vrot.lane.b32.xlu0 %v1618, 64
        %v1846 = vpop.permute.xlu0 %1845
        %v1848 = vsel %vm1620, %v1844, 0
        %v1851 = vsel %vm1620, %v1846, 0
        %1853 = vmatprep.subr.bf16.mxu0 0
        %1854 = vmatpush1.bf16.xpose.msra.mxu0 0
        %1855 = vmatprep.subr.bf16.mxu0 0
        %1856 = vmatpush1.bf16.xpose.msra.mxu0 0
        %1857 = vmatprep.subr.bf16.mxu0 0
        %1858 = vmatpush1.bf16.xpose.msra.mxu0 0
        %1859 = vmatprep.subr.bf16.mxu0 0
        %1860 = vmatpush1.bf16.xpose.msra.mxu0 0
        %1861 = vmatprep.subr.bf16.mxu0 0
        %1862 = vmatpush1.bf16.xpose.msra.mxu0 0
        %1863 = vmatprep.subr.bf16.mxu0 0
        %1864 = vmatpush1.bf16.xpose.msra.mxu0 0
        %1865 = vmatprep.subr.bf16.mxu0 0
        %1866 = vmatpush1.bf16.xpose.msra.mxu0 0
        %1867 = vmatprep.subr.bf16.mxu0 0
        %1868 = vmatpush1.bf16.xpose.msra.mxu0 %v1851
        %1869 = vmatprep.subr.bf16.mxu0 0
        %1870 = vmatpush2.bf16.xpose.msra.mxu0 0
        %1871 = vmatprep.subr.bf16.mxu0 0
        %1872 = vmatpush2.bf16.xpose.msra.mxu0 0
        %1873 = vmatprep.subr.bf16.mxu0 0
        %1874 = vmatpush2.bf16.xpose.msra.mxu0 0
        %1875 = vmatprep.subr.bf16.mxu0 0
        %1876 = vmatpush2.bf16.xpose.msra.mxu0 0
        %1877 = vmatprep.subr.bf16.mxu0 0
        %1878 = vmatpush2.bf16.xpose.msra.mxu0 0
        %1879 = vmatprep.subr.bf16.mxu0 0
        %1880 = vmatpush2.bf16.xpose.msra.mxu0 0
        %1881 = vmatprep.subr.bf16.mxu0 0
        %1882 = vmatpush2.bf16.xpose.msra.mxu0 0
        %1883 = vmatprep.subr.bf16.mxu0 0
        %1884 = vmatpush2.bf16.xpose.msra.mxu0 0
        %1885 = vmatprep.mubr.bf16.mxu0 0
        %1886 = vmatmul.mubr.bf16.gmra.mxu0 %v1848
        %v1887 = vpop.f32.mrf.mxu0
        %v1888 = vadd.f32 0.0, %v1887
        %v1889 = vpop.f32.mrf.mxu0
        %v1890 = vpop.f32.mrf.mxu0
        %v1891 = vpop.f32.mrf.mxu0
        %1892 = vdwg.mxu0
        %v1893 = vsel %vm1667, %v1888, -inf
        %1894 = vmax.xlane.f32.xlu0 %v1893
        %v1895 = vpop.xlane.xlu0 %1894
        %v1896 = vsub.f32 %v1888, %v1895
        %v1897 = vmul.f32 %v1896, 1.442695
        %v1898 = vpow.pop %v1897
        %v1899 = vsel %vm1667, %v1898, 0.0
        %1900 = vadd.xlane.f32.xlu0 %v1899
        %v1901 = vpop.xlane.xlu0 %1900
        %v1902 = vrcp.pop %v1901
        %v1903 = vmul.f32 %v1898, %v1902
        %v1904 = vpack.c.bf16 %v1903, %v1903
        %1905 = vrot.lane.b32.xlu0 %v1619, 64
        %v1906 = vpop.permute.xlu0 %1905
        %v1908 = vsel %vm1680, %v1904, 0
        %v1911 = vand.u32 %v1906, %v1686
        %1913 = vmatprep.subr.bf16.mxu0 0
        %1914 = vmatpush1.bf16.msra.mxu0 0
        %1915 = vmatprep.subr.bf16.mxu0 0
        %1916 = vmatpush1.bf16.msra.mxu0 0
        %1917 = vmatprep.subr.bf16.mxu0 0
        %1918 = vmatpush1.bf16.msra.mxu0 0
        %1919 = vmatprep.subr.bf16.mxu0 0
        %1920 = vmatpush1.bf16.msra.mxu0 0
        %1921 = vmatprep.subr.bf16.mxu0 0
        %1922 = vmatpush1.bf16.msra.mxu0 0
        %1923 = vmatprep.subr.bf16.mxu0 0
        %1924 = vmatpush1.bf16.msra.mxu0 0
        %1925 = vmatprep.subr.bf16.mxu0 0
        %1926 = vmatpush1.bf16.msra.mxu0 0
        %1927 = vmatprep.subr.bf16.mxu0 0
        %1928 = vmatpush1.bf16.msra.mxu0 %v1911
        %1929 = vmatprep.subr.bf16.mxu0 0
        %1930 = vmatpush2.bf16.msra.mxu0 0
        %1931 = vmatprep.subr.bf16.mxu0 0
        %1932 = vmatpush2.bf16.msra.mxu0 0
        %1933 = vmatprep.subr.bf16.mxu0 0
        %1934 = vmatpush2.bf16.msra.mxu0 0
        %1935 = vmatprep.subr.bf16.mxu0 0
        %1936 = vmatpush2.bf16.msra.mxu0 0
        %1937 = vmatprep.subr.bf16.mxu0 0
        %1938 = vmatpush2.bf16.msra.mxu0 0
        %1939 = vmatprep.subr.bf16.mxu0 0
        %1940 = vmatpush2.bf16.msra.mxu0 0
        %1941 = vmatprep.subr.bf16.mxu0 0
        %1942 = vmatpush2.bf16.msra.mxu0 0
        %1943 = vmatprep.subr.bf16.mxu0 0
        %1944 = vmatpush2.bf16.msra.mxu0 0
        %1945 = vmatprep.mubr.bf16.mxu0 0
        %1946 = vmatmul.mubr.bf16.gmra.mxu0 %v1908
        %v1947 = vpop.f32.mrf.mxu0
        %v1948 = vadd.f32 0.0, %v1947
        %v1949 = vpop.f32.mrf.mxu0
        %v1950 = vpop.f32.mrf.mxu0
        %v1951 = vpop.f32.mrf.mxu0
        %1952 = vdwg.mxu0
        %1953 = vrot.lane.b32.xlu0 %v1617, 32
        %v1954 = vpop.permute.xlu0 %1953
        %1955 = vrot.lane.b32.xlu0 %v1618, 32
        %v1956 = vpop.permute.xlu0 %1955
        %v1958 = vsel %vm1620, %v1954, 0
        %v1961 = vsel %vm1620, %v1956, 0
        %1963 = vmatprep.subr.bf16.mxu0 0
        %1964 = vmatpush1.bf16.xpose.msra.mxu0 0
        %1965 = vmatprep.subr.bf16.mxu0 0
        %1966 = vmatpush1.bf16.xpose.msra.mxu0 0
        %1967 = vmatprep.subr.bf16.mxu0 0
        %1968 = vmatpush1.bf16.xpose.msra.mxu0 0
        %1969 = vmatprep.subr.bf16.mxu0 0
        %1970 = vmatpush1.bf16.xpose.msra.mxu0 0
        %1971 = vmatprep.subr.bf16.mxu0 0
        %1972 = vmatpush1.bf16.xpose.msra.mxu0 0
        %1973 = vmatprep.subr.bf16.mxu0 0
        %1974 = vmatpush1.bf16.xpose.msra.mxu0 0
        %1975 = vmatprep.subr.bf16.mxu0 0
        %1976 = vmatpush1.bf16.xpose.msra.mxu0 0
        %1977 = vmatprep.subr.bf16.mxu0 0
        %1978 = vmatpush1.bf16.xpose.msra.mxu0 %v1961
        %1979 = vmatprep.subr.bf16.mxu0 0
        %1980 = vmatpush2.bf16.xpose.msra.mxu0 0
        %1981 = vmatprep.subr.bf16.mxu0 0
        %1982 = vmatpush2.bf16.xpose.msra.mxu0 0
        %1983 = vmatprep.subr.bf16.mxu0 0
        %1984 = vmatpush2.bf16.xpose.msra.mxu0 0
        %1985 = vmatprep.subr.bf16.mxu0 0
        %1986 = vmatpush2.bf16.xpose.msra.mxu0 0
        %1987 = vmatprep.subr.bf16.mxu0 0
        %1988 = vmatpush2.bf16.xpose.msra.mxu0 0
        %1989 = vmatprep.subr.bf16.mxu0 0
        %1990 = vmatpush2.bf16.xpose.msra.mxu0 0
        %1991 = vmatprep.subr.bf16.mxu0 0
        %1992 = vmatpush2.bf16.xpose.msra.mxu0 0
        %1993 = vmatprep.subr.bf16.mxu0 0
        %1994 = vmatpush2.bf16.xpose.msra.mxu0 0
        %1995 = vmatprep.mubr.bf16.mxu0 0
        %1996 = vmatmul.mubr.bf16.gmra.mxu0 %v1958
        %v1997 = vpop.f32.mrf.mxu0
        %v1998 = vadd.f32 0.0, %v1997
        %v1999 = vpop.f32.mrf.mxu0
        %v2000 = vpop.f32.mrf.mxu0
        %v2001 = vpop.f32.mrf.mxu0
        %2002 = vdwg.mxu0
        %v2003 = vsel %vm1667, %v1998, -inf
        %2004 = vmax.xlane.f32.xlu0 %v2003
        %v2005 = vpop.xlane.xlu0 %2004
        %v2006 = vsub.f32 %v1998, %v2005
        %v2007 = vmul.f32 %v2006, 1.442695
        %v2008 = vpow.pop %v2007
        %v2009 = vsel %vm1667, %v2008, 0.0
        %2010 = vadd.xlane.f32.xlu0 %v2009
        %v2011 = vpop.xlane.xlu0 %2010
        %v2012 = vrcp.pop %v2011
        %v2013 = vmul.f32 %v2008, %v2012
        %v2014 = vpack.c.bf16 %v2013, %v2013
        %2015 = vrot.lane.b32.xlu0 %v1619, 32
        %v2016 = vpop.permute.xlu0 %2015
        %v2018 = vsel %vm1680, %v2014, 0
        %v2021 = vand.u32 %v2016, %v1686
        %2023 = vmatprep.subr.bf16.mxu0 0
        %2024 = vmatpush1.bf16.msra.mxu0 0
        %2025 = vmatprep.subr.bf16.mxu0 0
        %2026 = vmatpush1.bf16.msra.mxu0 0
        %2027 = vmatprep.subr.bf16.mxu0 0
        %2028 = vmatpush1.bf16.msra.mxu0 0
        %2029 = vmatprep.subr.bf16.mxu0 0
        %2030 = vmatpush1.bf16.msra.mxu0 0
        %2031 = vmatprep.subr.bf16.mxu0 0
        %2032 = vmatpush1.bf16.msra.mxu0 0
        %2033 = vmatprep.subr.bf16.mxu0 0
        %2034 = vmatpush1.bf16.msra.mxu0 0
        %2035 = vmatprep.subr.bf16.mxu0 0
        %2036 = vmatpush1.bf16.msra.mxu0 0
        %2037 = vmatprep.subr.bf16.mxu0 0
        %2038 = vmatpush1.bf16.msra.mxu0 %v2021
        %2039 = vmatprep.subr.bf16.mxu0 0
        %2040 = vmatpush2.bf16.msra.mxu0 0
        %2041 = vmatprep.subr.bf16.mxu0 0
        %2042 = vmatpush2.bf16.msra.mxu0 0
        %2043 = vmatprep.subr.bf16.mxu0 0
        %2044 = vmatpush2.bf16.msra.mxu0 0
        %2045 = vmatprep.subr.bf16.mxu0 0
        %2046 = vmatpush2.bf16.msra.mxu0 0
        %2047 = vmatprep.subr.bf16.mxu0 0
        %2048 = vmatpush2.bf16.msra.mxu0 0
        %2049 = vmatprep.subr.bf16.mxu0 0
        %2050 = vmatpush2.bf16.msra.mxu0 0
        %2051 = vmatprep.subr.bf16.mxu0 0
        %2052 = vmatpush2.bf16.msra.mxu0 0
        %2053 = vmatprep.subr.bf16.mxu0 0
        %2054 = vmatpush2.bf16.msra.mxu0 0
        %2055 = vmatprep.mubr.bf16.mxu0 0
        %2056 = vmatmul.mubr.bf16.gmra.mxu0 %v2018
        %v2057 = vpop.f32.mrf.mxu0
        %v2058 = vadd.f32 0.0, %v2057
        %v2059 = vpop.f32.mrf.mxu0
        %v2060 = vpop.f32.mrf.mxu0
        %v2061 = vpop.f32.mrf.mxu0
        %2062 = vdwg.mxu0
        %2064 = vrot.lane.b32.xlu0 %v1838, 32
        %v2065 = vpop.permute.xlu0 %2064
        %2068 = vrot.lane.b32.xlu0 %v1948, 64
        %v2069 = vpop.permute.xlu0 %2068
        %2072 = vrot.lane.b32.xlu0 %v2058, 96
        %v2073 = vpop.permute.xlu0 %2072
        %v2075 = vsel %vm1620, %v1725, %v2065
        %vm2076 = vcmask 523264
        %v2077 = vsel %vm2076, %v2075, %v2069
        %vm2078 = vcmask 785408
        %v2079 = vsel %vm2078, %v2077, %v2073
        %v2080 = vpack.c.bf16 %v1572, %v1568
        %v2081 = vpack.c.bf16 %v1574, %v1570
        %v2082 = vpack.c.bf16 %v1614, %v1611
        %v2084 = vshrl.u32 %v2080, 16
        %v2086 = vrot.slane %v2084, 2
        %v2087 = vshll.u32 %v2080, 16
        %v2089 = vrot.slane %v2087, 3
        %v2090 = vor.u32 %v2086, %v2089
        %v2092 = vshrl.u32 %v2081, 16
        %v2094 = vrot.slane %v2092, 2
        %v2095 = vshll.u32 %v2081, 16
        %v2097 = vrot.slane %v2095, 3
        %v2098 = vor.u32 %v2094, %v2097
        %v2100 = vsel %vm1620, %v2090, 0
        %v2103 = vsel %vm1620, %v2098, 0
        %2105 = vmatprep.subr.bf16.mxu0 0
        %2106 = vmatpush1.bf16.xpose.msra.mxu0 0
        %2107 = vmatprep.subr.bf16.mxu0 0
        %2108 = vmatpush1.bf16.xpose.msra.mxu0 0
        %2109 = vmatprep.subr.bf16.mxu0 0
        %2110 = vmatpush1.bf16.xpose.msra.mxu0 0
        %2111 = vmatprep.subr.bf16.mxu0 0
        %2112 = vmatpush1.bf16.xpose.msra.mxu0 0
        %2113 = vmatprep.subr.bf16.mxu0 0
        %2114 = vmatpush1.bf16.xpose.msra.mxu0 0
        %2115 = vmatprep.subr.bf16.mxu0 0
        %2116 = vmatpush1.bf16.xpose.msra.mxu0 0
        %2117 = vmatprep.subr.bf16.mxu0 0
        %2118 = vmatpush1.bf16.xpose.msra.mxu0 0
        %2119 = vmatprep.subr.bf16.mxu0 0
        %2120 = vmatpush1.bf16.xpose.msra.mxu0 %v2103
        %2121 = vmatprep.subr.bf16.mxu0 0
        %2122 = vmatpush2.bf16.xpose.msra.mxu0 0
        %2123 = vmatprep.subr.bf16.mxu0 0
        %2124 = vmatpush2.bf16.xpose.msra.mxu0 0
        %2125 = vmatprep.subr.bf16.mxu0 0
        %2126 = vmatpush2.bf16.xpose.msra.mxu0 0
        %2127 = vmatprep.subr.bf16.mxu0 0
        %2128 = vmatpush2.bf16.xpose.msra.mxu0 0
        %2129 = vmatprep.subr.bf16.mxu0 0
        %2130 = vmatpush2.bf16.xpose.msra.mxu0 0
        %2131 = vmatprep.subr.bf16.mxu0 0
        %2132 = vmatpush2.bf16.xpose.msra.mxu0 0
        %2133 = vmatprep.subr.bf16.mxu0 0
        %2134 = vmatpush2.bf16.xpose.msra.mxu0 0
        %2135 = vmatprep.subr.bf16.mxu0 0
        %2136 = vmatpush2.bf16.xpose.msra.mxu0 0
        %2137 = vmatprep.mubr.bf16.mxu0 0
        %2138 = vmatmul.mubr.bf16.gmra.mxu0 %v2100
        %v2139 = vpop.f32.mrf.mxu0
        %v2140 = vadd.f32 0.0, %v2139
        %v2141 = vpop.f32.mrf.mxu0
        %v2142 = vpop.f32.mrf.mxu0
        %v2143 = vpop.f32.mrf.mxu0
        %2144 = vdwg.mxu0
        %v2145 = vsel %vm1667, %v2140, -inf
        %2146 = vmax.xlane.f32.xlu0 %v2145
        %v2147 = vpop.xlane.xlu0 %2146
        %v2148 = vsub.f32 %v2140, %v2147
        %v2149 = vmul.f32 %v2148, 1.442695
        %v2150 = vpow.pop %v2149
        %v2151 = vsel %vm1667, %v2150, 0.0
        %2152 = vadd.xlane.f32.xlu0 %v2151
        %v2153 = vpop.xlane.xlu0 %2152
        %v2154 = vrcp.pop %v2153
        %v2155 = vmul.f32 %v2150, %v2154
        %v2156 = vpack.c.bf16 %v2155, %v2155
        %v2158 = vshrl.u32 %v2082, 16
        %v2160 = vrot.slane %v2158, 2
        %v2161 = vshll.u32 %v2082, 16
        %v2163 = vrot.slane %v2161, 3
        %v2164 = vor.u32 %v2160, %v2163
        %v2166 = vsel %vm1680, %v2156, 0
        %v2169 = vand.u32 %v2164, %v1686
        %2171 = vmatprep.subr.bf16.mxu0 0
        %2172 = vmatpush1.bf16.msra.mxu0 0
        %2173 = vmatprep.subr.bf16.mxu0 0
        %2174 = vmatpush1.bf16.msra.mxu0 0
        %2175 = vmatprep.subr.bf16.mxu0 0
        %2176 = vmatpush1.bf16.msra.mxu0 0
        %2177 = vmatprep.subr.bf16.mxu0 0
        %2178 = vmatpush1.bf16.msra.mxu0 0
        %2179 = vmatprep.subr.bf16.mxu0 0
        %2180 = vmatpush1.bf16.msra.mxu0 0
        %2181 = vmatprep.subr.bf16.mxu0 0
        %2182 = vmatpush1.bf16.msra.mxu0 0
        %2183 = vmatprep.subr.bf16.mxu0 0
        %2184 = vmatpush1.bf16.msra.mxu0 0
        %2185 = vmatprep.subr.bf16.mxu0 0
        %2186 = vmatpush1.bf16.msra.mxu0 %v2169
        %2187 = vmatprep.subr.bf16.mxu0 0
        %2188 = vmatpush2.bf16.msra.mxu0 0
        %2189 = vmatprep.subr.bf16.mxu0 0
        %2190 = vmatpush2.bf16.msra.mxu0 0
        %2191 = vmatprep.subr.bf16.mxu0 0
        %2192 = vmatpush2.bf16.msra.mxu0 0
        %2193 = vmatprep.subr.bf16.mxu0 0
        %2194 = vmatpush2.bf16.msra.mxu0 0
        %2195 = vmatprep.subr.bf16.mxu0 0
        %2196 = vmatpush2.bf16.msra.mxu0 0
        %2197 = vmatprep.subr.bf16.mxu0 0
        %2198 = vmatpush2.bf16.msra.mxu0 0
        %2199 = vmatprep.subr.bf16.mxu0 0
        %2200 = vmatpush2.bf16.msra.mxu0 0
        %2201 = vmatprep.subr.bf16.mxu0 0
        %2202 = vmatpush2.bf16.msra.mxu0 0
        %2203 = vmatprep.mubr.bf16.mxu0 0
        %2204 = vmatmul.mubr.bf16.gmra.mxu0 %v2166
        %v2205 = vpop.f32.mrf.mxu0
        %v2206 = vadd.f32 0.0, %v2205
        %v2207 = vpop.f32.mrf.mxu0
        %v2208 = vpop.f32.mrf.mxu0
        %v2209 = vpop.f32.mrf.mxu0
        %2210 = vdwg.mxu0
        %2211 = vrot.lane.b32.xlu0 %v2090, 96
        %v2212 = vpop.permute.xlu0 %2211
        %2213 = vrot.lane.b32.xlu0 %v2098, 96
        %v2214 = vpop.permute.xlu0 %2213
        %v2216 = vsel %vm1620, %v2212, 0
        %v2219 = vsel %vm1620, %v2214, 0
        %2221 = vmatprep.subr.bf16.mxu0 0
        %2222 = vmatpush1.bf16.xpose.msra.mxu0 0
        %2223 = vmatprep.subr.bf16.mxu0 0
        %2224 = vmatpush1.bf16.xpose.msra.mxu0 0
        %2225 = vmatprep.subr.bf16.mxu0 0
        %2226 = vmatpush1.bf16.xpose.msra.mxu0 0
        %2227 = vmatprep.subr.bf16.mxu0 0
        %2228 = vmatpush1.bf16.xpose.msra.mxu0 0
        %2229 = vmatprep.subr.bf16.mxu0 0
        %2230 = vmatpush1.bf16.xpose.msra.mxu0 0
        %2231 = vmatprep.subr.bf16.mxu0 0
        %2232 = vmatpush1.bf16.xpose.msra.mxu0 0
        %2233 = vmatprep.subr.bf16.mxu0 0
        %2234 = vmatpush1.bf16.xpose.msra.mxu0 0
        %2235 = vmatprep.subr.bf16.mxu0 0
        %2236 = vmatpush1.bf16.xpose.msra.mxu0 %v2219
        %2237 = vmatprep.subr.bf16.mxu0 0
        %2238 = vmatpush2.bf16.xpose.msra.mxu0 0
        %2239 = vmatprep.subr.bf16.mxu0 0
        %2240 = vmatpush2.bf16.xpose.msra.mxu0 0
        %2241 = vmatprep.subr.bf16.mxu0 0
        %2242 = vmatpush2.bf16.xpose.msra.mxu0 0
        %2243 = vmatprep.subr.bf16.mxu0 0
        %2244 = vmatpush2.bf16.xpose.msra.mxu0 0
        %2245 = vmatprep.subr.bf16.mxu0 0
        %2246 = vmatpush2.bf16.xpose.msra.mxu0 0
        %2247 = vmatprep.subr.bf16.mxu0 0
        %2248 = vmatpush2.bf16.xpose.msra.mxu0 0
        %2249 = vmatprep.subr.bf16.mxu0 0
        %2250 = vmatpush2.bf16.xpose.msra.mxu0 0
        %2251 = vmatprep.subr.bf16.mxu0 0
        %2252 = vmatpush2.bf16.xpose.msra.mxu0 0
        %2253 = vmatprep.mubr.bf16.mxu0 0
        %2254 = vmatmul.mubr.bf16.gmra.mxu0 %v2216
        %v2255 = vpop.f32.mrf.mxu0
        %v2256 = vadd.f32 0.0, %v2255
        %v2257 = vpop.f32.mrf.mxu0
        %v2258 = vpop.f32.mrf.mxu0
        %v2259 = vpop.f32.mrf.mxu0
        %2260 = vdwg.mxu0
        %v2261 = vsel %vm1667, %v2256, -inf
        %2262 = vmax.xlane.f32.xlu0 %v2261
        %v2263 = vpop.xlane.xlu0 %2262
        %v2264 = vsub.f32 %v2256, %v2263
        %v2265 = vmul.f32 %v2264, 1.442695
        %v2266 = vpow.pop %v2265
        %v2267 = vsel %vm1667, %v2266, 0.0
        %2268 = vadd.xlane.f32.xlu0 %v2267
        %v2269 = vpop.xlane.xlu0 %2268
        %v2270 = vrcp.pop %v2269
        %v2271 = vmul.f32 %v2266, %v2270
        %v2272 = vpack.c.bf16 %v2271, %v2271
        %2273 = vrot.lane.b32.xlu0 %v2164, 96
        %v2274 = vpop.permute.xlu0 %2273
        %v2276 = vsel %vm1680, %v2272, 0
        %v2279 = vand.u32 %v2274, %v1686
        %2281 = vmatprep.subr.bf16.mxu0 0
        %2282 = vmatpush1.bf16.msra.mxu0 0
        %2283 = vmatprep.subr.bf16.mxu0 0
        %2284 = vmatpush1.bf16.msra.mxu0 0
        %2285 = vmatprep.subr.bf16.mxu0 0
        %2286 = vmatpush1.bf16.msra.mxu0 0
        %2287 = vmatprep.subr.bf16.mxu0 0
        %2288 = vmatpush1.bf16.msra.mxu0 0
        %2289 = vmatprep.subr.bf16.mxu0 0
        %2290 = vmatpush1.bf16.msra.mxu0 0
        %2291 = vmatprep.subr.bf16.mxu0 0
        %2292 = vmatpush1.bf16.msra.mxu0 0
        %2293 = vmatprep.subr.bf16.mxu0 0
        %2294 = vmatpush1.bf16.msra.mxu0 0
        %2295 = vmatprep.subr.bf16.mxu0 0
        %2296 = vmatpush1.bf16.msra.mxu0 %v2279
        %2297 = vmatprep.subr.bf16.mxu0 0
        %2298 = vmatpush2.bf16.msra.mxu0 0
        %2299 = vmatprep.subr.bf16.mxu0 0
        %2300 = vmatpush2.bf16.msra.mxu0 0
        %2301 = vmatprep.subr.bf16.mxu0 0
        %2302 = vmatpush2.bf16.msra.mxu0 0
        %2303 = vmatprep.subr.bf16.mxu0 0
        %2304 = vmatpush2.bf16.msra.mxu0 0
        %2305 = vmatprep.subr.bf16.mxu0 0
        %2306 = vmatpush2.bf16.msra.mxu0 0
        %2307 = vmatprep.subr.bf16.mxu0 0
        %2308 = vmatpush2.bf16.msra.mxu0 0
        %2309 = vmatprep.subr.bf16.mxu0 0
        %2310 = vmatpush2.bf16.msra.mxu0 0
        %2311 = vmatprep.subr.bf16.mxu0 0
        %2312 = vmatpush2.bf16.msra.mxu0 0
        %2313 = vmatprep.mubr.bf16.mxu0 0
        %2314 = vmatmul.mubr.bf16.gmra.mxu0 %v2276
        %v2315 = vpop.f32.mrf.mxu0
        %v2316 = vadd.f32 0.0, %v2315
        %v2317 = vpop.f32.mrf.mxu0
        %v2318 = vpop.f32.mrf.mxu0
        %v2319 = vpop.f32.mrf.mxu0
        %2320 = vdwg.mxu0
        %2321 = vrot.lane.b32.xlu0 %v2090, 64
        %v2322 = vpop.permute.xlu0 %2321
        %2323 = vrot.lane.b32.xlu0 %v2098, 64
        %v2324 = vpop.permute.xlu0 %2323
        %v2326 = vsel %vm1620, %v2322, 0
        %v2329 = vsel %vm1620, %v2324, 0
        %2331 = vmatprep.subr.bf16.mxu0 0
        %2332 = vmatpush1.bf16.xpose.msra.mxu0 0
        %2333 = vmatprep.subr.bf16.mxu0 0
        %2334 = vmatpush1.bf16.xpose.msra.mxu0 0
        %2335 = vmatprep.subr.bf16.mxu0 0
        %2336 = vmatpush1.bf16.xpose.msra.mxu0 0
        %2337 = vmatprep.subr.bf16.mxu0 0
        %2338 = vmatpush1.bf16.xpose.msra.mxu0 0
        %2339 = vmatprep.subr.bf16.mxu0 0
        %2340 = vmatpush1.bf16.xpose.msra.mxu0 0
        %2341 = vmatprep.subr.bf16.mxu0 0
        %2342 = vmatpush1.bf16.xpose.msra.mxu0 0
        %2343 = vmatprep.subr.bf16.mxu0 0
        %2344 = vmatpush1.bf16.xpose.msra.mxu0 0
        %2345 = vmatprep.subr.bf16.mxu0 0
        %2346 = vmatpush1.bf16.xpose.msra.mxu0 %v2329
        %2347 = vmatprep.subr.bf16.mxu0 0
        %2348 = vmatpush2.bf16.xpose.msra.mxu0 0
        %2349 = vmatprep.subr.bf16.mxu0 0
        %2350 = vmatpush2.bf16.xpose.msra.mxu0 0
        %2351 = vmatprep.subr.bf16.mxu0 0
        %2352 = vmatpush2.bf16.xpose.msra.mxu0 0
        %2353 = vmatprep.subr.bf16.mxu0 0
        %2354 = vmatpush2.bf16.xpose.msra.mxu0 0
        %2355 = vmatprep.subr.bf16.mxu0 0
        %2356 = vmatpush2.bf16.xpose.msra.mxu0 0
        %2357 = vmatprep.subr.bf16.mxu0 0
        %2358 = vmatpush2.bf16.xpose.msra.mxu0 0
        %2359 = vmatprep.subr.bf16.mxu0 0
        %2360 = vmatpush2.bf16.xpose.msra.mxu0 0
        %2361 = vmatprep.subr.bf16.mxu0 0
        %2362 = vmatpush2.bf16.xpose.msra.mxu0 0
        %2363 = vmatprep.mubr.bf16.mxu0 0
        %2364 = vmatmul.mubr.bf16.gmra.mxu0 %v2326
        %v2365 = vpop.f32.mrf.mxu0
        %v2366 = vadd.f32 0.0, %v2365
        %v2367 = vpop.f32.mrf.mxu0
        %v2368 = vpop.f32.mrf.mxu0
        %v2369 = vpop.f32.mrf.mxu0
        %2370 = vdwg.mxu0
        %v2371 = vsel %vm1667, %v2366, -inf
        %2372 = vmax.xlane.f32.xlu0 %v2371
        %v2373 = vpop.xlane.xlu0 %2372
        %v2374 = vsub.f32 %v2366, %v2373
        %v2375 = vmul.f32 %v2374, 1.442695
        %v2376 = vpow.pop %v2375
        %v2377 = vsel %vm1667, %v2376, 0.0
        %2378 = vadd.xlane.f32.xlu0 %v2377
        %v2379 = vpop.xlane.xlu0 %2378
        %v2380 = vrcp.pop %v2379
        %v2381 = vmul.f32 %v2376, %v2380
        %v2382 = vpack.c.bf16 %v2381, %v2381
        %2383 = vrot.lane.b32.xlu0 %v2164, 64
        %v2384 = vpop.permute.xlu0 %2383
        %v2386 = vsel %vm1680, %v2382, 0
        %v2389 = vand.u32 %v2384, %v1686
        %2391 = vmatprep.subr.bf16.mxu0 0
        %2392 = vmatpush1.bf16.msra.mxu0 0
        %2393 = vmatprep.subr.bf16.mxu0 0
        %2394 = vmatpush1.bf16.msra.mxu0 0
        %2395 = vmatprep.subr.bf16.mxu0 0
        %2396 = vmatpush1.bf16.msra.mxu0 0
        %2397 = vmatprep.subr.bf16.mxu0 0
        %2398 = vmatpush1.bf16.msra.mxu0 0
        %2399 = vmatprep.subr.bf16.mxu0 0
        %2400 = vmatpush1.bf16.msra.mxu0 0
        %2401 = vmatprep.subr.bf16.mxu0 0
        %2402 = vmatpush1.bf16.msra.mxu0 0
        %2403 = vmatprep.subr.bf16.mxu0 0
        %2404 = vmatpush1.bf16.msra.mxu0 0
        %2405 = vmatprep.subr.bf16.mxu0 0
        %2406 = vmatpush1.bf16.msra.mxu0 %v2389
        %2407 = vmatprep.subr.bf16.mxu0 0
        %2408 = vmatpush2.bf16.msra.mxu0 0
        %2409 = vmatprep.subr.bf16.mxu0 0
        %2410 = vmatpush2.bf16.msra.mxu0 0
        %2411 = vmatprep.subr.bf16.mxu0 0
        %2412 = vmatpush2.bf16.msra.mxu0 0
        %2413 = vmatprep.subr.bf16.mxu0 0
        %2414 = vmatpush2.bf16.msra.mxu0 0
        %2415 = vmatprep.subr.bf16.mxu0 0
        %2416 = vmatpush2.bf16.msra.mxu0 0
        %2417 = vmatprep.subr.bf16.mxu0 0
        %2418 = vmatpush2.bf16.msra.mxu0 0
        %2419 = vmatprep.subr.bf16.mxu0 0
        %2420 = vmatpush2.bf16.msra.mxu0 0
        %2421 = vmatprep.subr.bf16.mxu0 0
        %2422 = vmatpush2.bf16.msra.mxu0 0
        %2423 = vmatprep.mubr.bf16.mxu0 0
        %2424 = vmatmul.mubr.bf16.gmra.mxu0 %v2386
        %v2425 = vpop.f32.mrf.mxu0
        %v2426 = vadd.f32 0.0, %v2425
        %v2427 = vpop.f32.mrf.mxu0
        %v2428 = vpop.f32.mrf.mxu0
        %v2429 = vpop.f32.mrf.mxu0
        %2430 = vdwg.mxu0
        %2431 = vrot.lane.b32.xlu0 %v2090, 32
        %v2432 = vpop.permute.xlu0 %2431
        %2433 = vrot.lane.b32.xlu0 %v2098, 32
        %v2434 = vpop.permute.xlu0 %2433
        %v2436 = vsel %vm1620, %v2432, 0
        %v2439 = vsel %vm1620, %v2434, 0
        %2441 = vmatprep.subr.bf16.mxu0 0
        %2442 = vmatpush1.bf16.xpose.msra.mxu0 0
        %2443 = vmatprep.subr.bf16.mxu0 0
        %2444 = vmatpush1.bf16.xpose.msra.mxu0 0
        %2445 = vmatprep.subr.bf16.mxu0 0
        %2446 = vmatpush1.bf16.xpose.msra.mxu0 0
        %2447 = vmatprep.subr.bf16.mxu0 0
        %2448 = vmatpush1.bf16.xpose.msra.mxu0 0
        %2449 = vmatprep.subr.bf16.mxu0 0
        %2450 = vmatpush1.bf16.xpose.msra.mxu0 0
        %2451 = vmatprep.subr.bf16.mxu0 0
        %2452 = vmatpush1.bf16.xpose.msra.mxu0 0
        %2453 = vmatprep.subr.bf16.mxu0 0
        %2454 = vmatpush1.bf16.xpose.msra.mxu0 0
        %2455 = vmatprep.subr.bf16.mxu0 0
        %2456 = vmatpush1.bf16.xpose.msra.mxu0 %v2439
        %2457 = vmatprep.subr.bf16.mxu0 0
        %2458 = vmatpush2.bf16.xpose.msra.mxu0 0
        %2459 = vmatprep.subr.bf16.mxu0 0
        %2460 = vmatpush2.bf16.xpose.msra.mxu0 0
        %2461 = vmatprep.subr.bf16.mxu0 0
        %2462 = vmatpush2.bf16.xpose.msra.mxu0 0
        %2463 = vmatprep.subr.bf16.mxu0 0
        %2464 = vmatpush2.bf16.xpose.msra.mxu0 0
        %2465 = vmatprep.subr.bf16.mxu0 0
        %2466 = vmatpush2.bf16.xpose.msra.mxu0 0
        %2467 = vmatprep.subr.bf16.mxu0 0
        %2468 = vmatpush2.bf16.xpose.msra.mxu0 0
        %2469 = vmatprep.subr.bf16.mxu0 0
        %2470 = vmatpush2.bf16.xpose.msra.mxu0 0
        %2471 = vmatprep.subr.bf16.mxu0 0
        %2472 = vmatpush2.bf16.xpose.msra.mxu0 0
        %2473 = vmatprep.mubr.bf16.mxu0 0
        %2474 = vmatmul.mubr.bf16.gmra.mxu0 %v2436
        %v2475 = vpop.f32.mrf.mxu0
        %v2476 = vadd.f32 0.0, %v2475
        %v2477 = vpop.f32.mrf.mxu0
        %v2478 = vpop.f32.mrf.mxu0
        %v2479 = vpop.f32.mrf.mxu0
        %2480 = vdwg.mxu0
        %v2481 = vsel %vm1667, %v2476, -inf
        %2482 = vmax.xlane.f32.xlu0 %v2481
        %v2483 = vpop.xlane.xlu0 %2482
        %v2484 = vsub.f32 %v2476, %v2483
        %v2485 = vmul.f32 %v2484, 1.442695
        %v2486 = vpow.pop %v2485
        %v2487 = vsel %vm1667, %v2486, 0.0
        %2488 = vadd.xlane.f32.xlu0 %v2487
        %v2489 = vpop.xlane.xlu0 %2488
        %v2490 = vrcp.pop %v2489
        %v2491 = vmul.f32 %v2486, %v2490
        %v2492 = vpack.c.bf16 %v2491, %v2491
        %2493 = vrot.lane.b32.xlu0 %v2164, 32
        %v2494 = vpop.permute.xlu0 %2493
        %v2496 = vsel %vm1680, %v2492, 0
        %v2499 = vand.u32 %v2494, %v1686
        %2501 = vmatprep.subr.bf16.mxu0 0
        %2502 = vmatpush1.bf16.msra.mxu0 0
        %2503 = vmatprep.subr.bf16.mxu0 0
        %2504 = vmatpush1.bf16.msra.mxu0 0
        %2505 = vmatprep.subr.bf16.mxu0 0
        %2506 = vmatpush1.bf16.msra.mxu0 0
        %2507 = vmatprep.subr.bf16.mxu0 0
        %2508 = vmatpush1.bf16.msra.mxu0 0
        %2509 = vmatprep.subr.bf16.mxu0 0
        %2510 = vmatpush1.bf16.msra.mxu0 0
        %2511 = vmatprep.subr.bf16.mxu0 0
        %2512 = vmatpush1.bf16.msra.mxu0 0
        %2513 = vmatprep.subr.bf16.mxu0 0
        %2514 = vmatpush1.bf16.msra.mxu0 0
        %2515 = vmatprep.subr.bf16.mxu0 0
        %2516 = vmatpush1.bf16.msra.mxu0 %v2499
        %2517 = vmatprep.subr.bf16.mxu0 0
        %2518 = vmatpush2.bf16.msra.mxu0 0
        %2519 = vmatprep.subr.bf16.mxu0 0
        %2520 = vmatpush2.bf16.msra.mxu0 0
        %2521 = vmatprep.subr.bf16.mxu0 0
        %2522 = vmatpush2.bf16.msra.mxu0 0
        %2523 = vmatprep.subr.bf16.mxu0 0
        %2524 = vmatpush2.bf16.msra.mxu0 0
        %2525 = vmatprep.subr.bf16.mxu0 0
        %2526 = vmatpush2.bf16.msra.mxu0 0
        %2527 = vmatprep.subr.bf16.mxu0 0
        %2528 = vmatpush2.bf16.msra.mxu0 0
        %2529 = vmatprep.subr.bf16.mxu0 0
        %2530 = vmatpush2.bf16.msra.mxu0 0
        %2531 = vmatprep.subr.bf16.mxu0 0
        %2532 = vmatpush2.bf16.msra.mxu0 0
        %2533 = vmatprep.mubr.bf16.mxu0 0
        %2534 = vmatmul.mubr.bf16.gmra.mxu0 %v2496
        %v2535 = vpop.f32.mrf.mxu0
        %v2536 = vadd.f32 0.0, %v2535
        %v2537 = vpop.f32.mrf.mxu0
        %v2538 = vpop.f32.mrf.mxu0
        %v2539 = vpop.f32.mrf.mxu0
        %2540 = vdwg.mxu0
        %2542 = vrot.lane.b32.xlu0 %v2316, 32
        %v2543 = vpop.permute.xlu0 %2542
        %2546 = vrot.lane.b32.xlu0 %v2426, 64
        %v2547 = vpop.permute.xlu0 %2546
        %2550 = vrot.lane.b32.xlu0 %v2536, 96
        %v2551 = vpop.permute.xlu0 %2550
        %v2553 = vsel %vm1620, %v2206, %v2543
        %v2554 = vsel %vm2076, %v2553, %v2547
        %v2555 = vsel %vm2078, %v2554, %v2551
        %v2557 = vrot.slane %v2555, 3
        %vm2559 = vcmask 1044480
        %v2560 = vsel %vm2559, %v2079, %v2557
        %v2561 = vpack.c.bf16 %v2557, %v2560
        %v2562 = vld [vmem:[%s740] sm:$0xf]
        %v2563 = vld [vmem:[%s740 + $0x4] sm:$0xf]
        %v2564 = vld [vmem:[%s740 + $0x8] sm:$0xf]
        %v2565 = vld [vmem:[%s740 + $0xc] sm:$0xf]
        %v2566 = vld [vmem:[%s740 + $0x10] sm:$0xf]
        %v2567 = vld [vmem:[%s740 + $0x14] sm:$0xf]
        %v2568 = vld [vmem:[%s740 + $0x18] sm:$0xf]
        %v2569 = vld [vmem:[%s740 + $0x1c] sm:$0xf]
        %v2570 = vld [vmem:[%s740 + $0x20] sm:$0xf]
        %v2571 = vld [vmem:[%s740 + $0x24] sm:$0xf]
        %v2572 = vld [vmem:[%s740 + $0x28] sm:$0xf]
        %v2573 = vld [vmem:[%s740 + $0x2c] sm:$0xf]
        %v2574 = vld [vmem:[%s740 + $0x30] sm:$0xf]
        %v2575 = vld [vmem:[%s740 + $0x34] sm:$0xf]
        %v2576 = vld [vmem:[%s740 + $0x38] sm:$0xf]
        %v2577 = vld [vmem:[%s740 + $0x3c] sm:$0xf]
        %v2578 = vld [vmem:[%s743] sm:$0x1]
        %v2580 = vlaneseq
        %v2581 = vshrl.u32 %v2580, 7
        %v2582 = vsub.s32 0, %v2581
        %v2583 = vrot.slane %v2578, %v2582
        %v2601 = vunpack.c.l.b16 %v2562
        %v2602 = vunpack.c.l.b16 %v2563
        %v2603 = vunpack.c.l.b16 %v2564
        %v2604 = vunpack.c.l.b16 %v2565
        %v2605 = vunpack.c.l.b16 %v2566
        %v2606 = vunpack.c.l.b16 %v2567
        %v2607 = vunpack.c.l.b16 %v2568
        %v2608 = vunpack.c.l.b16 %v2569
        %v2609 = vunpack.c.l.b16 %v2570
        %v2610 = vunpack.c.l.b16 %v2571
        %v2611 = vunpack.c.l.b16 %v2572
        %v2612 = vunpack.c.l.b16 %v2573
        %v2613 = vunpack.c.l.b16 %v2574
        %v2614 = vunpack.c.l.b16 %v2575
        %v2615 = vunpack.c.l.b16 %v2576
        %v2616 = vunpack.c.l.b16 %v2577
        %v2617 = vpack.c.b16 %v2602, %v2601
        %v2618 = vpack.c.b16 %v2604, %v2603
        %v2619 = vpack.c.b16 %v2606, %v2605
        %v2620 = vpack.c.b16 %v2608, %v2607
        %v2621 = vpack.c.b16 %v2610, %v2609
        %v2622 = vpack.c.b16 %v2612, %v2611
        %v2623 = vpack.c.b16 %v2614, %v2613
        %v2624 = vpack.c.b16 %v2616, %v2615
        %2633 = vmatprep.subr.bf16.mxu0 0
        %2634 = vmatpush1.bf16.msra.mxu0 %v2624
        %2635 = vmatprep.subr.bf16.mxu0 0
        %2636 = vmatpush1.bf16.msra.mxu0 %v2623
        %2637 = vmatprep.subr.bf16.mxu0 0
        %2638 = vmatpush1.bf16.msra.mxu0 %v2622
        %2639 = vmatprep.subr.bf16.mxu0 0
        %2640 = vmatpush1.bf16.msra.mxu0 %v2621
        %2641 = vmatprep.subr.bf16.mxu0 0
        %2642 = vmatpush1.bf16.msra.mxu0 %v2620
        %2643 = vmatprep.subr.bf16.mxu0 0
        %2644 = vmatpush1.bf16.msra.mxu0 %v2619
        %2645 = vmatprep.subr.bf16.mxu0 0
        %2646 = vmatpush1.bf16.msra.mxu0 %v2618
        %2647 = vmatprep.subr.bf16.mxu0 0
        %2648 = vmatpush1.bf16.msra.mxu0 %v2617
        %2649 = vmatprep.subr.bf16.mxu0 0
        %2650 = vmatpush2.bf16.msra.mxu0 0
        %2651 = vmatprep.subr.bf16.mxu0 0
        %2652 = vmatpush2.bf16.msra.mxu0 0
        %2653 = vmatprep.subr.bf16.mxu0 0
        %2654 = vmatpush2.bf16.msra.mxu0 0
        %2655 = vmatprep.subr.bf16.mxu0 0
        %2656 = vmatpush2.bf16.msra.mxu0 0
        %2657 = vmatprep.subr.bf16.mxu0 0
        %2658 = vmatpush2.bf16.msra.mxu0 0
        %2659 = vmatprep.subr.bf16.mxu0 0
        %2660 = vmatpush2.bf16.msra.mxu0 0
        %2661 = vmatprep.subr.bf16.mxu0 0
        %2662 = vmatpush2.bf16.msra.mxu0 0
        %2663 = vmatprep.subr.bf16.mxu0 0
        %2664 = vmatpush2.bf16.msra.mxu0 0
        %2665 = vmatprep.mubr.bf16.mxu0 0
        %2666 = vmatmul.mubr.bf16.gmra.mxu0 %v2561
        %v2667 = vpop.f32.mrf.mxu0
        %v2668 = vadd.f32 %v2583, %v2667
        %v2669 = vpop.f32.mrf.mxu0
        %v2670 = vpop.f32.mrf.mxu0
        %v2671 = vadd.f32 %v2583, %v2670
        %v2672 = vpop.f32.mrf.mxu0
        %2673 = vdwg.mxu0
        %v2674 = vadd.f32 %v1309, %v2668
        %v2675 = vadd.f32 %v1310, %v2671
        %v2676 = vld [vmem:[%s746] sm:$0x1]
        %v2677 = vld [vmem:[%s749] sm:$0x1]
        %2678 = vadd.xlane.f32.xlu0 %v2674
        %v2679 = vpop.xlane.xlu0 %2678
        %v2680 = vsel %vm1315, %v2675, 0.0
        %2681 = vadd.xlane.f32.xlu0 %v2680
        %v2682 = vpop.xlane.xlu0 %2681
        %v2683 = vmul.f32 %v2679, %v1319
        %v2684 = vmul.f32 %v2682, %v1319
        %v2685 = vsub.f32 %v2674, %v2683
        %v2686 = vsub.f32 %v2675, %v2684
        %v2687 = vmul.f32 %v2685, %v2685
        %v2688 = vmul.f32 %v2686, %v2686
        %2689 = vadd.xlane.f32.xlu0 %v2687
        %v2690 = vpop.xlane.xlu0 %2689
        %v2691 = vsel %vm1315, %v2688, 0.0
        %2692 = vadd.xlane.f32.xlu0 %v2691
        %v2693 = vpop.xlane.xlu0 %2692
        %v2694 = vmul.f32 %v2690, %v1319
        %v2695 = vmul.f32 %v2693, %v1319
        %v2696 = vadd.f32 %v2694, 1e-06
        %v2697 = vadd.f32 %v2695, 1e-06
        %v2698 = vrsqrt.pop %v2696
        %v2699 = vrsqrt.pop %v2697
        %v2700 = vmul.f32 %v2685, %v2698
        %v2701 = vmul.f32 %v2686, %v2699
        %v2703 = vlaneseq
        %v2704 = vshrl.u32 %v2703, 7
        %v2705 = vsub.s32 0, %v2704
        %v2706 = vrot.slane %v2676, %v2705
        %v2708 = vmul.f32 %v2700, %v2706
        %v2709 = vmul.f32 %v2701, %v2706
        %v2711 = vlaneseq
        %v2712 = vshrl.u32 %v2711, 7
        %v2713 = vsub.s32 0, %v2712
        %v2714 = vrot.slane %v2677, %v2713
        %v2716 = vadd.f32 %v2708, %v2714
        %v2717 = vadd.f32 %v2709, %v2714
        %v2718 = vpack.c.bf16 %v2717, %v2716
        %v2719 = vld [vmem:[%s754] sm:$0xff]
        %v2720 = vld [vmem:[%s754 + $0x8] sm:$0xff]
        %v2721 = vld [vmem:[%s754 + $0x10] sm:$0xff]
        %v2722 = vld [vmem:[%s754 + $0x18] sm:$0xff]
        %v2723 = vld [vmem:[%s754 + $0x20] sm:$0xff]
        %v2724 = vld [vmem:[%s754 + $0x28] sm:$0xff]
        %v2725 = vld [vmem:[%s754 + $0x30] sm:$0xff]
        %v2726 = vld [vmem:[%s754 + $0x38] sm:$0xff]
        %v2727 = vld [vmem:[%s754 + $0x40] sm:$0xff]
        %v2728 = vld [vmem:[%s754 + $0x48] sm:$0xff]
        %v2729 = vld [vmem:[%s754 + $0x50] sm:$0xff]
        %v2730 = vld [vmem:[%s754 + $0x58] sm:$0xff]
        %v2731 = vld [vmem:[%s754 + $0x60] sm:$0xff]
        %v2732 = vld [vmem:[%s754 + $0x68] sm:$0xff]
        %v2733 = vld [vmem:[%s754 + $0x70] sm:$0xff]
        %v2734 = vld [vmem:[%s754 + $0x78] sm:$0xff]
        %v2735 = vld [vmem:[%s758] sm:$0x3]
        %v2737 = vlaneseq
        %v2738 = vshrl.u32 %v2737, 7
        %v2739 = vsub.s32 0, %v2738
        %v2740 = vrot.slane %v2735, %v2739
        %v2741 = vlaneseq
        %v2742 = vshrl.u32 %v2741, 7
        %v2743 = vsub.s32 1, %v2742
        %v2744 = vrot.slane %v2735, %v2743
        %v2763 = vunpack.c.l.b16 %v2719
        %v2764 = vunpack.c.h.b16 %v2719
        %v2765 = vunpack.c.l.b16 %v2720
        %v2766 = vunpack.c.h.b16 %v2720
        %v2767 = vunpack.c.l.b16 %v2721
        %v2768 = vunpack.c.h.b16 %v2721
        %v2769 = vunpack.c.l.b16 %v2722
        %v2770 = vunpack.c.h.b16 %v2722
        %v2771 = vunpack.c.l.b16 %v2723
        %v2772 = vunpack.c.h.b16 %v2723
        %v2773 = vunpack.c.l.b16 %v2724
        %v2774 = vunpack.c.h.b16 %v2724
        %v2775 = vunpack.c.l.b16 %v2725
        %v2776 = vunpack.c.h.b16 %v2725
        %v2777 = vunpack.c.l.b16 %v2726
        %v2778 = vunpack.c.h.b16 %v2726
        %v2779 = vunpack.c.l.b16 %v2727
        %v2780 = vunpack.c.h.b16 %v2727
        %v2781 = vunpack.c.l.b16 %v2728
        %v2782 = vunpack.c.h.b16 %v2728
        %v2783 = vunpack.c.l.b16 %v2729
        %v2784 = vunpack.c.h.b16 %v2729
        %v2785 = vunpack.c.l.b16 %v2730
        %v2786 = vunpack.c.h.b16 %v2730
        %v2787 = vunpack.c.l.b16 %v2731
        %v2788 = vunpack.c.h.b16 %v2731
        %v2789 = vunpack.c.l.b16 %v2732
        %v2790 = vunpack.c.h.b16 %v2732
        %v2791 = vunpack.c.l.b16 %v2733
        %v2792 = vunpack.c.h.b16 %v2733
        %v2793 = vunpack.c.l.b16 %v2734
        %v2794 = vunpack.c.h.b16 %v2734
        %v2795 = vpack.c.b16 %v2765, %v2763
        %v2796 = vpack.c.b16 %v2766, %v2764
        %v2797 = vpack.c.b16 %v2769, %v2767
        %v2798 = vpack.c.b16 %v2770, %v2768
        %v2799 = vpack.c.b16 %v2773, %v2771
        %v2800 = vpack.c.b16 %v2774, %v2772
        %v2801 = vpack.c.b16 %v2777, %v2775
        %v2802 = vpack.c.b16 %v2778, %v2776
        %v2803 = vpack.c.b16 %v2781, %v2779
        %v2804 = vpack.c.b16 %v2782, %v2780
        %v2805 = vpack.c.b16 %v2785, %v2783
        %v2806 = vpack.c.b16 %v2786, %v2784
        %v2807 = vpack.c.b16 %v2789, %v2787
        %v2808 = vpack.c.b16 %v2790, %v2788
        %v2809 = vpack.c.b16 %v2793, %v2791
        %v2810 = vpack.c.b16 %v2794, %v2792
        %2827 = vmatprep.subr.bf16.mxu0 %v2810
        %2828 = vmatpush1.bf16.msra.mxu0 %v2809
        %2829 = vmatprep.subr.bf16.mxu0 %v2808
        %2830 = vmatpush1.bf16.msra.mxu0 %v2807
        %2831 = vmatprep.subr.bf16.mxu0 %v2806
        %2832 = vmatpush1.bf16.msra.mxu0 %v2805
        %2833 = vmatprep.subr.bf16.mxu0 %v2804
        %2834 = vmatpush1.bf16.msra.mxu0 %v2803
        %2835 = vmatprep.subr.bf16.mxu0 %v2802
        %2836 = vmatpush1.bf16.msra.mxu0 %v2801
        %2837 = vmatprep.subr.bf16.mxu0 %v2800
        %2838 = vmatpush1.bf16.msra.mxu0 %v2799
        %2839 = vmatprep.subr.bf16.mxu0 %v2798
        %2840 = vmatpush1.bf16.msra.mxu0 %v2797
        %2841 = vmatprep.subr.bf16.mxu0 %v2796
        %2842 = vmatpush1.bf16.msra.mxu0 %v2795
        %2843 = vmatprep.subr.bf16.mxu0 0
        %2844 = vmatpush2.bf16.msra.mxu0 0
        %2845 = vmatprep.subr.bf16.mxu0 0
        %2846 = vmatpush2.bf16.msra.mxu0 0
        %2847 = vmatprep.subr.bf16.mxu0 0
        %2848 = vmatpush2.bf16.msra.mxu0 0
        %2849 = vmatprep.subr.bf16.mxu0 0
        %2850 = vmatpush2.bf16.msra.mxu0 0
        %2851 = vmatprep.subr.bf16.mxu0 0
        %2852 = vmatpush2.bf16.msra.mxu0 0
        %2853 = vmatprep.subr.bf16.mxu0 0
        %2854 = vmatpush2.bf16.msra.mxu0 0
        %2855 = vmatprep.subr.bf16.mxu0 0
        %2856 = vmatpush2.bf16.msra.mxu0 0
        %2857 = vmatprep.subr.bf16.mxu0 0
        %2858 = vmatpush2.bf16.msra.mxu0 0
        %2859 = vmatprep.mubr.bf16.mxu0 0
        %2860 = vmatmul.mubr.bf16.gmra.mxu0 %v2718
        %v2861 = vpop.f32.mrf.mxu0
        %v2862 = vadd.f32 %v2740, %v2861
        %v2863 = vpop.f32.mrf.mxu0
        %v2864 = vadd.f32 %v2744, %v2863
        %v2865 = vpop.f32.mrf.mxu0
        %v2866 = vadd.f32 %v2740, %v2865
        %v2867 = vpop.f32.mrf.mxu0
        %v2868 = vadd.f32 %v2744, %v2867
        %2869 = vdwg.mxu0
        %v2870 = vmul.f32 %v2862, 0.5
        %v2871 = vmul.f32 %v2864, 0.5
        %v2872 = vmul.f32 %v2866, 0.5
        %v2873 = vmul.f32 %v2868, 0.5
        %v2874 = vmul.f32 %v2862, 0.70710677
        %v2875 = vmul.f32 %v2864, 0.70710677
        %v2876 = vmul.f32 %v2866, 0.70710677
        %v2877 = vmul.f32 %v2868, 0.70710677
        %v2878 = verf.f32.pop %v2874
        %v2879 = verf.f32.pop %v2875
        %v2880 = verf.f32.pop %v2876
        %v2881 = verf.f32.pop %v2877
        %v2882 = vadd.f32 %v2878, 1.0
        %v2883 = vadd.f32 %v2879, 1.0
        %v2884 = vadd.f32 %v2880, 1.0
        %v2885 = vadd.f32 %v2881, 1.0
        %v2886 = vmul.f32 %v2870, %v2882
        %v2887 = vmul.f32 %v2871, %v2883
        %v2888 = vmul.f32 %v2872, %v2884
        %v2889 = vmul.f32 %v2873, %v2885
        %v2890 = vpack.c.bf16 %v2888, %v2886
        %v2891 = vpack.c.bf16 %v2889, %v2887
        %v2892 = vld [vmem:[%s763] sm:$0xf]
        %v2893 = vld [vmem:[%s763 + $0x4] sm:$0xf]
        %v2894 = vld [vmem:[%s763 + $0x8] sm:$0xf]
        %v2895 = vld [vmem:[%s763 + $0xc] sm:$0xf]
        %v2896 = vld [vmem:[%s763 + $0x10] sm:$0xf]
        %v2897 = vld [vmem:[%s763 + $0x14] sm:$0xf]
        %v2898 = vld [vmem:[%s763 + $0x18] sm:$0xf]
        %v2899 = vld [vmem:[%s763 + $0x1c] sm:$0xf]
        %v2900 = vld [vmem:[%s763 + $0x20] sm:$0xf]
        %v2901 = vld [vmem:[%s763 + $0x24] sm:$0xf]
        %v2902 = vld [vmem:[%s763 + $0x28] sm:$0xf]
        %v2903 = vld [vmem:[%s763 + $0x2c] sm:$0xf]
        %v2904 = vld [vmem:[%s763 + $0x30] sm:$0xf]
        %v2905 = vld [vmem:[%s763 + $0x34] sm:$0xf]
        %v2906 = vld [vmem:[%s763 + $0x38] sm:$0xf]
        %v2907 = vld [vmem:[%s763 + $0x3c] sm:$0xf]
        %v2908 = vld [vmem:[%s763 + $0x40] sm:$0xf]
        %v2909 = vld [vmem:[%s763 + $0x44] sm:$0xf]
        %v2910 = vld [vmem:[%s763 + $0x48] sm:$0xf]
        %v2911 = vld [vmem:[%s763 + $0x4c] sm:$0xf]
        %v2912 = vld [vmem:[%s763 + $0x50] sm:$0xf]
        %v2913 = vld [vmem:[%s763 + $0x54] sm:$0xf]
        %v2914 = vld [vmem:[%s763 + $0x58] sm:$0xf]
        %v2915 = vld [vmem:[%s763 + $0x5c] sm:$0xf]
        %v2916 = vld [vmem:[%s763 + $0x60] sm:$0xf]
        %v2917 = vld [vmem:[%s763 + $0x64] sm:$0xf]
        %v2918 = vld [vmem:[%s763 + $0x68] sm:$0xf]
        %v2919 = vld [vmem:[%s763 + $0x6c] sm:$0xf]
        %v2920 = vld [vmem:[%s763 + $0x70] sm:$0xf]
        %v2921 = vld [vmem:[%s763 + $0x74] sm:$0xf]
        %v2922 = vld [vmem:[%s763 + $0x78] sm:$0xf]
        %v2923 = vld [vmem:[%s763 + $0x7c] sm:$0xf]
        %v2924 = vld [vmem:[%s766] sm:$0x1]
        %v2926 = vlaneseq
        %v2927 = vshrl.u32 %v2926, 7
        %v2928 = vsub.s32 0, %v2927
        %v2929 = vrot.slane %v2924, %v2928
        %v2963 = vunpack.c.l.b16 %v2892
        %v2964 = vunpack.c.l.b16 %v2893
        %v2965 = vunpack.c.l.b16 %v2894
        %v2966 = vunpack.c.l.b16 %v2895
        %v2967 = vunpack.c.l.b16 %v2896
        %v2968 = vunpack.c.l.b16 %v2897
        %v2969 = vunpack.c.l.b16 %v2898
        %v2970 = vunpack.c.l.b16 %v2899
        %v2971 = vunpack.c.l.b16 %v2900
        %v2972 = vunpack.c.l.b16 %v2901
        %v2973 = vunpack.c.l.b16 %v2902
        %v2974 = vunpack.c.l.b16 %v2903
        %v2975 = vunpack.c.l.b16 %v2904
        %v2976 = vunpack.c.l.b16 %v2905
        %v2977 = vunpack.c.l.b16 %v2906
        %v2978 = vunpack.c.l.b16 %v2907
        %v2979 = vunpack.c.l.b16 %v2908
        %v2980 = vunpack.c.l.b16 %v2909
        %v2981 = vunpack.c.l.b16 %v2910
        %v2982 = vunpack.c.l.b16 %v2911
        %v2983 = vunpack.c.l.b16 %v2912
        %v2984 = vunpack.c.l.b16 %v2913
        %v2985 = vunpack.c.l.b16 %v2914
        %v2986 = vunpack.c.l.b16 %v2915
        %v2987 = vunpack.c.l.b16 %v2916
        %v2988 = vunpack.c.l.b16 %v2917
        %v2989 = vunpack.c.l.b16 %v2918
        %v2990 = vunpack.c.l.b16 %v2919
        %v2991 = vunpack.c.l.b16 %v2920
        %v2992 = vunpack.c.l.b16 %v2921
        %v2993 = vunpack.c.l.b16 %v2922
        %v2994 = vunpack.c.l.b16 %v2923
        %v2995 = vpack.c.b16 %v2964, %v2963
        %v2996 = vpack.c.b16 %v2966, %v2965
        %v2997 = vpack.c.b16 %v2968, %v2967
        %v2998 = vpack.c.b16 %v2970, %v2969
        %v2999 = vpack.c.b16 %v2972, %v2971
        %v3000 = vpack.c.b16 %v2974, %v2973
        %v3001 = vpack.c.b16 %v2976, %v2975
        %v3002 = vpack.c.b16 %v2978, %v2977
        %v3003 = vpack.c.b16 %v2980, %v2979
        %v3004 = vpack.c.b16 %v2982, %v2981
        %v3005 = vpack.c.b16 %v2984, %v2983
        %v3006 = vpack.c.b16 %v2986, %v2985
        %v3007 = vpack.c.b16 %v2988, %v2987
        %v3008 = vpack.c.b16 %v2990, %v2989
        %v3009 = vpack.c.b16 %v2992, %v2991
        %v3010 = vpack.c.b16 %v2994, %v2993
        %3027 = vmatprep.subr.bf16.mxu0 0
        %3028 = vmatpush1.bf16.msra.mxu0 %v3002
        %3029 = vmatprep.subr.bf16.mxu0 0
        %3030 = vmatpush1.bf16.msra.mxu0 %v3001
        %3031 = vmatprep.subr.bf16.mxu0 0
        %3032 = vmatpush1.bf16.msra.mxu0 %v3000
        %3033 = vmatprep.subr.bf16.mxu0 0
        %3034 = vmatpush1.bf16.msra.mxu0 %v2999
        %3035 = vmatprep.subr.bf16.mxu0 0
        %3036 = vmatpush1.bf16.msra.mxu0 %v2998
        %3037 = vmatprep.subr.bf16.mxu0 0
        %3038 = vmatpush1.bf16.msra.mxu0 %v2997
        %3039 = vmatprep.subr.bf16.mxu0 0
        %3040 = vmatpush1.bf16.msra.mxu0 %v2996
        %3041 = vmatprep.subr.bf16.mxu0 0
        %3042 = vmatpush1.bf16.msra.mxu0 %v2995
        %3043 = vmatprep.subr.bf16.mxu0 0
        %3044 = vmatpush2.bf16.msra.mxu0 %v3010
        %3045 = vmatprep.subr.bf16.mxu0 0
        %3046 = vmatpush2.bf16.msra.mxu0 %v3009
        %3047 = vmatprep.subr.bf16.mxu0 0
        %3048 = vmatpush2.bf16.msra.mxu0 %v3008
        %3049 = vmatprep.subr.bf16.mxu0 0
        %3050 = vmatpush2.bf16.msra.mxu0 %v3007
        %3051 = vmatprep.subr.bf16.mxu0 0
        %3052 = vmatpush2.bf16.msra.mxu0 %v3006
        %3053 = vmatprep.subr.bf16.mxu0 0
        %3054 = vmatpush2.bf16.msra.mxu0 %v3005
        %3055 = vmatprep.subr.bf16.mxu0 0
        %3056 = vmatpush2.bf16.msra.mxu0 %v3004
        %3057 = vmatprep.subr.bf16.mxu0 0
        %3058 = vmatpush2.bf16.msra.mxu0 %v3003
        %3059 = vmatprep.mubr.bf16.mxu0 %v2891
        %3060 = vmatmul.mubr.bf16.gmra.mxu0 %v2890
        %v3061 = vpop.f32.mrf.mxu0
        %v3062 = vadd.f32 %v2929, %v3061
        %v3063 = vpop.f32.mrf.mxu0
        %v3064 = vpop.f32.mrf.mxu0
        %v3065 = vadd.f32 %v2929, %v3064
        %v3066 = vpop.f32.mrf.mxu0
        %3067 = vdwg.mxu0
        %v3068 = vadd.f32 %v2674, %v3062
        %v3069 = vadd.f32 %v2675, %v3065
        %3070 = vst [vmem:[#allocation2] sm:$0xff] %v3068
        %3071 = vst [vmem:[#allocation2 + $0x8] sm:$0x3] %v3069
        %p3072 = scmp.eq.s32.totalorder %s31, 1
        // Predicated region
        $region101: #{model_forward.1} parent=95 // pred_check
          %p3073 = pneg %p3072
        $region102: #{model_forward.1} parent=95 // pred_check_branch
          %3075 = sbr.rel (%p3073) target = $region104
        $region103: #{model_forward.1} parent=95 // pred_region
          %v3077 = vrot.slane %v3068, 4
          %vm3079 = vcmask 1040384
          %v3080 = vsel %vm3079, %v3068, %v3077
          %v3081 = vld [vmem:[%s17] sm:$0x1]
          %v3082 = vld [vmem:[%s18] sm:$0x1]
          %v3083 = vsel %vm1315, %v3080, 0.0
          %3084 = vadd.xlane.f32.xlu0 %v3083
          %v3085 = vpop.xlane.xlu0 %3084
          %v3086 = vmul.f32 %v3085, %v1319
          %v3087 = vsub.f32 %v3080, %v3086
          %v3088 = vmul.f32 %v3087, %v3087
          %v3089 = vsel %vm1315, %v3088, 0.0
          %3090 = vadd.xlane.f32.xlu0 %v3089
          %v3091 = vpop.xlane.xlu0 %3090
          %v3092 = vmul.f32 %v3091, %v1319
          %v3093 = vadd.f32 %v3092, 1e-06
          %v3094 = vrsqrt.pop %v3093
          %v3095 = vmul.f32 %v3087, %v3094
          %v3097 = vlaneseq
          %v3098 = vshrl.u32 %v3097, 7
          %v3099 = vsub.s32 0, %v3098
          %v3100 = vrot.slane %v3081, %v3099
          %v3102 = vmul.f32 %v3095, %v3100
          %v3104 = vlaneseq
          %v3105 = vshrl.u32 %v3104, 7
          %v3106 = vsub.s32 0, %v3105
          %v3107 = vrot.slane %v3082, %v3106
          %v3109 = vadd.f32 %v3102, %v3107
          %v3110 = vmul.f32 %v3109, %v3109
          %v3111 = vsel %vm1315, %v3110, 0.0
          %3112 = vadd.xlane.f32.xlu0 %v3111
          %v3113 = vpop.xlane.xlu0 %3112
          %v3114 = vrsqrt.pop %v3113
          %v3115 = vmul.f32 %v3113, %v3114
          %vm3116 = vcmp.eq.f32.partialorder %v3113, inf
          %v3117 = vsel %vm3116, %v3113, %v3115
          %vm3118 = vcmp.eq.f32.partialorder %v3113, 0.0
          %v3119 = vand.u32 %v3113, 2147483648
          %v3120 = vsel %vm3118, %v3119, %v3117
          %v3121 = vmax.f32 %v3120, 1e-12
          %v3122 = vrcp.pop %v3121
          %v3123 = vmul.f32 %v3109, %v3122
          %3124 = vst [vmem:[#allocation3] sm:$0x3] %v3123
        $region104: #{model_forward.1} parent=95 // pred_fallthru
          _
        // Predicated region
        $region105: #{model_forward.1} parent=95 // pred_check
          %p3125 = pneg %p503
        $region106: #{model_forward.1} parent=95 // pred_check_branch
          %3127 = sbr.rel (%p3125) target = $region108
        $region107: #{model_forward.1} parent=95 // pred_region
          %s3129 = ssub.s32 32, 32
          %3130 = vsyncadd [#allocation4], %s3129
          %s3132 = sshll.u32 [#allocation3], 4
          %s3133 = int_to_ptr.vmem [resolvable:$true] %s3132
          %3135 = dma.vmem_to_hbm [thread:$0]  %s3133, 32, %s19, [#allocation4]
        $region108: #{model_forward.1} parent=95 // pred_fallthru
          _
        // Predicated region
        $region109: #{model_forward.1} parent=95 // pred_check
          %p3136 = pneg %p503
        $region110: #{model_forward.1} parent=95 // pred_check_branch
          %3138 = sbr.rel (%p3136) target = $region112
        $region111: #{model_forward.1} parent=95 // pred_region
          %3139 = dma.done [#allocation4], 32
        $region112: #{model_forward.1} parent=95 // pred_fallthru
          _
      $region96: #{model_forward.1} parent=5 // pred_fallthru
        _
      %p3140 = scmp.le.s32.totalorder 2, %s26
      // Predicated region
      $region113: #{model_forward.1} parent=5 // pred_check
        %p3141 = pneg %p3140
      $region114: #{model_forward.1} parent=5 // pred_check_branch
        %3143 = sbr.rel (%p3141) target = $region116
      $region115: #{model_forward.1} parent=5 // pred_region
        %s3144 = ssub.s32 %s26, 2
      $region116: #{model_forward.1} parent=5 // pred_fallthru
        _
    $region6: #{model_forward.1} parent=1 // loop_footer
      %s30 = sadd.s32 1, %s26
    $region7: #{model_forward.1} parent=1 // loop_footer_branch
      %25 = sbr.rel target = $region3
    $region8: #{model_forward.1} parent=1 // loop_exit
      _
    %3145 = vsyncpa [#allocation4], 1
    %s3146 = scalar_lea.sflag [#allocation4], 1
    %3147 = vsyncpa %s3146, 1

</llo_original>
